<compile_context>
chip_gen: v7x
topology: tpu7x:2x2x1
jax: 0.10.0
libtpu: 0.0.40
codegen_flags: <defaults>
</compile_context>

<pallas_src>
import functools

import jax
import jax.numpy as jnp
from jax.experimental import pallas as pl
from jax.experimental.pallas import tpu as pltpu

H1 = 400          # nn.Linear(obs_dim, 400)
H2 = 300          # nn.Linear(400 + act_dim, 300)
LN_EPS = 1e-5     # PyTorch LayerNorm default eps

_TILE_B_DEFAULT = 1024   # batch tile (lane axis); multiple of 128


def _round_up(x, m):
    return ((x + m - 1) // m) * m


def _cdiv(a, b):
    return -(-a // b)


def qnet_kernel(consts_ref, obs_ref, act_ref,
                w1_ref, b1_ref,
                w2a_ref, w2b_ref, b2_ref, g_ref,
                out_ref):
    # Activations are (features, batch): batch on lanes, features on sublanes.

    # ---- layer 1: relu(W1 @ obs + b1) ----
    h1 = jnp.dot(w1_ref[...], obs_ref[...],
                 preferred_element_type=jnp.float32) + b1_ref[...]
    h1 = jnp.maximum(h1, 0.0)

    # ---- LayerNorm(400) over the feature (sublane) axis; affine folded into layer 2 ----
    n1 = h1.shape[0]
    s1 = jnp.sum(h1, axis=0, keepdims=True)
    s2 = jnp.sum(h1 * h1, axis=0, keepdims=True)
    mu1 = s1 / n1
    var1 = jnp.maximum(s2 / n1 - mu1 * mu1, 0.0)
    h1 = (h1 - mu1) * jax.lax.rsqrt(var1 + LN_EPS)

    # ---- layer 2: relu(W2a @ LN1(h1) + W2b @ action + b2)  (split concat-matmul) ----
    h2 = (jnp.dot(w2a_ref[...], h1.astype(jnp.bfloat16),
                  preferred_element_type=jnp.float32)
          + jnp.dot(w2b_ref[...], act_ref[...],
                    preferred_element_type=jnp.float32)
          + b2_ref[...])
    h2 = jnp.maximum(h2, 0.0)

    # ---- LayerNorm(300) + affine + 300->1 head, fully folded ----
    #   q = (sum_f h2*g' - mu2*G) * rsqrt(var2 + eps) + c     -> (1, TILE_B) row
    n2 = h2.shape[0]
    t1 = jnp.sum(h2, axis=0, keepdims=True)
    t2 = jnp.sum(h2 * h2, axis=0, keepdims=True)
    mu2 = t1 / n2
    var2 = jnp.maximum(t2 / n2 - mu2 * mu2, 0.0)
    dot_g = jnp.sum(h2 * g_ref[...], axis=0, keepdims=True)
    G = consts_ref[0]
    c = consts_ref[1]
    out_ref[...] = (dot_g - mu2 * G) * jax.lax.rsqrt(var2 + LN_EPS) + c


@functools.partial(jax.jit, static_argnames=("tile_b",))
def qnetwork_forward(obs, action, params, tile_b=_TILE_B_DEFAULT):
    B, obs_dim = obs.shape
    act_dim = action.shape[1]

    # >= 2 (even) grid steps so v7x megacore has work on both TensorCores;
    # TILE_B is a multiple of 128 (lane-dense output block); deriving tb from
    # the tile count bounds padding waste.
    n_tiles = max(2, _cdiv(B, tile_b))
    n_tiles += n_tiles % 2
    tb = _round_up(_cdiv(B, n_tiles), 128)
    b_pad = n_tiles * tb

    # bf16 batch tiles, transposed to (features, batch) for the lane-dense layout.
    obs_t = jnp.pad(obs.astype(jnp.bfloat16), ((0, b_pad - B), (0, 0))).T
    act_t = jnp.pad(action.astype(jnp.bfloat16), ((0, b_pad - B), (0, 0))).T

    batch_tile = lambda i: (0, i)   # streamed per grid step
    resident = lambda i: (0, 0)     # weights stay put in VMEM (fetched once)

    in_specs = [
        pl.BlockSpec(memory_space=pltpu.MemorySpace.SMEM),   # consts = [G, c]
        pl.BlockSpec((obs_dim, tb), batch_tile),
        pl.BlockSpec((act_dim, tb), batch_tile),
        pl.BlockSpec((H1, obs_dim), resident),
        pl.BlockSpec((H1, 1), resident),
        pl.BlockSpec((H2, H1), resident),
        pl.BlockSpec((H2, act_dim), resident),
        pl.BlockSpec((H2, 1), resident),
        pl.BlockSpec((H2, 1), resident),
    ]
    out_specs = pl.BlockSpec((1, tb), batch_tile)

    out = pl.pallas_call(
        qnet_kernel,
        out_shape=jax.ShapeDtypeStruct((1, b_pad), jnp.float32),
        grid=(n_tiles,),
        in_specs=in_specs,
        out_specs=out_specs,
        compiler_params=pltpu.CompilerParams(
            dimension_semantics=("parallel",),
            vmem_limit_bytes=32 * 1024 * 1024),
    )(params["consts"], obs_t, act_t,
      params["w1t"], params["b1"],
      params["w2at"], params["w2bt"], params["b2"], params["g"])

    return out[0, :B][:, None]


# ------------------------- parameters & references -------------------------

def init_raw_params(key, obs_dim, act_dim):
    """f32 params mirroring the PyTorch module (nn.Linear default init, LN affine=1/0)."""
    def linear(key, fan_in, fan_out):
        kw, kb = jax.random.split(key)
        bound = 1.0 / jnp.sqrt(jnp.float32(fan_in))
        w = jax.random.uniform(kw, (fan_in, fan_out), jnp.float32, -bound, bound)
        b = jax.random.uniform(kb, (fan_out,), jnp.float32, -bound, bound)
        return w, b

    k1, k2, k3 = jax.random.split(key, 3)
    w1, b1 = linear(k1, obs_dim, H1)
    w2, b2 = linear(k2, H1 + act_dim, H2)
    w3, b3 = linear(k3, H2, 1)
    return {
        "w1": w1, "b1": b1,
        "g1": jnp.ones((H1,), jnp.float32), "be1": jnp.zeros((H1,), jnp.float32),
        "w2": w2, "b2": b2,
        "g2": jnp.ones((H2,), jnp.float32), "be2": jnp.zeros((H2,), jnp.float32),
        "w3": w3[:, 0], "b3": b3[0],
    }


def prepare_params(raw):
    """Fold LN affines / head (exact algebra) and pack into the kernel layout."""
    w2a = raw["w2"][:H1, :]           # (H1, H2): acts on LN1 output
    w2b = raw["w2"][H1:, :]           # (A,  H2): acts on action
    # Fold LN1 affine into layer 2:  (xhat*g1+be1)@W2a = xhat@(g1*W2a) + be1@W2a
    w2a_f = raw["g1"][:, None] * w2a
    b2_f = raw["b2"] + raw["be1"] @ w2a
    # Fold LN2 affine + head:  (xhat*g2+be2)@w3 + b3 = xhat@(g2*w3) + (be2.w3 + b3)
    gp = raw["g2"] * raw["w3"]                            # (H2,)
    c = jnp.dot(raw["be2"], raw["w3"]) + raw["b3"]        # scalar
    G = jnp.sum(gp)                                       # scalar

    return {
        "w1t": raw["w1"].T.astype(jnp.bfloat16),          # (H1, O)
        "b1": raw["b1"][:, None],                          # (H1, 1) f32
        "w2at": w2a_f.T.astype(jnp.bfloat16),              # (H2, H1)
        "w2bt": w2b.T.astype(jnp.bfloat16),                # (H2, A)
        "b2": b2_f[:, None],                               # (H2, 1) f32
        "g": gp[:, None],                                  # (H2, 1) f32
        "consts": jnp.stack([G, c]).astype(jnp.float32),   # (2,) -> SMEM
    }


def _ln_noaffine(x):
    mu = jnp.mean(x, axis=-1, keepdims=True)
    var = jnp.maximum(jnp.mean(x * x, axis=-1, keepdims=True) - mu * mu, 0.0)
    return (x - mu) * jax.lax.rsqrt(var + LN_EPS)


def reference_same_scheme(obs, action, p):
    """Pure-JAX reference using the same folded bf16-operand / f32-accumulate scheme."""
    obs_b = obs.astype(jnp.bfloat16)
    act_b = action.astype(jnp.bfloat16)
    h1 = jnp.dot(obs_b, p["w1t"].T, preferred_element_type=jnp.float32) + p["b1"].T
    h1 = _ln_noaffine(jnp.maximum(h1, 0.0))
    h2 = (jnp.dot(h1.astype(jnp.bfloat16), p["w2at"].T, preferred_element_type=jnp.float32)
          + jnp.dot(act_b, p["w2bt"].T, preferred_element_type=jnp.float32)
          + p["b2"].T)
    h2 = jnp.maximum(h2, 0.0)
    mu2 = jnp.mean(h2, axis=-1, keepdims=True)
    var2 = jnp.maximum(jnp.mean(h2 * h2, axis=-1, keepdims=True) - mu2 * mu2, 0.0)
    dot_g = jnp.sum(h2 * p["g"].T, axis=-1, keepdims=True)
    G, c = p["consts"][0], p["consts"][1]
    return (dot_g - mu2 * G) * jax.lax.rsqrt(var2 + LN_EPS) + c


def module_forward_f32(obs, action, raw):
    """Straight f32 transcription of the PyTorch module (no folding, no bf16)."""
    def ln(x, g, b):
        mu = jnp.mean(x, axis=-1, keepdims=True)
        var = jnp.mean((x - mu) ** 2, axis=-1, keepdims=True)
        return (x - mu) * jax.lax.rsqrt(var + LN_EPS) * g + b

    h = jax.nn.relu(obs @ raw["w1"] + raw["b1"])
    h = ln(h, raw["g1"], raw["be1"])
    h = jax.nn.relu(jnp.concatenate([h, action], axis=1) @ raw["w2"] + raw["b2"])
    h = ln(h, raw["g2"], raw["be2"])
    return h @ raw["w3"][:, None] + raw["b3"]


if __name__ == "__main__":
    B, OBS_DIM, ACT_DIM = 8, 16, 8

    key = jax.random.PRNGKey(0)
    k_obs, k_act, k_par = jax.random.split(key, 3)
    obs = jax.random.normal(k_obs, (B, OBS_DIM), jnp.float32)
    action = jax.random.normal(k_act, (B, ACT_DIM), jnp.float32)

    raw = init_raw_params(k_par, OBS_DIM, ACT_DIM)
    params = prepare_params(raw)

    q = qnetwork_forward(obs, action, params)
    q = jax.block_until_ready(q)
    assert q.shape == (B, 1), q.shape

    # Tight check vs a same-scheme (folded, bf16-operand) JAX reference.
    q_same = reference_same_scheme(obs, action, params)
    assert jnp.allclose(q, q_same, atol=5e-3, rtol=5e-3), "mismatch vs same-scheme reference"

    # Looser check vs the exact f32 PyTorch-module math (bf16 operand rounding budget).
    q_mod = module_forward_f32(obs, action, raw)
    assert jnp.allclose(q, q_mod, atol=1e-1, rtol=1e-1), "mismatch vs f32 module reference"

    print("KERNEL_OK")
</pallas_src>

<mosaic_0001>
module attributes {stable_mosaic.version = 11 : i64} {
  func.func @qnet_kernel(%arg0: i32, %arg1: memref<2xf32, #tpu.memory_space<smem>>, %arg2: memref<16x128xbf16, #tpu.memory_space<vmem>>, %arg3: memref<8x128xbf16, #tpu.memory_space<vmem>>, %arg4: memref<400x16xbf16, #tpu.memory_space<vmem>>, %arg5: memref<400x1xf32, #tpu.memory_space<vmem>>, %arg6: memref<300x400xbf16, #tpu.memory_space<vmem>>, %arg7: memref<300x8xbf16, #tpu.memory_space<vmem>>, %arg8: memref<300x1xf32, #tpu.memory_space<vmem>>, %arg9: memref<300x1xf32, #tpu.memory_space<vmem>>, %arg10: memref<1x128xf32, #tpu.memory_space<vmem>>) attributes {dimension_semantics = [#tpu.dimension_semantics<parallel>], iteration_bounds = array<i64: 2>, scalar_prefetch = 0 : i64, scratch_operands = 0 : i64, tpu.core_type = #tpu.core_type<tc>, window_params = [{transform_indices = @transform_0, window_bounds = array<i64: 2>}, {transform_indices = @transform_1, window_bounds = array<i64: 16, 128>}, {transform_indices = @transform_2, window_bounds = array<i64: 8, 128>}, {pipeline_mode = #tpu.pipeline_mode<synchronous>, transform_indices = @transform_3, window_bounds = array<i64: 400, 16>}, {pipeline_mode = #tpu.pipeline_mode<synchronous>, transform_indices = @transform_4, window_bounds = array<i64: 400, 1>}, {pipeline_mode = #tpu.pipeline_mode<synchronous>, transform_indices = @transform_5, window_bounds = array<i64: 300, 400>}, {pipeline_mode = #tpu.pipeline_mode<synchronous>, transform_indices = @transform_6, window_bounds = array<i64: 300, 8>}, {pipeline_mode = #tpu.pipeline_mode<synchronous>, transform_indices = @transform_7, window_bounds = array<i64: 300, 1>}, {pipeline_mode = #tpu.pipeline_mode<synchronous>, transform_indices = @transform_8, window_bounds = array<i64: 300, 1>}, {transform_indices = @transform_9, window_bounds = array<i64: 1, 128>}]} {
    %c0 = arith.constant 0 : index
    %c0_0 = arith.constant 0 : index
    %0 = vector.load %arg4[%c0, %c0_0] : memref<400x16xbf16, #tpu.memory_space<vmem>>, vector<400x16xbf16>
    %c0_1 = arith.constant 0 : index
    %c0_2 = arith.constant 0 : index
    %1 = vector.load %arg2[%c0_1, %c0_2] : memref<16x128xbf16, #tpu.memory_space<vmem>>, vector<16x128xbf16>
    %cst = arith.constant dense<0.000000e+00> : vector<400x128xf32>
    %2 = tpu.matmul %0, %1, %cst {dimension_numbers = #tpu.dot_dimension_numbers<[1], [0], [0], [1], [0, 0, 1, 1], [], []>} : vector<400x16xbf16>, vector<16x128xbf16>, vector<400x128xf32> -> vector<400x128xf32>
    %c0_3 = arith.constant 0 : index
    %c0_4 = arith.constant 0 : index
    %3 = vector.load %arg5[%c0_3, %c0_4] : memref<400x1xf32, #tpu.memory_space<vmem>>, vector<400x1xf32>
    %4 = vector.broadcast %3 : vector<400x1xf32> to vector<400x128xf32>
    %5 = arith.addf %2, %4 : vector<400x128xf32>
    %cst_5 = arith.constant 0.000000e+00 : f32
    %6 = vector.broadcast %cst_5 : f32 to vector<400x128xf32>
    %7 = arith.maximumf %5, %6 : vector<400x128xf32>
    %cst_6 = arith.constant dense<0.000000e+00> : vector<128xf32>
    %8 = vector.multi_reduction <add>, %7, %cst_6 [0] : vector<400x128xf32> to vector<128xf32>
    %9 = vector.shape_cast %8 : vector<128xf32> to vector<1x128xf32>
    %10 = arith.mulf %7, %7 : vector<400x128xf32>
    %cst_7 = arith.constant dense<0.000000e+00> : vector<128xf32>
    %11 = vector.multi_reduction <add>, %10, %cst_7 [0] : vector<400x128xf32> to vector<128xf32>
    %12 = vector.shape_cast %11 : vector<128xf32> to vector<1x128xf32>
    %cst_8 = arith.constant 4.000000e+02 : f32
    %13 = vector.broadcast %cst_8 : f32 to vector<1x128xf32>
    %14 = arith.divf %9, %13 : vector<1x128xf32>
    %cst_9 = arith.constant 4.000000e+02 : f32
    %15 = vector.broadcast %cst_9 : f32 to vector<1x128xf32>
    %16 = arith.divf %12, %15 : vector<1x128xf32>
    %17 = arith.mulf %14, %14 : vector<1x128xf32>
    %18 = arith.subf %16, %17 : vector<1x128xf32>
    %cst_10 = arith.constant 0.000000e+00 : f32
    %19 = vector.broadcast %cst_10 : f32 to vector<1x128xf32>
    %20 = arith.maximumf %18, %19 : vector<1x128xf32>
    %21 = vector.broadcast %14 : vector<1x128xf32> to vector<400x128xf32>
    %22 = arith.subf %7, %21 : vector<400x128xf32>
    %cst_11 = arith.constant 9.99999974E-6 : f32
    %23 = vector.broadcast %cst_11 : f32 to vector<1x128xf32>
    %24 = arith.addf %20, %23 : vector<1x128xf32>
    %25 = math.rsqrt %24 : vector<1x128xf32>
    %26 = vector.broadcast %25 : vector<1x128xf32> to vector<400x128xf32>
    %27 = arith.mulf %22, %26 : vector<400x128xf32>
    %c0_12 = arith.constant 0 : index
    %c0_13 = arith.constant 0 : index
    %28 = vector.load %arg6[%c0_12, %c0_13] : memref<300x400xbf16, #tpu.memory_space<vmem>>, vector<300x400xbf16>
    %29 = arith.truncf %27 : vector<400x128xf32> to vector<400x128xbf16>
    %cst_14 = arith.constant dense<0.000000e+00> : vector<300x128xf32>
    %30 = tpu.matmul %28, %29, %cst_14 {dimension_numbers = #tpu.dot_dimension_numbers<[1], [0], [0], [1], [0, 0, 1, 1], [], []>} : vector<300x400xbf16>, vector<400x128xbf16>, vector<300x128xf32> -> vector<300x128xf32>
    %c0_15 = arith.constant 0 : index
    %c0_16 = arith.constant 0 : index
    %31 = vector.load %arg7[%c0_15, %c0_16] : memref<300x8xbf16, #tpu.memory_space<vmem>>, vector<300x8xbf16>
    %c0_17 = arith.constant 0 : index
    %c0_18 = arith.constant 0 : index
    %32 = vector.load %arg3[%c0_17, %c0_18] : memref<8x128xbf16, #tpu.memory_space<vmem>>, vector<8x128xbf16>
    %cst_19 = arith.constant dense<0.000000e+00> : vector<300x128xf32>
    %33 = tpu.matmul %31, %32, %cst_19 {dimension_numbers = #tpu.dot_dimension_numbers<[1], [0], [0], [1], [0, 0, 1, 1], [], []>} : vector<300x8xbf16>, vector<8x128xbf16>, vector<300x128xf32> -> vector<300x128xf32>
    %34 = arith.addf %30, %33 : vector<300x128xf32>
    %c0_20 = arith.constant 0 : index
    %c0_21 = arith.constant 0 : index
    %35 = vector.load %arg8[%c0_20, %c0_21] : memref<300x1xf32, #tpu.memory_space<vmem>>, vector<300x1xf32>
    %36 = vector.broadcast %35 : vector<300x1xf32> to vector<300x128xf32>
    %37 = arith.addf %34, %36 : vector<300x128xf32>
    %cst_22 = arith.constant 0.000000e+00 : f32
    %38 = vector.broadcast %cst_22 : f32 to vector<300x128xf32>
    %39 = arith.maximumf %37, %38 : vector<300x128xf32>
    %cst_23 = arith.constant dense<0.000000e+00> : vector<128xf32>
    %40 = vector.multi_reduction <add>, %39, %cst_23 [0] : vector<300x128xf32> to vector<128xf32>
    %41 = vector.shape_cast %40 : vector<128xf32> to vector<1x128xf32>
    %42 = arith.mulf %39, %39 : vector<300x128xf32>
    %cst_24 = arith.constant dense<0.000000e+00> : vector<128xf32>
    %43 = vector.multi_reduction <add>, %42, %cst_24 [0] : vector<300x128xf32> to vector<128xf32>
    %44 = vector.shape_cast %43 : vector<128xf32> to vector<1x128xf32>
    %cst_25 = arith.constant 3.000000e+02 : f32
    %45 = vector.broadcast %cst_25 : f32 to vector<1x128xf32>
    %46 = arith.divf %41, %45 : vector<1x128xf32>
    %cst_26 = arith.constant 3.000000e+02 : f32
    %47 = vector.broadcast %cst_26 : f32 to vector<1x128xf32>
    %48 = arith.divf %44, %47 : vector<1x128xf32>
    %49 = arith.mulf %46, %46 : vector<1x128xf32>
    %50 = arith.subf %48, %49 : vector<1x128xf32>
    %cst_27 = arith.constant 0.000000e+00 : f32
    %51 = vector.broadcast %cst_27 : f32 to vector<1x128xf32>
    %52 = arith.maximumf %50, %51 : vector<1x128xf32>
    %c0_28 = arith.constant 0 : index
    %c0_29 = arith.constant 0 : index
    %53 = vector.load %arg9[%c0_28, %c0_29] : memref<300x1xf32, #tpu.memory_space<vmem>>, vector<300x1xf32>
    %54 = vector.broadcast %53 : vector<300x1xf32> to vector<300x128xf32>
    %55 = arith.mulf %39, %54 : vector<300x128xf32>
    %cst_30 = arith.constant dense<0.000000e+00> : vector<128xf32>
    %56 = vector.multi_reduction <add>, %55, %cst_30 [0] : vector<300x128xf32> to vector<128xf32>
    %57 = vector.shape_cast %56 : vector<128xf32> to vector<1x128xf32>
    %c0_31 = arith.constant 0 : index
    %58 = memref.load %arg1[%c0_31] : memref<2xf32, #tpu.memory_space<smem>>
    %c1 = arith.constant 1 : index
    %59 = memref.load %arg1[%c1] : memref<2xf32, #tpu.memory_space<smem>>
    %60 = vector.broadcast %58 : f32 to vector<1x128xf32>
    %61 = arith.mulf %46, %60 : vector<1x128xf32>
    %62 = arith.subf %57, %61 : vector<1x128xf32>
    %cst_32 = arith.constant 9.99999974E-6 : f32
    %63 = vector.broadcast %cst_32 : f32 to vector<1x128xf32>
    %64 = arith.addf %52, %63 : vector<1x128xf32>
    %65 = math.rsqrt %64 : vector<1x128xf32>
    %66 = arith.mulf %62, %65 : vector<1x128xf32>
    %67 = vector.broadcast %59 : f32 to vector<1x128xf32>
    %68 = arith.addf %66, %67 : vector<1x128xf32>
    %c0_33 = arith.constant 0 : index
    %c0_34 = arith.constant 0 : index
    %69 = vector.load %arg10[%c0_33, %c0_34] : memref<1x128xf32, #tpu.memory_space<vmem>>, vector<1x128xf32>
    tpu.vector_store %arg10[%c0_33, %c0_34], %68 {strides = array<i32>} : memref<1x128xf32, #tpu.memory_space<vmem>>, vector<1x128xf32>,
    return
  }
  func.func @transform_0(%arg0: i32) -> i32 {
    %c0_i32 = arith.constant 0 : i32
    %c0_i32_0 = arith.constant 0 : i32
    return %c0_i32 : i32
  }
  func.func @transform_1(%arg0: i32) -> (i32, i32) {
    %c0_i32 = arith.constant 0 : i32
    %c0_i32_0 = arith.constant 0 : i32
    return %c0_i32, %arg0 : i32, i32
  }
  func.func @transform_2(%arg0: i32) -> (i32, i32) {
    %c0_i32 = arith.constant 0 : i32
    %c0_i32_0 = arith.constant 0 : i32
    return %c0_i32, %arg0 : i32, i32
  }
  func.func @transform_3(%arg0: i32) -> (i32, i32) {
    %c0_i32 = arith.constant 0 : i32
    %c0_i32_0 = arith.constant 0 : i32
    %c0_i32_1 = arith.constant 0 : i32
    return %c0_i32, %c0_i32_0 : i32, i32
  }
  func.func @transform_4(%arg0: i32) -> (i32, i32) {
    %c0_i32 = arith.constant 0 : i32
    %c0_i32_0 = arith.constant 0 : i32
    %c0_i32_1 = arith.constant 0 : i32
    return %c0_i32, %c0_i32_0 : i32, i32
  }
  func.func @transform_5(%arg0: i32) -> (i32, i32) {
    %c0_i32 = arith.constant 0 : i32
    %c0_i32_0 = arith.constant 0 : i32
    %c0_i32_1 = arith.constant 0 : i32
    return %c0_i32, %c0_i32_0 : i32, i32
  }
  func.func @transform_6(%arg0: i32) -> (i32, i32) {
    %c0_i32 = arith.constant 0 : i32
    %c0_i32_0 = arith.constant 0 : i32
    %c0_i32_1 = arith.constant 0 : i32
    return %c0_i32, %c0_i32_0 : i32, i32
  }
  func.func @transform_7(%arg0: i32) -> (i32, i32) {
    %c0_i32 = arith.constant 0 : i32
    %c0_i32_0 = arith.constant 0 : i32
    %c0_i32_1 = arith.constant 0 : i32
    return %c0_i32, %c0_i32_0 : i32, i32
  }
  func.func @transform_8(%arg0: i32) -> (i32, i32) {
    %c0_i32 = arith.constant 0 : i32
    %c0_i32_0 = arith.constant 0 : i32
    %c0_i32_1 = arith.constant 0 : i32
    return %c0_i32, %c0_i32_0 : i32, i32
  }
  func.func @transform_9(%arg0: i32) -> (i32, i32) {
    %c0_i32 = arith.constant 0 : i32
    %c0_i32_0 = arith.constant 0 : i32
    return %c0_i32, %arg0 : i32, i32
  }
}

</mosaic_0001>

<llo_original>
// kernel: qnetwork_forward.1
$region0: #{qnetwork_forward.1}
  #allocation0 [shape = 'u32[]', space=smem, size = 0x4, offset = 0x4, fixed_abs, tag = 'smem constant byte address 0x4 - core index']
  #allocation1 [shape = 'u32[144,128]{1,0:T(1,128)}', space=vmem, size = 0x12000, scoped, tag = 'internal scratch']
  %s0 = inlined_call_operand.vmem [shape: f32[2], index: 0, kind: input, shape index: {}]
  %s1 = inlined_call_operand.vmem [shape: bf16[16,256], index: 1, kind: input, shape index: {}]
  %s2 = inlined_call_operand.vmem [shape: bf16[8,256], index: 2, kind: input, shape index: {}]
  %s3 = inlined_call_operand.vmem [shape: bf16[400,16], index: 3, kind: input, shape index: {}]
  %s4 = inlined_call_operand.vmem [shape: f32[400,1], index: 4, kind: input, shape index: {}]
  %s5 = inlined_call_operand.vmem [shape: bf16[300,400], index: 5, kind: input, shape index: {}]
  %s6 = inlined_call_operand.vmem [shape: bf16[300,8], index: 6, kind: input, shape index: {}]
  %s7 = inlined_call_operand.vmem [shape: f32[300,1], index: 7, kind: input, shape index: {}]
  %s8 = inlined_call_operand.vmem [shape: f32[300,1], index: 8, kind: input, shape index: {}]
  %s9 = inlined_call_operand.vmem [shape: f32[1,256], index: 9, kind: output, shape index: {}]
  %s10 = sld [smem:[#allocation0]]
  $region114: #{qnetwork_forward.1} parent=0
    _
  %s12 = ssub.s32 1, %s10
  %s13 = scalar_select 0, %s12, %s10
  $region1: #{qnetwork_forward.1} parent=0
    #allocation2 [shape = 'u8[512]{0}', space=smem, size = 0x200, scoped, tag = 'input window, operand 0, single buffered']
    #allocation3 [shape = 's32[2]{0}', space=sflag, size = 0x8, scoped, tag = 'scoped memory for qnetwork_forward.1']
    #allocation4 [shape = 'u8[8192]{0}', space=vmem, size = 0x2000, scoped, tag = 'input window, operand 1']
    %14 = vsyncpa [#allocation3], 0
    loop: start=0, step=1, limit=4
    $region2: #{qnetwork_forward.1} parent=1 // loop_pre_header
      _
    $region3: #{qnetwork_forward.1} parent=1 // loop_header
      %s16 = sphi 0, %s20
      %p17 = scmp.ge.s32.totalorder %s16, 4
      %s24 = sphi 0, %s24
      %s26 = sphi 0, %s24
      %s27 = sphi 0, %s26
      %s41 = sphi 0, %s27
      %s47 = sphi 0, %s49
      %s50 = sphi 0, %s47
      %s51 = sphi 0, %s50
      %s67 = sphi 0, %s51
      %s73 = sphi 0, %s75
      %s76 = sphi 0, %s73
      %s77 = sphi 0, %s76
      %s93 = sphi 0, %s77
      %s97 = sphi 0, %s97
      %s99 = sphi 0, %s97
      %s100 = sphi 0, %s99
      %s114 = sphi 0, %s100
      %s118 = sphi 0, %s118
      %s120 = sphi 0, %s118
      %s121 = sphi 0, %s120
      %s135 = sphi 0, %s121
      %s139 = sphi 0, %s139
      %s141 = sphi 0, %s139
      %s142 = sphi 0, %s141
      %s156 = sphi 0, %s142
      %s160 = sphi 0, %s160
      %s162 = sphi 0, %s160
      %s163 = sphi 0, %s162
      %s177 = sphi 0, %s163
      %s181 = sphi 0, %s181
      %s183 = sphi 0, %s181
      %s184 = sphi 0, %s183
      %s198 = sphi 0, %s184
      %s202 = sphi 0, %s202
      %s204 = sphi 0, %s202
      %s205 = sphi 0, %s204
      %s219 = sphi 0, %s205
      %s225 = sphi 0, %s227
      %s228 = sphi 0, %s225
      %s229 = sphi 0, %s228
      %s245 = sphi 0, %s229
    $region4: #{qnetwork_forward.1} parent=1 // loop_header_branch
      %19 = sbr.rel (%p17) target = $region8
    $region5: #{qnetwork_forward.1} parent=1 // loop_body
      %s21 = ssub.s32 %s16, 1
      %s22 = ssub.s32 %s16, 2
      %s23 = sadd.s32 %s16, 1
      %s25 = sadd.s32 %s24, 1
      %p28 = scmp.eq.s32.totalorder %s16, 1
      %p29 = scmp.ne.s32.totalorder %s24, %s26
      %p30 = scmp.eq.s32.totalorder %s16, 0
      %p31 = por %p29, %p30
      %p32 = scmp.ne.s32.totalorder %s24, %s26
      %p33 = scmp.eq.s32.totalorder %s21, 1
      %p34 = por %p32, %p33
      %p35 = scmp.ne.s32.totalorder %s26, %s27
      %p36 = scmp.eq.s32.totalorder %s21, 0
      %p37 = por %p35, %p36
      %p38 = scmp.ne.s32.totalorder %s26, %s27
      %p39 = scmp.eq.s32.totalorder %s22, 1
      %p40 = por %p38, %p39
      %p42 = scmp.ne.s32.totalorder %s27, %s41
      %p43 = scmp.eq.s32.totalorder %s22, 0
      %p44 = por %p42, %p43
      %s45 = ssub.s32 %s16, %s23
      %p46 = scmp.eq.s32.totalorder %s45, 0
      %s48 = sadd.s32 %s47, 1
      %s49 = scalar_select %p46, %s47, %s48
      %p52 = pneg %p46
      %p53 = scmp.eq.s32.totalorder %s16, 1
      %p54 = por %p52, %p53
      %p55 = scmp.ne.s32.totalorder %s47, %s50
      %p56 = scmp.eq.s32.totalorder %s16, 0
      %p57 = por %p55, %p56
      %p58 = scmp.ne.s32.totalorder %s47, %s50
      %p59 = scmp.eq.s32.totalorder %s21, 1
      %p60 = por %p58, %p59
      %p61 = scmp.ne.s32.totalorder %s50, %s51
      %p62 = scmp.eq.s32.totalorder %s21, 0
      %p63 = por %p61, %p62
      %p64 = scmp.ne.s32.totalorder %s50, %s51
      %p65 = scmp.eq.s32.totalorder %s22, 1
      %p66 = por %p64, %p65
      %p68 = scmp.ne.s32.totalorder %s51, %s67
      %p69 = scmp.eq.s32.totalorder %s22, 0
      %p70 = por %p68, %p69
      %s71 = ssub.s32 %s16, %s23
      %p72 = scmp.eq.s32.totalorder %s71, 0
      %s74 = sadd.s32 %s73, 1
      %s75 = scalar_select %p72, %s73, %s74
      %p78 = pneg %p72
      %p79 = scmp.eq.s32.totalorder %s16, 1
      %p80 = por %p78, %p79
      %p81 = scmp.ne.s32.totalorder %s73, %s76
      %p82 = scmp.eq.s32.totalorder %s16, 0
      %p83 = por %p81, %p82
      %p84 = scmp.ne.s32.totalorder %s73, %s76
      %p85 = scmp.eq.s32.totalorder %s21, 1
      %p86 = por %p84, %p85
      %p87 = scmp.ne.s32.totalorder %s76, %s77
      %p88 = scmp.eq.s32.totalorder %s21, 0
      %p89 = por %p87, %p88
      %p90 = scmp.ne.s32.totalorder %s76, %s77
      %p91 = scmp.eq.s32.totalorder %s22, 1
      %p92 = por %p90, %p91
      %p94 = scmp.ne.s32.totalorder %s77, %s93
      %p95 = scmp.eq.s32.totalorder %s22, 0
      %p96 = por %p94, %p95
      %s98 = sadd.s32 %s97, 1
      %p101 = scmp.eq.s32.totalorder %s16, 1
      %p102 = scmp.ne.s32.totalorder %s97, %s99
      %p103 = scmp.eq.s32.totalorder %s16, 0
      %p104 = por %p102, %p103
      %p105 = scmp.ne.s32.totalorder %s97, %s99
      %p106 = scmp.eq.s32.totalorder %s21, 1
      %p107 = por %p105, %p106
      %p108 = scmp.ne.s32.totalorder %s99, %s100
      %p109 = scmp.eq.s32.totalorder %s21, 0
      %p110 = por %p108, %p109
      %p111 = scmp.ne.s32.totalorder %s99, %s100
      %p112 = scmp.eq.s32.totalorder %s22, 1
      %p113 = por %p111, %p112
      %p115 = scmp.ne.s32.totalorder %s100, %s114
      %p116 = scmp.eq.s32.totalorder %s22, 0
      %p117 = por %p115, %p116
      %s119 = sadd.s32 %s118, 1
      %p122 = scmp.eq.s32.totalorder %s16, 1
      %p123 = scmp.ne.s32.totalorder %s118, %s120
      %p124 = scmp.eq.s32.totalorder %s16, 0
      %p125 = por %p123, %p124
      %p126 = scmp.ne.s32.totalorder %s118, %s120
      %p127 = scmp.eq.s32.totalorder %s21, 1
      %p128 = por %p126, %p127
      %p129 = scmp.ne.s32.totalorder %s120, %s121
      %p130 = scmp.eq.s32.totalorder %s21, 0
      %p131 = por %p129, %p130
      %p132 = scmp.ne.s32.totalorder %s120, %s121
      %p133 = scmp.eq.s32.totalorder %s22, 1
      %p134 = por %p132, %p133
      %p136 = scmp.ne.s32.totalorder %s121, %s135
      %p137 = scmp.eq.s32.totalorder %s22, 0
      %p138 = por %p136, %p137
      %s140 = sadd.s32 %s139, 1
      %p143 = scmp.eq.s32.totalorder %s16, 1
      %p144 = scmp.ne.s32.totalorder %s139, %s141
      %p145 = scmp.eq.s32.totalorder %s16, 0
      %p146 = por %p144, %p145
      %p147 = scmp.ne.s32.totalorder %s139, %s141
      %p148 = scmp.eq.s32.totalorder %s21, 1
      %p149 = por %p147, %p148
      %p150 = scmp.ne.s32.totalorder %s141, %s142
      %p151 = scmp.eq.s32.totalorder %s21, 0
      %p152 = por %p150, %p151
      %p153 = scmp.ne.s32.totalorder %s141, %s142
      %p154 = scmp.eq.s32.totalorder %s22, 1
      %p155 = por %p153, %p154
      %p157 = scmp.ne.s32.totalorder %s142, %s156
      %p158 = scmp.eq.s32.totalorder %s22, 0
      %p159 = por %p157, %p158
      %s161 = sadd.s32 %s160, 1
      %p164 = scmp.eq.s32.totalorder %s16, 1
      %p165 = scmp.ne.s32.totalorder %s160, %s162
      %p166 = scmp.eq.s32.totalorder %s16, 0
      %p167 = por %p165, %p166
      %p168 = scmp.ne.s32.totalorder %s160, %s162
      %p169 = scmp.eq.s32.totalorder %s21, 1
      %p170 = por %p168, %p169
      %p171 = scmp.ne.s32.totalorder %s162, %s163
      %p172 = scmp.eq.s32.totalorder %s21, 0
      %p173 = por %p171, %p172
      %p174 = scmp.ne.s32.totalorder %s162, %s163
      %p175 = scmp.eq.s32.totalorder %s22, 1
      %p176 = por %p174, %p175
      %p178 = scmp.ne.s32.totalorder %s163, %s177
      %p179 = scmp.eq.s32.totalorder %s22, 0
      %p180 = por %p178, %p179
      %s182 = sadd.s32 %s181, 1
      %p185 = scmp.eq.s32.totalorder %s16, 1
      %p186 = scmp.ne.s32.totalorder %s181, %s183
      %p187 = scmp.eq.s32.totalorder %s16, 0
      %p188 = por %p186, %p187
      %p189 = scmp.ne.s32.totalorder %s181, %s183
      %p190 = scmp.eq.s32.totalorder %s21, 1
      %p191 = por %p189, %p190
      %p192 = scmp.ne.s32.totalorder %s183, %s184
      %p193 = scmp.eq.s32.totalorder %s21, 0
      %p194 = por %p192, %p193
      %p195 = scmp.ne.s32.totalorder %s183, %s184
      %p196 = scmp.eq.s32.totalorder %s22, 1
      %p197 = por %p195, %p196
      %p199 = scmp.ne.s32.totalorder %s184, %s198
      %p200 = scmp.eq.s32.totalorder %s22, 0
      %p201 = por %p199, %p200
      %s203 = sadd.s32 %s202, 1
      %p206 = scmp.eq.s32.totalorder %s16, 1
      %p207 = scmp.ne.s32.totalorder %s202, %s204
      %p208 = scmp.eq.s32.totalorder %s16, 0
      %p209 = por %p207, %p208
      %p210 = scmp.ne.s32.totalorder %s202, %s204
      %p211 = scmp.eq.s32.totalorder %s21, 1
      %p212 = por %p210, %p211
      %p213 = scmp.ne.s32.totalorder %s204, %s205
      %p214 = scmp.eq.s32.totalorder %s21, 0
      %p215 = por %p213, %p214
      %p216 = scmp.ne.s32.totalorder %s204, %s205
      %p217 = scmp.eq.s32.totalorder %s22, 1
      %p218 = por %p216, %p217
      %p220 = scmp.ne.s32.totalorder %s205, %s219
      %p221 = scmp.eq.s32.totalorder %s22, 0
      %p222 = por %p220, %p221
      %s223 = ssub.s32 %s16, %s23
      %p224 = scmp.eq.s32.totalorder %s223, 0
      %s226 = sadd.s32 %s225, 1
      %s227 = scalar_select %p224, %s225, %s226
      %p230 = pneg %p224
      %p231 = scmp.eq.s32.totalorder %s16, 1
      %p232 = por %p230, %p231
      %p233 = scmp.ne.s32.totalorder %s225, %s228
      %p234 = scmp.eq.s32.totalorder %s16, 0
      %p235 = por %p233, %p234
      %p236 = scmp.ne.s32.totalorder %s225, %s228
      %p237 = scmp.eq.s32.totalorder %s21, 1
      %p238 = por %p236, %p237
      %p239 = scmp.ne.s32.totalorder %s228, %s229
      %p240 = scmp.eq.s32.totalorder %s21, 0
      %p241 = por %p239, %p240
      %p242 = scmp.ne.s32.totalorder %s228, %s229
      %p243 = scmp.eq.s32.totalorder %s22, 1
      %p244 = por %p242, %p243
      %p246 = scmp.ne.s32.totalorder %s229, %s245
      %p247 = scmp.eq.s32.totalorder %s22, 0
      %p248 = por %p246, %p247
      %p249 = scmp.le.s32.totalorder 1, %s16
      %p250 = scmp.lt.s32.totalorder %s16, 3
      %p251 = pnand %p249, %p250
      %p252 = pneg %p251
      // Predicated region
      $region9: #{qnetwork_forward.1} parent=5 // pred_check
        _
      $region10: #{qnetwork_forward.1} parent=5 // pred_check_branch
        %254 = sbr.rel (%p251) target = $region12
      $region11: #{qnetwork_forward.1} parent=5 // pred_region
        %s255 = ssub.s32 %s16, 1
        // Predicated region
        $region13: #{qnetwork_forward.1} parent=11 // pred_check
          %p256 = pneg %p37
        $region14: #{qnetwork_forward.1} parent=11 // pred_check_branch
          %258 = sbr.rel (%p256) target = $region16
        $region15: #{qnetwork_forward.1} parent=11 // pred_region
          %s260 = ssub.s32 16, 16
          %261 = vsyncadd [#allocation3], %s260
          %s263 = sshll.u32 %s0, 4
          %s264 = int_to_ptr.vmem [resolvable:$true] %s263
          %266 = dma.vmem_to_smem %s264, 16, [#allocation2], [#allocation3]
        $region16: #{qnetwork_forward.1} parent=11 // pred_fallthru
          _
        // Predicated region
        $region17: #{qnetwork_forward.1} parent=11 // pred_check
          %p267 = pneg %p110
        $region18: #{qnetwork_forward.1} parent=11 // pred_check_branch
          %269 = sbr.rel (%p267) target = $region20
        $region19: #{qnetwork_forward.1} parent=11 // pred_region
          _
        $region20: #{qnetwork_forward.1} parent=11 // pred_fallthru
          _
        // Predicated region
        $region21: #{qnetwork_forward.1} parent=11 // pred_check
          %p270 = pneg %p131
        $region22: #{qnetwork_forward.1} parent=11 // pred_check_branch
          %272 = sbr.rel (%p270) target = $region24
        $region23: #{qnetwork_forward.1} parent=11 // pred_region
          _
        $region24: #{qnetwork_forward.1} parent=11 // pred_fallthru
          _
        // Predicated region
        $region25: #{qnetwork_forward.1} parent=11 // pred_check
          %p273 = pneg %p152
        $region26: #{qnetwork_forward.1} parent=11 // pred_check_branch
          %275 = sbr.rel (%p273) target = $region28
        $region27: #{qnetwork_forward.1} parent=11 // pred_region
          _
        $region28: #{qnetwork_forward.1} parent=11 // pred_fallthru
          _
        // Predicated region
        $region29: #{qnetwork_forward.1} parent=11 // pred_check
          %p276 = pneg %p173
        $region30: #{qnetwork_forward.1} parent=11 // pred_check_branch
          %278 = sbr.rel (%p276) target = $region32
        $region31: #{qnetwork_forward.1} parent=11 // pred_region
          _
        $region32: #{qnetwork_forward.1} parent=11 // pred_fallthru
          _
        // Predicated region
        $region33: #{qnetwork_forward.1} parent=11 // pred_check
          %p279 = pneg %p194
        $region34: #{qnetwork_forward.1} parent=11 // pred_check_branch
          %281 = sbr.rel (%p279) target = $region36
        $region35: #{qnetwork_forward.1} parent=11 // pred_region
          _
        $region36: #{qnetwork_forward.1} parent=11 // pred_fallthru
          _
        // Predicated region
        $region37: #{qnetwork_forward.1} parent=11 // pred_check
          %p282 = pneg %p215
        $region38: #{qnetwork_forward.1} parent=11 // pred_check_branch
          %284 = sbr.rel (%p282) target = $region40
        $region39: #{qnetwork_forward.1} parent=11 // pred_region
          _
        $region40: #{qnetwork_forward.1} parent=11 // pred_fallthru
          _
      $region12: #{qnetwork_forward.1} parent=5 // pred_fallthru
        _
      %p285 = scmp.lt.s32.totalorder %s16, 2
      // Predicated region
      $region41: #{qnetwork_forward.1} parent=5 // pred_check
        %p286 = pneg %p285
      $region42: #{qnetwork_forward.1} parent=5 // pred_check_branch
        %288 = sbr.rel (%p286) target = $region44
      $region43: #{qnetwork_forward.1} parent=5 // pred_region
        // Predicated region
        $region45: #{qnetwork_forward.1} parent=43 // pred_check
          %p289 = pneg %p57
        $region46: #{qnetwork_forward.1} parent=43 // pred_check_branch
          %291 = sbr.rel (%p289) target = $region48
        $region47: #{qnetwork_forward.1} parent=43 // pred_region
          %s292 = sand.u32 %s47, 1
          %s293 = sand.u32 %s47, 1
          %s294 = smul.addr %s293, 8
          %s295 = scalar_lea.vmem [#allocation4], %s294
          %s296 = smul.addr %s16, 4
          %s297 = scalar_lea.vmem %s1, %s296
          // Predicated region
          $region49: #{qnetwork_forward.1} parent=47 // pred_check
            _
          $region50: #{qnetwork_forward.1} parent=47 // pred_check_branch
            %299 = sbr.rel (0) target = $region52
          $region51: #{qnetwork_forward.1} parent=47 // pred_region
            // Predicated region
            $region53: #{qnetwork_forward.1} parent=51 // pred_check
              _
            $region54: #{qnetwork_forward.1} parent=51 // pred_check_branch
              %301 = sbr.rel target = $region56
            $region55: #{qnetwork_forward.1} parent=51 // pred_region
              // Predicated region
              $region68: #{qnetwork_forward.1} parent=55 // pred_check
                _
              $region69: #{qnetwork_forward.1} parent=55 // pred_check_branch
                %318 = sbr.rel (0) target = $region71
              $region70: #{qnetwork_forward.1} parent=55 // pred_region
                loop: start=0, step=1, limit=1
                $region72: #{qnetwork_forward.1} parent=70 // loop_pre_header
                  _
                $region73: #{qnetwork_forward.1} parent=70 // loop_header
                  %s320 = sphi 0, %s324
                  %p321 = scmp.ge.s32.totalorder %s320, 1
                  %s325 = sphi %s297, %s297
                  %s326 = sphi %s295, %s295
                $region74: #{qnetwork_forward.1} parent=70 // loop_header_branch
                  %323 = sbr.rel (%p321) target = $region78
                $region75: #{qnetwork_forward.1} parent=70 // loop_body
                  _
                $region76: #{qnetwork_forward.1} parent=70 // loop_footer
                  %s324 = sadd.s32 1, %s320
                $region77: #{qnetwork_forward.1} parent=70 // loop_footer_branch
                  %319 = sbr.rel target = $region73
                $region78: #{qnetwork_forward.1} parent=70 // loop_exit
                  _
                loop: start=0, step=1, limit=1
                $region79: #{qnetwork_forward.1} parent=70 // loop_pre_header
                  _
                $region80: #{qnetwork_forward.1} parent=70 // loop_header
                  %s329 = sphi 0, %s333
                  %p330 = scmp.ge.s32.totalorder %s329, 1
                  %s334 = sphi %s297, %s297
                  %s335 = sphi %s295, %s295
                $region81: #{qnetwork_forward.1} parent=70 // loop_header_branch
                  %332 = sbr.rel (%p330) target = $region85
                $region82: #{qnetwork_forward.1} parent=70 // loop_body
                  %v336 = vld [vmem:[%s334] sm:$0xf]
                  %337 = vst [vmem:[%s335] sm:$0xf] %v336
                  %v338 = vld [vmem:[%s334 + $0x8] sm:$0xf]
                  %339 = vst [vmem:[%s335 + $0x4] sm:$0xf] %v338
                $region83: #{qnetwork_forward.1} parent=70 // loop_footer
                  %s333 = sadd.s32 1, %s329
                $region84: #{qnetwork_forward.1} parent=70 // loop_footer_branch
                  %328 = sbr.rel target = $region80
                $region85: #{qnetwork_forward.1} parent=70 // loop_exit
                  _
              $region71: #{qnetwork_forward.1} parent=55 // pred_fallthru
                _
            $region56: #{qnetwork_forward.1} parent=51 // pred_fallthru
              _
            // Predicated region
            $region57: #{qnetwork_forward.1} parent=51 // pred_check
              _
            $region58: #{qnetwork_forward.1} parent=51 // pred_check_branch
              %303 = sbr.rel (0) target = $region60
            $region59: #{qnetwork_forward.1} parent=51 // pred_region
              loop: start=0, step=1, limit=1
              $region61: #{qnetwork_forward.1} parent=59 // loop_pre_header
                _
              $region62: #{qnetwork_forward.1} parent=59 // loop_header
                %s306 = sphi 0, %s310
                %p307 = scmp.ge.s32.totalorder %s306, 1
                %s311 = sphi %s297, %s297
                %s312 = sphi %s295, %s295
              $region63: #{qnetwork_forward.1} parent=59 // loop_header_branch
                %309 = sbr.rel (%p307) target = $region67
              $region64: #{qnetwork_forward.1} parent=59 // loop_body
                %v313 = vld [vmem:[%s311] sm:$0xf]
                %314 = vst [vmem:[%s312] sm:$0xf] %v313
                %v315 = vld [vmem:[%s311 + $0x8] sm:$0xf]
                %316 = vst [vmem:[%s312 + $0x4] sm:$0xf] %v315
              $region65: #{qnetwork_forward.1} parent=59 // loop_footer
                %s310 = sadd.s32 1, %s306
              $region66: #{qnetwork_forward.1} parent=59 // loop_footer_branch
                %305 = sbr.rel target = $region62
              $region67: #{qnetwork_forward.1} parent=59 // loop_exit
                _
            $region60: #{qnetwork_forward.1} parent=51 // pred_fallthru
              _
          $region52: #{qnetwork_forward.1} parent=47 // pred_fallthru
            _
          %340 = vnop
        $region48: #{qnetwork_forward.1} parent=43 // pred_fallthru
          _
        // Predicated region
        $region86: #{qnetwork_forward.1} parent=43 // pred_check
          %p341 = pneg %p83
        $region87: #{qnetwork_forward.1} parent=43 // pred_check_branch
          %343 = sbr.rel (%p341) target = $region89
        $region88: #{qnetwork_forward.1} parent=43 // pred_region
          %p344 = scmp.lt.s32.totalorder %s16, 1
          %s345 = scalar_select %p344, %s16, 1
          %s346 = smul.addr %s345, 4
          %s347 = scalar_lea.vmem %s2, %s346
        $region89: #{qnetwork_forward.1} parent=43 // pred_fallthru
          _
      $region44: #{qnetwork_forward.1} parent=5 // pred_fallthru
        _
      %p348 = scmp.le.s32.totalorder 1, %s16
      %p349 = scmp.lt.s32.totalorder %s16, 3
      %p350 = pnand %p348, %p349
      %p351 = pneg %p350
      // Predicated region
      $region90: #{qnetwork_forward.1} parent=5 // pred_check
        _
      $region91: #{qnetwork_forward.1} parent=5 // pred_check_branch
        %353 = sbr.rel (%p350) target = $region93
      $region92: #{qnetwork_forward.1} parent=5 // pred_region
        %s354 = ssub.s32 %s16, 1
        // Predicated region
        $region94: #{qnetwork_forward.1} parent=92 // pred_check
          %p355 = pneg %p37
        $region95: #{qnetwork_forward.1} parent=92 // pred_check_branch
          %357 = sbr.rel (%p355) target = $region97
        $region96: #{qnetwork_forward.1} parent=92 // pred_region
          %358 = dma.done [#allocation3], 16
        $region97: #{qnetwork_forward.1} parent=92 // pred_fallthru
          _
        %s359 = sand.u32 %s50, 1
        %s360 = sand.u32 %s50, 1
        %s361 = smul.addr %s360, 8
        %s362 = scalar_lea.vmem [#allocation4], %s361
        // Predicated region
        $region98: #{qnetwork_forward.1} parent=92 // pred_check
          %p363 = pneg %p63
        $region99: #{qnetwork_forward.1} parent=92 // pred_check_branch
          %365 = sbr.rel (%p363) target = $region101
        $region100: #{qnetwork_forward.1} parent=92 // pred_region
          _
        $region101: #{qnetwork_forward.1} parent=92 // pred_fallthru
          _
        %366 = sfence
        %p367 = pneg %p37
        %p368 = pneg %p34
        %s369 = sand.u32 %s50, 1
        %s370 = sand.u32 %s50, 1
        %s371 = smul.addr %s370, 8
        %s372 = scalar_lea.vmem [#allocation4], %s371
        %p373 = pneg %p63
        %p374 = pneg %p60
        %p375 = scmp.lt.s32.totalorder %s21, 1
        %s376 = scalar_select %p375, %s21, 1
        %s377 = smul.addr %s376, 4
        %s378 = scalar_lea.vmem %s2, %s377
        %p379 = pneg %p89
        %p380 = pneg %p86
        %p381 = pneg %p110
        %p382 = pneg %p107
        %p383 = pneg %p131
        %p384 = pneg %p128
        %p385 = pneg %p152
        %p386 = pneg %p149
        %p387 = pneg %p173
        %p388 = pneg %p170
        %p389 = pneg %p194
        %p390 = pneg %p191
        %p391 = pneg %p215
        %p392 = pneg %p212
        %p393 = pneg %p241
        %p394 = pneg %p238
        %p395 = scmp.lt.s32.totalorder %s21, 1
        %s396 = scalar_select %p395, %s21, 1
        %s397 = scalar_lea.vmem %s9, %s396
        %p398 = scmp.lt.s32.totalorder %s21, 1
        %s399 = scalar_select %p398, %s21, 1
        %s400 = smul.addr %s399, 4
        %s401 = scalar_lea.vmem %s2, %s400
        %p402 = scmp.lt.s32.totalorder %s21, 1
        %s403 = scalar_select %p402, %s21, 1
        %s404 = scalar_lea.vmem %s9, %s403
        %v406 = vld [vmem:[%s3] sm:$0xf]
        %v407 = vld [vmem:[%s3 + $0x4] sm:$0xf]
        %v408 = vld [vmem:[%s3 + $0x8] sm:$0xf]
        %v409 = vld [vmem:[%s3 + $0xc] sm:$0xf]
        %v410 = vld [vmem:[%s3 + $0x10] sm:$0xf]
        %v411 = vld [vmem:[%s3 + $0x14] sm:$0xf]
        %v412 = vld [vmem:[%s3 + $0x18] sm:$0xf]
        %v413 = vld [vmem:[%s3 + $0x1c] sm:$0xf]
        %v414 = vld [vmem:[%s3 + $0x20] sm:$0xf]
        %v415 = vld [vmem:[%s3 + $0x24] sm:$0xf]
        %v416 = vld [vmem:[%s3 + $0x28] sm:$0xf]
        %v417 = vld [vmem:[%s3 + $0x2c] sm:$0xf]
        %v418 = vld [vmem:[%s3 + $0x30] sm:$0xf]
        %v419 = vld [vmem:[%s3 + $0x34] sm:$0xf]
        %v420 = vld [vmem:[%s3 + $0x38] sm:$0xf]
        %v421 = vld [vmem:[%s3 + $0x3c] sm:$0xf]
        %v422 = vld [vmem:[%s3 + $0x40] sm:$0xf]
        %v423 = vld [vmem:[%s3 + $0x44] sm:$0xf]
        %v424 = vld [vmem:[%s3 + $0x48] sm:$0xf]
        %v425 = vld [vmem:[%s3 + $0x4c] sm:$0xf]
        %v426 = vld [vmem:[%s3 + $0x50] sm:$0xf]
        %v427 = vld [vmem:[%s3 + $0x54] sm:$0xf]
        %v428 = vld [vmem:[%s3 + $0x58] sm:$0xf]
        %v429 = vld [vmem:[%s3 + $0x5c] sm:$0xf]
        %v430 = vld [vmem:[%s3 + $0x60] sm:$0xf]
        %v431 = vld [vmem:[%s3 + $0x64] sm:$0xf]
        %v432 = vld [vmem:[%s3 + $0x68] sm:$0xf]
        %v433 = vld [vmem:[%s3 + $0x6c] sm:$0xf]
        %v434 = vld [vmem:[%s3 + $0x70] sm:$0xf]
        %v435 = vld [vmem:[%s3 + $0x74] sm:$0xf]
        %v436 = vld [vmem:[%s3 + $0x78] sm:$0xf]
        %v437 = vld [vmem:[%s3 + $0x7c] sm:$0xf]
        %v438 = vld [vmem:[%s3 + $0x80] sm:$0xf]
        %v439 = vld [vmem:[%s3 + $0x84] sm:$0xf]
        %v440 = vld [vmem:[%s3 + $0x88] sm:$0xf]
        %v441 = vld [vmem:[%s3 + $0x8c] sm:$0xf]
        %v442 = vld [vmem:[%s3 + $0x90] sm:$0xf]
        %v443 = vld [vmem:[%s3 + $0x94] sm:$0xf]
        %v444 = vld [vmem:[%s3 + $0x98] sm:$0xf]
        %v445 = vld [vmem:[%s3 + $0x9c] sm:$0xf]
        %v446 = vld [vmem:[%s3 + $0xa0] sm:$0xf]
        %v447 = vld [vmem:[%s3 + $0xa4] sm:$0xf]
        %v448 = vld [vmem:[%s3 + $0xa8] sm:$0xf]
        %v449 = vld [vmem:[%s3 + $0xac] sm:$0xf]
        %v450 = vld [vmem:[%s3 + $0xb0] sm:$0xf]
        %v451 = vld [vmem:[%s3 + $0xb4] sm:$0xf]
        %v452 = vld [vmem:[%s3 + $0xb8] sm:$0xf]
        %v453 = vld [vmem:[%s3 + $0xbc] sm:$0xf]
        %v454 = vld [vmem:[%s3 + $0xc0] sm:$0xf]
        %v455 = vld [vmem:[%s3 + $0xc4] sm:$0xf]
        %v456 = vld [vmem:[%s362] sm:$0xf]
        %v457 = vld [vmem:[%s362 + $0x4] sm:$0xf]
        %v458 = vld [vmem:[%s4] sm:$0xff]
        %v459 = vld [vmem:[%s4 + $0x8] sm:$0xff]
        %v460 = vld [vmem:[%s4 + $0x10] sm:$0xff]
        %v461 = vld [vmem:[%s4 + $0x18] sm:$0xff]
        %v462 = vld [vmem:[%s4 + $0x20] sm:$0xff]
        %v463 = vld [vmem:[%s4 + $0x28] sm:$0xff]
        %v464 = vld [vmem:[%s4 + $0x30] sm:$0xff]
        %v465 = vld [vmem:[%s4 + $0x38] sm:$0xff]
        %v466 = vld [vmem:[%s4 + $0x40] sm:$0xff]
        %v467 = vld [vmem:[%s4 + $0x48] sm:$0xff]
        %v468 = vld [vmem:[%s4 + $0x50] sm:$0xff]
        %v469 = vld [vmem:[%s4 + $0x58] sm:$0xff]
        %v470 = vld [vmem:[%s4 + $0x60] sm:$0xff]
        %v471 = vld [vmem:[%s4 + $0x68] sm:$0xff]
        %v472 = vld [vmem:[%s4 + $0x70] sm:$0xff]
        %v473 = vld [vmem:[%s4 + $0x78] sm:$0xff]
        %v474 = vld [vmem:[%s4 + $0x80] sm:$0xff]
        %v475 = vld [vmem:[%s4 + $0x88] sm:$0xff]
        %v476 = vld [vmem:[%s4 + $0x90] sm:$0xff]
        %v477 = vld [vmem:[%s4 + $0x98] sm:$0xff]
        %v478 = vld [vmem:[%s4 + $0xa0] sm:$0xff]
        %v479 = vld [vmem:[%s4 + $0xa8] sm:$0xff]
        %v480 = vld [vmem:[%s4 + $0xb0] sm:$0xff]
        %v481 = vld [vmem:[%s4 + $0xb8] sm:$0xff]
        %v482 = vld [vmem:[%s4 + $0xc0] sm:$0xff]
        %v483 = vld [vmem:[%s4 + $0xc8] sm:$0xff]
        %v484 = vld [vmem:[%s4 + $0xd0] sm:$0xff]
        %v485 = vld [vmem:[%s4 + $0xd8] sm:$0xff]
        %v486 = vld [vmem:[%s4 + $0xe0] sm:$0xff]
        %v487 = vld [vmem:[%s4 + $0xe8] sm:$0xff]
        %v488 = vld [vmem:[%s4 + $0xf0] sm:$0xff]
        %v489 = vld [vmem:[%s4 + $0xf8] sm:$0xff]
        %v490 = vld [vmem:[%s4 + $0x100] sm:$0xff]
        %v491 = vld [vmem:[%s4 + $0x108] sm:$0xff]
        %v492 = vld [vmem:[%s4 + $0x110] sm:$0xff]
        %v493 = vld [vmem:[%s4 + $0x118] sm:$0xff]
        %v494 = vld [vmem:[%s4 + $0x120] sm:$0xff]
        %v495 = vld [vmem:[%s4 + $0x128] sm:$0xff]
        %v496 = vld [vmem:[%s4 + $0x130] sm:$0xff]
        %v497 = vld [vmem:[%s4 + $0x138] sm:$0xff]
        %v498 = vld [vmem:[%s4 + $0x140] sm:$0xff]
        %v499 = vld [vmem:[%s4 + $0x148] sm:$0xff]
        %v500 = vld [vmem:[%s4 + $0x150] sm:$0xff]
        %v501 = vld [vmem:[%s4 + $0x158] sm:$0xff]
        %v502 = vld [vmem:[%s4 + $0x160] sm:$0xff]
        %v503 = vld [vmem:[%s4 + $0x168] sm:$0xff]
        %v504 = vld [vmem:[%s4 + $0x170] sm:$0xff]
        %v505 = vld [vmem:[%s4 + $0x178] sm:$0xff]
        %v506 = vld [vmem:[%s4 + $0x180] sm:$0xff]
        %v507 = vld [vmem:[%s4 + $0x188] sm:$0xff]
        %509 = vset.pattern.permute.xlu0 0
        %510 = vperm.xlu0 %509, %v458
        %v511 = vpop.permute.xlu0 %510
        %514 = vset.pattern.permute.xlu0 0
        %515 = vperm.xlu0 %514, %v459
        %v516 = vpop.permute.xlu0 %515
        %519 = vset.pattern.permute.xlu0 0
        %520 = vperm.xlu0 %519, %v460
        %v521 = vpop.permute.xlu0 %520
        %524 = vset.pattern.permute.xlu0 0
        %525 = vperm.xlu0 %524, %v461
        %v526 = vpop.permute.xlu0 %525
        %529 = vset.pattern.permute.xlu0 0
        %530 = vperm.xlu0 %529, %v462
        %v531 = vpop.permute.xlu0 %530
        %534 = vset.pattern.permute.xlu0 0
        %535 = vperm.xlu0 %534, %v463
        %v536 = vpop.permute.xlu0 %535
        %539 = vset.pattern.permute.xlu0 0
        %540 = vperm.xlu0 %539, %v464
        %v541 = vpop.permute.xlu0 %540
        %544 = vset.pattern.permute.xlu0 0
        %545 = vperm.xlu0 %544, %v465
        %v546 = vpop.permute.xlu0 %545
        %549 = vset.pattern.permute.xlu0 0
        %550 = vperm.xlu0 %549, %v466
        %v551 = vpop.permute.xlu0 %550
        %554 = vset.pattern.permute.xlu0 0
        %555 = vperm.xlu0 %554, %v467
        %v556 = vpop.permute.xlu0 %555
        %559 = vset.pattern.permute.xlu0 0
        %560 = vperm.xlu0 %559, %v468
        %v561 = vpop.permute.xlu0 %560
        %564 = vset.pattern.permute.xlu0 0
        %565 = vperm.xlu0 %564, %v469
        %v566 = vpop.permute.xlu0 %565
        %569 = vset.pattern.permute.xlu0 0
        %570 = vperm.xlu0 %569, %v470
        %v571 = vpop.permute.xlu0 %570
        %574 = vset.pattern.permute.xlu0 0
        %575 = vperm.xlu0 %574, %v471
        %v576 = vpop.permute.xlu0 %575
        %579 = vset.pattern.permute.xlu0 0
        %580 = vperm.xlu0 %579, %v472
        %v581 = vpop.permute.xlu0 %580
        %584 = vset.pattern.permute.xlu0 0
        %585 = vperm.xlu0 %584, %v473
        %v586 = vpop.permute.xlu0 %585
        %589 = vset.pattern.permute.xlu0 0
        %590 = vperm.xlu0 %589, %v474
        %v591 = vpop.permute.xlu0 %590
        %594 = vset.pattern.permute.xlu0 0
        %595 = vperm.xlu0 %594, %v475
        %v596 = vpop.permute.xlu0 %595
        %599 = vset.pattern.permute.xlu0 0
        %600 = vperm.xlu0 %599, %v476
        %v601 = vpop.permute.xlu0 %600
        %604 = vset.pattern.permute.xlu0 0
        %605 = vperm.xlu0 %604, %v477
        %v606 = vpop.permute.xlu0 %605
        %609 = vset.pattern.permute.xlu0 0
        %610 = vperm.xlu0 %609, %v478
        %v611 = vpop.permute.xlu0 %610
        %614 = vset.pattern.permute.xlu0 0
        %615 = vperm.xlu0 %614, %v479
        %v616 = vpop.permute.xlu0 %615
        %619 = vset.pattern.permute.xlu0 0
        %620 = vperm.xlu0 %619, %v480
        %v621 = vpop.permute.xlu0 %620
        %624 = vset.pattern.permute.xlu0 0
        %625 = vperm.xlu0 %624, %v481
        %v626 = vpop.permute.xlu0 %625
        %629 = vset.pattern.permute.xlu0 0
        %630 = vperm.xlu0 %629, %v482
        %v631 = vpop.permute.xlu0 %630
        %634 = vset.pattern.permute.xlu0 0
        %635 = vperm.xlu0 %634, %v483
        %v636 = vpop.permute.xlu0 %635
        %639 = vset.pattern.permute.xlu0 0
        %640 = vperm.xlu0 %639, %v484
        %v641 = vpop.permute.xlu0 %640
        %644 = vset.pattern.permute.xlu0 0
        %645 = vperm.xlu0 %644, %v485
        %v646 = vpop.permute.xlu0 %645
        %649 = vset.pattern.permute.xlu0 0
        %650 = vperm.xlu0 %649, %v486
        %v651 = vpop.permute.xlu0 %650
        %654 = vset.pattern.permute.xlu0 0
        %655 = vperm.xlu0 %654, %v487
        %v656 = vpop.permute.xlu0 %655
        %659 = vset.pattern.permute.xlu0 0
        %660 = vperm.xlu0 %659, %v488
        %v661 = vpop.permute.xlu0 %660
        %664 = vset.pattern.permute.xlu0 0
        %665 = vperm.xlu0 %664, %v489
        %v666 = vpop.permute.xlu0 %665
        %669 = vset.pattern.permute.xlu0 0
        %670 = vperm.xlu0 %669, %v490
        %v671 = vpop.permute.xlu0 %670
        %674 = vset.pattern.permute.xlu0 0
        %675 = vperm.xlu0 %674, %v491
        %v676 = vpop.permute.xlu0 %675
        %679 = vset.pattern.permute.xlu0 0
        %680 = vperm.xlu0 %679, %v492
        %v681 = vpop.permute.xlu0 %680
        %684 = vset.pattern.permute.xlu0 0
        %685 = vperm.xlu0 %684, %v493
        %v686 = vpop.permute.xlu0 %685
        %689 = vset.pattern.permute.xlu0 0
        %690 = vperm.xlu0 %689, %v494
        %v691 = vpop.permute.xlu0 %690
        %694 = vset.pattern.permute.xlu0 0
        %695 = vperm.xlu0 %694, %v495
        %v696 = vpop.permute.xlu0 %695
        %699 = vset.pattern.permute.xlu0 0
        %700 = vperm.xlu0 %699, %v496
        %v701 = vpop.permute.xlu0 %700
        %704 = vset.pattern.permute.xlu0 0
        %705 = vperm.xlu0 %704, %v497
        %v706 = vpop.permute.xlu0 %705
        %709 = vset.pattern.permute.xlu0 0
        %710 = vperm.xlu0 %709, %v498
        %v711 = vpop.permute.xlu0 %710
        %714 = vset.pattern.permute.xlu0 0
        %715 = vperm.xlu0 %714, %v499
        %v716 = vpop.permute.xlu0 %715
        %719 = vset.pattern.permute.xlu0 0
        %720 = vperm.xlu0 %719, %v500
        %v721 = vpop.permute.xlu0 %720
        %724 = vset.pattern.permute.xlu0 0
        %725 = vperm.xlu0 %724, %v501
        %v726 = vpop.permute.xlu0 %725
        %729 = vset.pattern.permute.xlu0 0
        %730 = vperm.xlu0 %729, %v502
        %v731 = vpop.permute.xlu0 %730
        %734 = vset.pattern.permute.xlu0 0
        %735 = vperm.xlu0 %734, %v503
        %v736 = vpop.permute.xlu0 %735
        %739 = vset.pattern.permute.xlu0 0
        %740 = vperm.xlu0 %739, %v504
        %v741 = vpop.permute.xlu0 %740
        %744 = vset.pattern.permute.xlu0 0
        %745 = vperm.xlu0 %744, %v505
        %v746 = vpop.permute.xlu0 %745
        %749 = vset.pattern.permute.xlu0 0
        %750 = vperm.xlu0 %749, %v506
        %v751 = vpop.permute.xlu0 %750
        %754 = vset.pattern.permute.xlu0 0
        %755 = vperm.xlu0 %754, %v507
        %v756 = vpop.permute.xlu0 %755
        %v808 = vunpack.c.l.b16 %v406
        %v809 = vunpack.c.l.b16 %v407
        %v810 = vunpack.c.l.b16 %v408
        %v811 = vunpack.c.l.b16 %v409
        %v812 = vunpack.c.l.b16 %v410
        %v813 = vunpack.c.l.b16 %v411
        %v814 = vunpack.c.l.b16 %v412
        %v815 = vunpack.c.l.b16 %v413
        %v816 = vunpack.c.l.b16 %v414
        %v817 = vunpack.c.l.b16 %v415
        %v818 = vunpack.c.l.b16 %v416
        %v819 = vunpack.c.l.b16 %v417
        %v820 = vunpack.c.l.b16 %v418
        %v821 = vunpack.c.l.b16 %v419
        %v822 = vunpack.c.l.b16 %v420
        %v823 = vunpack.c.l.b16 %v421
        %v824 = vunpack.c.l.b16 %v422
        %v825 = vunpack.c.l.b16 %v423
        %v826 = vunpack.c.l.b16 %v424
        %v827 = vunpack.c.l.b16 %v425
        %v828 = vunpack.c.l.b16 %v426
        %v829 = vunpack.c.l.b16 %v427
        %v830 = vunpack.c.l.b16 %v428
        %v831 = vunpack.c.l.b16 %v429
        %v832 = vunpack.c.l.b16 %v430
        %v833 = vunpack.c.l.b16 %v431
        %v834 = vunpack.c.l.b16 %v432
        %v835 = vunpack.c.l.b16 %v433
        %v836 = vunpack.c.l.b16 %v434
        %v837 = vunpack.c.l.b16 %v435
        %v838 = vunpack.c.l.b16 %v436
        %v839 = vunpack.c.l.b16 %v437
        %v840 = vunpack.c.l.b16 %v438
        %v841 = vunpack.c.l.b16 %v439
        %v842 = vunpack.c.l.b16 %v440
        %v843 = vunpack.c.l.b16 %v441
        %v844 = vunpack.c.l.b16 %v442
        %v845 = vunpack.c.l.b16 %v443
        %v846 = vunpack.c.l.b16 %v444
        %v847 = vunpack.c.l.b16 %v445
        %v848 = vunpack.c.l.b16 %v446
        %v849 = vunpack.c.l.b16 %v447
        %v850 = vunpack.c.l.b16 %v448
        %v851 = vunpack.c.l.b16 %v449
        %v852 = vunpack.c.l.b16 %v450
        %v853 = vunpack.c.l.b16 %v451
        %v854 = vunpack.c.l.b16 %v452
        %v855 = vunpack.c.l.b16 %v453
        %v856 = vunpack.c.l.b16 %v454
        %v857 = vunpack.c.l.b16 %v455
        %v858 = vpack.c.b16 %v809, %v808
        %v859 = vpack.c.b16 %v811, %v810
        %v860 = vpack.c.b16 %v813, %v812
        %v861 = vpack.c.b16 %v815, %v814
        %v862 = vpack.c.b16 %v817, %v816
        %v863 = vpack.c.b16 %v819, %v818
        %v864 = vpack.c.b16 %v821, %v820
        %v865 = vpack.c.b16 %v823, %v822
        %v866 = vpack.c.b16 %v825, %v824
        %v867 = vpack.c.b16 %v827, %v826
        %v868 = vpack.c.b16 %v829, %v828
        %v869 = vpack.c.b16 %v831, %v830
        %v870 = vpack.c.b16 %v833, %v832
        %v871 = vpack.c.b16 %v835, %v834
        %v872 = vpack.c.b16 %v837, %v836
        %v873 = vpack.c.b16 %v839, %v838
        %v874 = vpack.c.b16 %v841, %v840
        %v875 = vpack.c.b16 %v843, %v842
        %v876 = vpack.c.b16 %v845, %v844
        %v877 = vpack.c.b16 %v847, %v846
        %v878 = vpack.c.b16 %v849, %v848
        %v879 = vpack.c.b16 %v851, %v850
        %v880 = vpack.c.b16 %v853, %v852
        %v881 = vpack.c.b16 %v855, %v854
        %v882 = vpack.c.b16 %v857, %v856
        %v885 = vunpack.c.l.b16 %v456
        %v886 = vunpack.c.l.b16 %v457
        %v887 = vpack.c.b16 %v886, %v885
        %vm889 = vcmask 130048
        %v891 = vsel %vm889, %v858, 0
        %v894 = vsel %vm889, %v859, 0
        %v897 = vsel %vm889, %v860, 0
        %v900 = vsel %vm889, %v861, 0
        %v903 = vsel %vm889, %v862, 0
        %v906 = vsel %vm889, %v863, 0
        %v909 = vsel %vm889, %v864, 0
        %v912 = vsel %vm889, %v865, 0
        %v915 = vsel %vm889, %v866, 0
        %v918 = vsel %vm889, %v867, 0
        %v921 = vsel %vm889, %v868, 0
        %v924 = vsel %vm889, %v869, 0
        %v927 = vsel %vm889, %v870, 0
        %v930 = vsel %vm889, %v871, 0
        %v933 = vsel %vm889, %v872, 0
        %v936 = vsel %vm889, %v873, 0
        %v939 = vsel %vm889, %v874, 0
        %v942 = vsel %vm889, %v875, 0
        %v945 = vsel %vm889, %v876, 0
        %v948 = vsel %vm889, %v877, 0
        %v951 = vsel %vm889, %v878, 0
        %v954 = vsel %vm889, %v879, 0
        %v957 = vsel %vm889, %v880, 0
        %v960 = vsel %vm889, %v881, 0
        %v963 = vsel %vm889, %v882, 0
        %965 = vmatprep.subr.bf16.mxu0 0
        %966 = vmatpush1.bf16.msra.mxu0 %v887
        %967 = vmatprep.subr.bf16.mxu0 0
        %968 = vmatpush1.bf16.msra.mxu0 0
        %969 = vmatprep.subr.bf16.mxu0 0
        %970 = vmatpush1.bf16.msra.mxu0 0
        %971 = vmatprep.subr.bf16.mxu0 0
        %972 = vmatpush1.bf16.msra.mxu0 0
        %973 = vmatprep.subr.bf16.mxu0 0
        %974 = vmatpush1.bf16.msra.mxu0 0
        %975 = vmatprep.subr.bf16.mxu0 0
        %976 = vmatpush1.bf16.msra.mxu0 0
        %977 = vmatprep.subr.bf16.mxu0 0
        %978 = vmatpush1.bf16.msra.mxu0 0
        %979 = vmatprep.subr.bf16.mxu0 0
        %980 = vmatpush1.bf16.msra.mxu0 0
        %981 = vmatprep.subr.bf16.mxu0 0
        %982 = vmatpush1.bf16.msra.mxu0 0
        %983 = vmatprep.subr.bf16.mxu0 0
        %984 = vmatpush1.bf16.msra.mxu0 0
        %985 = vmatprep.subr.bf16.mxu0 0
        %986 = vmatpush1.bf16.msra.mxu0 0
        %987 = vmatprep.subr.bf16.mxu0 0
        %988 = vmatpush1.bf16.msra.mxu0 0
        %989 = vmatprep.subr.bf16.mxu0 0
        %990 = vmatpush1.bf16.msra.mxu0 0
        %991 = vmatprep.subr.bf16.mxu0 0
        %992 = vmatpush1.bf16.msra.mxu0 0
        %993 = vmatprep.subr.bf16.mxu0 0
        %994 = vmatpush1.bf16.msra.mxu0 0
        %995 = vmatprep.subr.bf16.mxu0 0
        %996 = vmatpush1.bf16.msra.mxu0 0
        %997 = vmatprep.mubr.bf16.mxu0 0
        %998 = vmatmul.mubr.bf16.gmra.mrb[0].mxu0 %v891
        %v999 = vpop.f32.mrb[0].mxu0
        %v1000 = vadd.f32 %v511, %v999
        %v1001 = vpop.f32.mrb[0].mxu0
        %v1002 = vpop.f32.mrb[0].mxu0
        %v1003 = vadd.f32 %v516, %v1002
        %v1004 = vpop.f32.mrb[0].mxu0
        %1005 = vmatprep.mubr.bf16.mxu0 0
        %1006 = vmatmul.mubr.bf16.gmra.mrb[0].mxu0 %v894
        %v1007 = vpop.f32.mrb[0].mxu0
        %v1008 = vadd.f32 %v521, %v1007
        %v1009 = vpop.f32.mrb[0].mxu0
        %v1010 = vpop.f32.mrb[0].mxu0
        %v1011 = vadd.f32 %v526, %v1010
        %v1012 = vpop.f32.mrb[0].mxu0
        %1013 = vmatprep.mubr.bf16.mxu0 0
        %1014 = vmatmul.mubr.bf16.gmra.mrb[0].mxu0 %v897
        %v1015 = vpop.f32.mrb[0].mxu0
        %v1016 = vadd.f32 %v531, %v1015
        %v1017 = vpop.f32.mrb[0].mxu0
        %v1018 = vpop.f32.mrb[0].mxu0
        %v1019 = vadd.f32 %v536, %v1018
        %v1020 = vpop.f32.mrb[0].mxu0
        %1021 = vmatprep.mubr.bf16.mxu0 0
        %1022 = vmatmul.mubr.bf16.gmra.mrb[0].mxu0 %v900
        %v1023 = vpop.f32.mrb[0].mxu0
        %v1024 = vadd.f32 %v541, %v1023
        %v1025 = vpop.f32.mrb[0].mxu0
        %v1026 = vpop.f32.mrb[0].mxu0
        %v1027 = vadd.f32 %v546, %v1026
        %v1028 = vpop.f32.mrb[0].mxu0
        %1029 = vmatprep.mubr.bf16.mxu0 0
        %1030 = vmatmul.mubr.bf16.gmra.mrb[0].mxu0 %v903
        %v1031 = vpop.f32.mrb[0].mxu0
        %v1032 = vadd.f32 %v551, %v1031
        %v1033 = vpop.f32.mrb[0].mxu0
        %v1034 = vpop.f32.mrb[0].mxu0
        %v1035 = vadd.f32 %v556, %v1034
        %v1036 = vpop.f32.mrb[0].mxu0
        %1037 = vmatprep.mubr.bf16.mxu0 0
        %1038 = vmatmul.mubr.bf16.gmra.mrb[0].mxu0 %v906
        %v1039 = vpop.f32.mrb[0].mxu0
        %v1040 = vadd.f32 %v561, %v1039
        %v1041 = vpop.f32.mrb[0].mxu0
        %v1042 = vpop.f32.mrb[0].mxu0
        %v1043 = vadd.f32 %v566, %v1042
        %v1044 = vpop.f32.mrb[0].mxu0
        %1045 = vmatprep.mubr.bf16.mxu0 0
        %1046 = vmatmul.mubr.bf16.gmra.mrb[0].mxu0 %v909
        %v1047 = vpop.f32.mrb[0].mxu0
        %v1048 = vadd.f32 %v571, %v1047
        %v1049 = vpop.f32.mrb[0].mxu0
        %v1050 = vpop.f32.mrb[0].mxu0
        %v1051 = vadd.f32 %v576, %v1050
        %v1052 = vpop.f32.mrb[0].mxu0
        %1053 = vmatprep.mubr.bf16.mxu0 0
        %1054 = vmatmul.mubr.bf16.gmra.mrb[0].mxu0 %v912
        %v1055 = vpop.f32.mrb[0].mxu0
        %v1056 = vadd.f32 %v581, %v1055
        %v1057 = vpop.f32.mrb[0].mxu0
        %v1058 = vpop.f32.mrb[0].mxu0
        %v1059 = vadd.f32 %v586, %v1058
        %v1060 = vpop.f32.mrb[0].mxu0
        %1061 = vmatprep.mubr.bf16.mxu0 0
        %1062 = vmatmul.mubr.bf16.gmra.mrb[0].mxu0 %v915
        %v1063 = vpop.f32.mrb[0].mxu0
        %v1064 = vadd.f32 %v591, %v1063
        %v1065 = vpop.f32.mrb[0].mxu0
        %v1066 = vpop.f32.mrb[0].mxu0
        %v1067 = vadd.f32 %v596, %v1066
        %v1068 = vpop.f32.mrb[0].mxu0
        %1069 = vmatprep.mubr.bf16.mxu0 0
        %1070 = vmatmul.mubr.bf16.gmra.mrb[0].mxu0 %v918
        %v1071 = vpop.f32.mrb[0].mxu0
        %v1072 = vadd.f32 %v601, %v1071
        %v1073 = vpop.f32.mrb[0].mxu0
        %v1074 = vpop.f32.mrb[0].mxu0
        %v1075 = vadd.f32 %v606, %v1074
        %v1076 = vpop.f32.mrb[0].mxu0
        %1077 = vmatprep.mubr.bf16.mxu0 0
        %1078 = vmatmul.mubr.bf16.gmra.mrb[0].mxu0 %v921
        %v1079 = vpop.f32.mrb[0].mxu0
        %v1080 = vadd.f32 %v611, %v1079
        %v1081 = vpop.f32.mrb[0].mxu0
        %v1082 = vpop.f32.mrb[0].mxu0
        %v1083 = vadd.f32 %v616, %v1082
        %v1084 = vpop.f32.mrb[0].mxu0
        %1085 = vmatprep.mubr.bf16.mxu0 0
        %1086 = vmatmul.mubr.bf16.gmra.mrb[0].mxu0 %v924
        %v1087 = vpop.f32.mrb[0].mxu0
        %v1088 = vadd.f32 %v621, %v1087
        %v1089 = vpop.f32.mrb[0].mxu0
        %v1090 = vpop.f32.mrb[0].mxu0
        %v1091 = vadd.f32 %v626, %v1090
        %v1092 = vpop.f32.mrb[0].mxu0
        %1093 = vmatprep.mubr.bf16.mxu0 0
        %1094 = vmatmul.mubr.bf16.gmra.mrb[0].mxu0 %v927
        %v1095 = vpop.f32.mrb[0].mxu0
        %v1096 = vadd.f32 %v631, %v1095
        %v1097 = vpop.f32.mrb[0].mxu0
        %v1098 = vpop.f32.mrb[0].mxu0
        %v1099 = vadd.f32 %v636, %v1098
        %v1100 = vpop.f32.mrb[0].mxu0
        %1101 = vmatprep.mubr.bf16.mxu0 0
        %1102 = vmatmul.mubr.bf16.gmra.mrb[0].mxu0 %v930
        %v1103 = vpop.f32.mrb[0].mxu0
        %v1104 = vadd.f32 %v641, %v1103
        %v1105 = vpop.f32.mrb[0].mxu0
        %v1106 = vpop.f32.mrb[0].mxu0
        %v1107 = vadd.f32 %v646, %v1106
        %v1108 = vpop.f32.mrb[0].mxu0
        %1109 = vmatprep.mubr.bf16.mxu0 0
        %1110 = vmatmul.mubr.bf16.gmra.mrb[0].mxu0 %v933
        %v1111 = vpop.f32.mrb[0].mxu0
        %v1112 = vadd.f32 %v651, %v1111
        %v1113 = vpop.f32.mrb[0].mxu0
        %v1114 = vpop.f32.mrb[0].mxu0
        %v1115 = vadd.f32 %v656, %v1114
        %v1116 = vpop.f32.mrb[0].mxu0
        %1117 = vmatprep.mubr.bf16.mxu0 0
        %1118 = vmatmul.mubr.bf16.gmra.mrb[0].mxu0 %v936
        %v1119 = vpop.f32.mrb[0].mxu0
        %v1120 = vadd.f32 %v661, %v1119
        %v1121 = vpop.f32.mrb[0].mxu0
        %v1122 = vpop.f32.mrb[0].mxu0
        %v1123 = vadd.f32 %v666, %v1122
        %v1124 = vpop.f32.mrb[0].mxu0
        %1125 = vmatprep.mubr.bf16.mxu0 0
        %1126 = vmatmul.mubr.bf16.gmra.mrb[0].mxu0 %v939
        %v1127 = vpop.f32.mrb[0].mxu0
        %v1128 = vadd.f32 %v671, %v1127
        %v1129 = vpop.f32.mrb[0].mxu0
        %v1130 = vpop.f32.mrb[0].mxu0
        %v1131 = vadd.f32 %v676, %v1130
        %v1132 = vpop.f32.mrb[0].mxu0
        %1133 = vmatprep.mubr.bf16.mxu0 0
        %1134 = vmatmul.mubr.bf16.gmra.mrb[0].mxu0 %v942
        %v1135 = vpop.f32.mrb[0].mxu0
        %v1136 = vadd.f32 %v681, %v1135
        %v1137 = vpop.f32.mrb[0].mxu0
        %v1138 = vpop.f32.mrb[0].mxu0
        %v1139 = vadd.f32 %v686, %v1138
        %v1140 = vpop.f32.mrb[0].mxu0
        %1141 = vmatprep.mubr.bf16.mxu0 0
        %1142 = vmatmul.mubr.bf16.gmra.mrb[0].mxu0 %v945
        %v1143 = vpop.f32.mrb[0].mxu0
        %v1144 = vadd.f32 %v691, %v1143
        %v1145 = vpop.f32.mrb[0].mxu0
        %v1146 = vpop.f32.mrb[0].mxu0
        %v1147 = vadd.f32 %v696, %v1146
        %v1148 = vpop.f32.mrb[0].mxu0
        %1149 = vmatprep.mubr.bf16.mxu0 0
        %1150 = vmatmul.mubr.bf16.gmra.mrb[0].mxu0 %v948
        %v1151 = vpop.f32.mrb[0].mxu0
        %v1152 = vadd.f32 %v701, %v1151
        %v1153 = vpop.f32.mrb[0].mxu0
        %v1154 = vpop.f32.mrb[0].mxu0
        %v1155 = vadd.f32 %v706, %v1154
        %v1156 = vpop.f32.mrb[0].mxu0
        %1157 = vmatprep.mubr.bf16.mxu0 0
        %1158 = vmatmul.mubr.bf16.gmra.mrb[0].mxu0 %v951
        %v1159 = vpop.f32.mrb[0].mxu0
        %v1160 = vadd.f32 %v711, %v1159
        %v1161 = vpop.f32.mrb[0].mxu0
        %v1162 = vpop.f32.mrb[0].mxu0
        %v1163 = vadd.f32 %v716, %v1162
        %v1164 = vpop.f32.mrb[0].mxu0
        %1165 = vmatprep.mubr.bf16.mxu0 0
        %1166 = vmatmul.mubr.bf16.gmra.mrb[0].mxu0 %v954
        %v1167 = vpop.f32.mrb[0].mxu0
        %v1168 = vadd.f32 %v721, %v1167
        %v1169 = vpop.f32.mrb[0].mxu0
        %v1170 = vpop.f32.mrb[0].mxu0
        %v1171 = vadd.f32 %v726, %v1170
        %v1172 = vpop.f32.mrb[0].mxu0
        %1173 = vmatprep.mubr.bf16.mxu0 0
        %1174 = vmatmul.mubr.bf16.gmra.mrb[0].mxu0 %v957
        %v1175 = vpop.f32.mrb[0].mxu0
        %v1176 = vadd.f32 %v731, %v1175
        %v1177 = vpop.f32.mrb[0].mxu0
        %v1178 = vpop.f32.mrb[0].mxu0
        %v1179 = vadd.f32 %v736, %v1178
        %v1180 = vpop.f32.mrb[0].mxu0
        %1181 = vmatprep.mubr.bf16.mxu0 0
        %1182 = vmatmul.mubr.bf16.gmra.mrb[0].mxu0 %v960
        %v1183 = vpop.f32.mrb[0].mxu0
        %v1184 = vadd.f32 %v741, %v1183
        %v1185 = vpop.f32.mrb[0].mxu0
        %v1186 = vpop.f32.mrb[0].mxu0
        %v1187 = vadd.f32 %v746, %v1186
        %v1188 = vpop.f32.mrb[0].mxu0
        %1189 = vmatprep.mubr.bf16.mxu0 0
        %1190 = vmatmul.mubr.bf16.gmra.mrb[0].mxu0 %v963
        %v1191 = vpop.f32.mrb[0].mxu0
        %v1192 = vadd.f32 %v751, %v1191
        %v1193 = vpop.f32.mrb[0].mxu0
        %v1194 = vpop.f32.mrb[0].mxu0
        %v1195 = vadd.f32 %v756, %v1194
        %v1196 = vpop.f32.mrb[0].mxu0
        %1197 = vdwg.mxu0
        %v1198 = vmax.f32 %v1000, 0.0
        %v1199 = vmax.f32 %v1003, 0.0
        %v1200 = vmax.f32 %v1008, 0.0
        %v1201 = vmax.f32 %v1011, 0.0
        %v1202 = vmax.f32 %v1016, 0.0
        %v1203 = vmax.f32 %v1019, 0.0
        %v1204 = vmax.f32 %v1024, 0.0
        %v1205 = vmax.f32 %v1027, 0.0
        %v1206 = vmax.f32 %v1032, 0.0
        %v1207 = vmax.f32 %v1035, 0.0
        %v1208 = vmax.f32 %v1040, 0.0
        %v1209 = vmax.f32 %v1043, 0.0
        %v1210 = vmax.f32 %v1048, 0.0
        %v1211 = vmax.f32 %v1051, 0.0
        %v1212 = vmax.f32 %v1056, 0.0
        %v1213 = vmax.f32 %v1059, 0.0
        %v1214 = vmax.f32 %v1064, 0.0
        %v1215 = vmax.f32 %v1067, 0.0
        %v1216 = vmax.f32 %v1072, 0.0
        %v1217 = vmax.f32 %v1075, 0.0
        %v1218 = vmax.f32 %v1080, 0.0
        %v1219 = vmax.f32 %v1083, 0.0
        %v1220 = vmax.f32 %v1088, 0.0
        %v1221 = vmax.f32 %v1091, 0.0
        %v1222 = vmax.f32 %v1096, 0.0
        %v1223 = vmax.f32 %v1099, 0.0
        %v1224 = vmax.f32 %v1104, 0.0
        %v1225 = vmax.f32 %v1107, 0.0
        %v1226 = vmax.f32 %v1112, 0.0
        %v1227 = vmax.f32 %v1115, 0.0
        %v1228 = vmax.f32 %v1120, 0.0
        %v1229 = vmax.f32 %v1123, 0.0
        %v1230 = vmax.f32 %v1128, 0.0
        %v1231 = vmax.f32 %v1131, 0.0
        %v1232 = vmax.f32 %v1136, 0.0
        %v1233 = vmax.f32 %v1139, 0.0
        %v1234 = vmax.f32 %v1144, 0.0
        %v1235 = vmax.f32 %v1147, 0.0
        %v1236 = vmax.f32 %v1152, 0.0
        %v1237 = vmax.f32 %v1155, 0.0
        %v1238 = vmax.f32 %v1160, 0.0
        %v1239 = vmax.f32 %v1163, 0.0
        %v1240 = vmax.f32 %v1168, 0.0
        %v1241 = vmax.f32 %v1171, 0.0
        %v1242 = vmax.f32 %v1176, 0.0
        %v1243 = vmax.f32 %v1179, 0.0
        %v1244 = vmax.f32 %v1184, 0.0
        %v1245 = vmax.f32 %v1187, 0.0
        %v1246 = vmax.f32 %v1192, 0.0
        %v1247 = vmax.f32 %v1195, 0.0
        %v1248 = vadd.f32 %v1198, %v1199
        %v1249 = vadd.f32 %v1248, %v1200
        %v1250 = vadd.f32 %v1249, %v1201
        %v1251 = vadd.f32 %v1250, %v1202
        %v1252 = vadd.f32 %v1251, %v1203
        %v1253 = vadd.f32 %v1252, %v1204
        %v1254 = vadd.f32 %v1253, %v1205
        %v1255 = vadd.f32 %v1254, %v1206
        %v1256 = vadd.f32 %v1255, %v1207
        %v1257 = vadd.f32 %v1256, %v1208
        %v1258 = vadd.f32 %v1257, %v1209
        %v1259 = vadd.f32 %v1258, %v1210
        %v1260 = vadd.f32 %v1259, %v1211
        %v1261 = vadd.f32 %v1260, %v1212
        %v1262 = vadd.f32 %v1261, %v1213
        %v1263 = vadd.f32 %v1262, %v1214
        %v1264 = vadd.f32 %v1263, %v1215
        %v1265 = vadd.f32 %v1264, %v1216
        %v1266 = vadd.f32 %v1265, %v1217
        %v1267 = vadd.f32 %v1266, %v1218
        %v1268 = vadd.f32 %v1267, %v1219
        %v1269 = vadd.f32 %v1268, %v1220
        %v1270 = vadd.f32 %v1269, %v1221
        %v1271 = vadd.f32 %v1270, %v1222
        %v1272 = vadd.f32 %v1271, %v1223
        %v1273 = vadd.f32 %v1272, %v1224
        %v1274 = vadd.f32 %v1273, %v1225
        %v1275 = vadd.f32 %v1274, %v1226
        %v1276 = vadd.f32 %v1275, %v1227
        %v1277 = vadd.f32 %v1276, %v1228
        %v1278 = vadd.f32 %v1277, %v1229
        %v1279 = vadd.f32 %v1278, %v1230
        %v1280 = vadd.f32 %v1279, %v1231
        %v1281 = vadd.f32 %v1280, %v1232
        %v1282 = vadd.f32 %v1281, %v1233
        %v1283 = vadd.f32 %v1282, %v1234
        %v1284 = vadd.f32 %v1283, %v1235
        %v1285 = vadd.f32 %v1284, %v1236
        %v1286 = vadd.f32 %v1285, %v1237
        %v1287 = vadd.f32 %v1286, %v1238
        %v1288 = vadd.f32 %v1287, %v1239
        %v1289 = vadd.f32 %v1288, %v1240
        %v1290 = vadd.f32 %v1289, %v1241
        %v1291 = vadd.f32 %v1290, %v1242
        %v1292 = vadd.f32 %v1291, %v1243
        %v1293 = vadd.f32 %v1292, %v1244
        %v1294 = vadd.f32 %v1293, %v1245
        %v1295 = vadd.f32 %v1294, %v1246
        %v1296 = vadd.f32 %v1295, %v1247
        %v1297 = vrot.slane %v1296, 4
        %v1298 = vadd.f32 %v1296, %v1297
        %v1299 = vrot.slane %v1298, 2
        %v1300 = vadd.f32 %v1298, %v1299
        %v1301 = vrot.slane %v1300, 1
        %v1302 = vadd.f32 %v1300, %v1301
        %v1303 = vmul.f32 %v1198, %v1198
        %v1304 = vmul.f32 %v1199, %v1199
        %v1305 = vmul.f32 %v1200, %v1200
        %v1306 = vmul.f32 %v1201, %v1201
        %v1307 = vmul.f32 %v1202, %v1202
        %v1308 = vmul.f32 %v1203, %v1203
        %v1309 = vmul.f32 %v1204, %v1204
        %v1310 = vmul.f32 %v1205, %v1205
        %v1311 = vmul.f32 %v1206, %v1206
        %v1312 = vmul.f32 %v1207, %v1207
        %v1313 = vmul.f32 %v1208, %v1208
        %v1314 = vmul.f32 %v1209, %v1209
        %v1315 = vmul.f32 %v1210, %v1210
        %v1316 = vmul.f32 %v1211, %v1211
        %v1317 = vmul.f32 %v1212, %v1212
        %v1318 = vmul.f32 %v1213, %v1213
        %v1319 = vmul.f32 %v1214, %v1214
        %v1320 = vmul.f32 %v1215, %v1215
        %v1321 = vmul.f32 %v1216, %v1216
        %v1322 = vmul.f32 %v1217, %v1217
        %v1323 = vmul.f32 %v1218, %v1218
        %v1324 = vmul.f32 %v1219, %v1219
        %v1325 = vmul.f32 %v1220, %v1220
        %v1326 = vmul.f32 %v1221, %v1221
        %v1327 = vmul.f32 %v1222, %v1222
        %v1328 = vmul.f32 %v1223, %v1223
        %v1329 = vmul.f32 %v1224, %v1224
        %v1330 = vmul.f32 %v1225, %v1225
        %v1331 = vmul.f32 %v1226, %v1226
        %v1332 = vmul.f32 %v1227, %v1227
        %v1333 = vmul.f32 %v1228, %v1228
        %v1334 = vmul.f32 %v1229, %v1229
        %v1335 = vmul.f32 %v1230, %v1230
        %v1336 = vmul.f32 %v1231, %v1231
        %v1337 = vmul.f32 %v1232, %v1232
        %v1338 = vmul.f32 %v1233, %v1233
        %v1339 = vmul.f32 %v1234, %v1234
        %v1340 = vmul.f32 %v1235, %v1235
        %v1341 = vmul.f32 %v1236, %v1236
        %v1342 = vmul.f32 %v1237, %v1237
        %v1343 = vmul.f32 %v1238, %v1238
        %v1344 = vmul.f32 %v1239, %v1239
        %v1345 = vmul.f32 %v1240, %v1240
        %v1346 = vmul.f32 %v1241, %v1241
        %v1347 = vmul.f32 %v1242, %v1242
        %v1348 = vmul.f32 %v1243, %v1243
        %v1349 = vmul.f32 %v1244, %v1244
        %v1350 = vmul.f32 %v1245, %v1245
        %v1351 = vmul.f32 %v1246, %v1246
        %v1352 = vmul.f32 %v1247, %v1247
        %v1353 = vadd.f32 %v1303, %v1304
        %v1354 = vadd.f32 %v1353, %v1305
        %v1355 = vadd.f32 %v1354, %v1306
        %v1356 = vadd.f32 %v1355, %v1307
        %v1357 = vadd.f32 %v1356, %v1308
        %v1358 = vadd.f32 %v1357, %v1309
        %v1359 = vadd.f32 %v1358, %v1310
        %v1360 = vadd.f32 %v1359, %v1311
        %v1361 = vadd.f32 %v1360, %v1312
        %v1362 = vadd.f32 %v1361, %v1313
        %v1363 = vadd.f32 %v1362, %v1314
        %v1364 = vadd.f32 %v1363, %v1315
        %v1365 = vadd.f32 %v1364, %v1316
        %v1366 = vadd.f32 %v1365, %v1317
        %v1367 = vadd.f32 %v1366, %v1318
        %v1368 = vadd.f32 %v1367, %v1319
        %v1369 = vadd.f32 %v1368, %v1320
        %v1370 = vadd.f32 %v1369, %v1321
        %v1371 = vadd.f32 %v1370, %v1322
        %v1372 = vadd.f32 %v1371, %v1323
        %v1373 = vadd.f32 %v1372, %v1324
        %v1374 = vadd.f32 %v1373, %v1325
        %v1375 = vadd.f32 %v1374, %v1326
        %v1376 = vadd.f32 %v1375, %v1327
        %v1377 = vadd.f32 %v1376, %v1328
        %v1378 = vadd.f32 %v1377, %v1329
        %v1379 = vadd.f32 %v1378, %v1330
        %v1380 = vadd.f32 %v1379, %v1331
        %v1381 = vadd.f32 %v1380, %v1332
        %v1382 = vadd.f32 %v1381, %v1333
        %v1383 = vadd.f32 %v1382, %v1334
        %v1384 = vadd.f32 %v1383, %v1335
        %v1385 = vadd.f32 %v1384, %v1336
        %v1386 = vadd.f32 %v1385, %v1337
        %v1387 = vadd.f32 %v1386, %v1338
        %v1388 = vadd.f32 %v1387, %v1339
        %v1389 = vadd.f32 %v1388, %v1340
        %v1390 = vadd.f32 %v1389, %v1341
        %v1391 = vadd.f32 %v1390, %v1342
        %v1392 = vadd.f32 %v1391, %v1343
        %v1393 = vadd.f32 %v1392, %v1344
        %v1394 = vadd.f32 %v1393, %v1345
        %v1395 = vadd.f32 %v1394, %v1346
        %v1396 = vadd.f32 %v1395, %v1347
        %v1397 = vadd.f32 %v1396, %v1348
        %v1398 = vadd.f32 %v1397, %v1349
        %v1399 = vadd.f32 %v1398, %v1350
        %v1400 = vadd.f32 %v1399, %v1351
        %v1401 = vadd.f32 %v1400, %v1352
        %v1402 = vrot.slane %v1401, 4
        %v1403 = vadd.f32 %v1401, %v1402
        %v1404 = vrot.slane %v1403, 2
        %v1405 = vadd.f32 %v1403, %v1404
        %v1406 = vrot.slane %v1405, 1
        %v1407 = vadd.f32 %v1405, %v1406
        %v1408 = vrcp.pop 400.0
        %v1409 = vmul.f32 %v1302, %v1408
        %v1410 = vmul.f32 %v1407, %v1408
        %v1411 = vmul.f32 %v1409, %v1409
        %v1412 = vsub.f32 %v1410, %v1411
        %v1413 = vmax.f32 %v1412, 0.0
        %v1414 = vsub.f32 %v1198, %v1409
        %v1415 = vsub.f32 %v1199, %v1409
        %v1416 = vsub.f32 %v1200, %v1409
        %v1417 = vsub.f32 %v1201, %v1409
        %v1418 = vsub.f32 %v1202, %v1409
        %v1419 = vsub.f32 %v1203, %v1409
        %v1420 = vsub.f32 %v1204, %v1409
        %v1421 = vsub.f32 %v1205, %v1409
        %v1422 = vsub.f32 %v1206, %v1409
        %v1423 = vsub.f32 %v1207, %v1409
        %v1424 = vsub.f32 %v1208, %v1409
        %v1425 = vsub.f32 %v1209, %v1409
        %v1426 = vsub.f32 %v1210, %v1409
        %v1427 = vsub.f32 %v1211, %v1409
        %v1428 = vsub.f32 %v1212, %v1409
        %v1429 = vsub.f32 %v1213, %v1409
        %v1430 = vsub.f32 %v1214, %v1409
        %v1431 = vsub.f32 %v1215, %v1409
        %v1432 = vsub.f32 %v1216, %v1409
        %v1433 = vsub.f32 %v1217, %v1409
        %v1434 = vsub.f32 %v1218, %v1409
        %v1435 = vsub.f32 %v1219, %v1409
        %v1436 = vsub.f32 %v1220, %v1409
        %v1437 = vsub.f32 %v1221, %v1409
        %v1438 = vsub.f32 %v1222, %v1409
        %v1439 = vsub.f32 %v1223, %v1409
        %v1440 = vsub.f32 %v1224, %v1409
        %v1441 = vsub.f32 %v1225, %v1409
        %v1442 = vsub.f32 %v1226, %v1409
        %v1443 = vsub.f32 %v1227, %v1409
        %v1444 = vsub.f32 %v1228, %v1409
        %v1445 = vsub.f32 %v1229, %v1409
        %v1446 = vsub.f32 %v1230, %v1409
        %v1447 = vsub.f32 %v1231, %v1409
        %v1448 = vsub.f32 %v1232, %v1409
        %v1449 = vsub.f32 %v1233, %v1409
        %v1450 = vsub.f32 %v1234, %v1409
        %v1451 = vsub.f32 %v1235, %v1409
        %v1452 = vsub.f32 %v1236, %v1409
        %v1453 = vsub.f32 %v1237, %v1409
        %v1454 = vsub.f32 %v1238, %v1409
        %v1455 = vsub.f32 %v1239, %v1409
        %v1456 = vsub.f32 %v1240, %v1409
        %v1457 = vsub.f32 %v1241, %v1409
        %v1458 = vsub.f32 %v1242, %v1409
        %v1459 = vsub.f32 %v1243, %v1409
        %v1460 = vsub.f32 %v1244, %v1409
        %v1461 = vsub.f32 %v1245, %v1409
        %v1462 = vsub.f32 %v1246, %v1409
        %v1463 = vsub.f32 %v1247, %v1409
        %v1464 = vadd.f32 %v1413, 1e-05
        %v1465 = vrsqrt.pop %v1464
        %v1466 = vmul.f32 %v1414, %v1465
        %v1467 = vmul.f32 %v1415, %v1465
        %v1468 = vmul.f32 %v1416, %v1465
        %v1469 = vmul.f32 %v1417, %v1465
        %v1470 = vmul.f32 %v1418, %v1465
        %v1471 = vmul.f32 %v1419, %v1465
        %v1472 = vmul.f32 %v1420, %v1465
        %v1473 = vmul.f32 %v1421, %v1465
        %v1474 = vmul.f32 %v1422, %v1465
        %v1475 = vmul.f32 %v1423, %v1465
        %v1476 = vmul.f32 %v1424, %v1465
        %v1477 = vmul.f32 %v1425, %v1465
        %v1478 = vmul.f32 %v1426, %v1465
        %v1479 = vmul.f32 %v1427, %v1465
        %v1480 = vmul.f32 %v1428, %v1465
        %v1481 = vmul.f32 %v1429, %v1465
        %v1482 = vmul.f32 %v1430, %v1465
        %v1483 = vmul.f32 %v1431, %v1465
        %v1484 = vmul.f32 %v1432, %v1465
        %v1485 = vmul.f32 %v1433, %v1465
        %v1486 = vmul.f32 %v1434, %v1465
        %v1487 = vmul.f32 %v1435, %v1465
        %v1488 = vmul.f32 %v1436, %v1465
        %v1489 = vmul.f32 %v1437, %v1465
        %v1490 = vmul.f32 %v1438, %v1465
        %v1491 = vmul.f32 %v1439, %v1465
        %v1492 = vmul.f32 %v1440, %v1465
        %v1493 = vmul.f32 %v1441, %v1465
        %v1494 = vmul.f32 %v1442, %v1465
        %v1495 = vmul.f32 %v1443, %v1465
        %v1496 = vmul.f32 %v1444, %v1465
        %v1497 = vmul.f32 %v1445, %v1465
        %v1498 = vmul.f32 %v1446, %v1465
        %v1499 = vmul.f32 %v1447, %v1465
        %v1500 = vmul.f32 %v1448, %v1465
        %v1501 = vmul.f32 %v1449, %v1465
        %v1502 = vmul.f32 %v1450, %v1465
        %v1503 = vmul.f32 %v1451, %v1465
        %v1504 = vmul.f32 %v1452, %v1465
        %v1505 = vmul.f32 %v1453, %v1465
        %v1506 = vmul.f32 %v1454, %v1465
        %v1507 = vmul.f32 %v1455, %v1465
        %v1508 = vmul.f32 %v1456, %v1465
        %v1509 = vmul.f32 %v1457, %v1465
        %v1510 = vmul.f32 %v1458, %v1465
        %v1511 = vmul.f32 %v1459, %v1465
        %v1512 = vmul.f32 %v1460, %v1465
        %v1513 = vmul.f32 %v1461, %v1465
        %v1514 = vmul.f32 %v1462, %v1465
        %v1515 = vmul.f32 %v1463, %v1465
        %v1516 = vld [vmem:[%s5] sm:$0xff]
        %v1517 = vld [vmem:[%s5 + $0x8] sm:$0xff]
        %v1518 = vld [vmem:[%s5 + $0x10] sm:$0xff]
        %v1519 = vld [vmem:[%s5 + $0x18] sm:$0xff]
        %v1520 = vld [vmem:[%s5 + $0x20] sm:$0xff]
        %v1521 = vld [vmem:[%s5 + $0x28] sm:$0xff]
        %v1522 = vld [vmem:[%s5 + $0x30] sm:$0xff]
        %v1523 = vld [vmem:[%s5 + $0x38] sm:$0xff]
        %v1524 = vld [vmem:[%s5 + $0x40] sm:$0xff]
        %v1525 = vld [vmem:[%s5 + $0x48] sm:$0xff]
        %v1526 = vld [vmem:[%s5 + $0x50] sm:$0xff]
        %v1527 = vld [vmem:[%s5 + $0x58] sm:$0xff]
        %v1528 = vld [vmem:[%s5 + $0x60] sm:$0xff]
        %v1529 = vld [vmem:[%s5 + $0x68] sm:$0xff]
        %v1530 = vld [vmem:[%s5 + $0x70] sm:$0xff]
        %v1531 = vld [vmem:[%s5 + $0x78] sm:$0xff]
        %v1532 = vld [vmem:[%s5 + $0x80] sm:$0xff]
        %v1533 = vld [vmem:[%s5 + $0x88] sm:$0xff]
        %v1534 = vld [vmem:[%s5 + $0x90] sm:$0xff]
        %v1535 = vld [vmem:[%s5 + $0x98] sm:$0xff]
        %v1536 = vld [vmem:[%s5 + $0xa0] sm:$0xff]
        %v1537 = vld [vmem:[%s5 + $0xa8] sm:$0xff]
        %v1538 = vld [vmem:[%s5 + $0xb0] sm:$0xff]
        %v1539 = vld [vmem:[%s5 + $0xb8] sm:$0xff]
        %v1540 = vld [vmem:[%s5 + $0xc0] sm:$0xff]
        %v1541 = vld [vmem:[%s5 + $0xc8] sm:$0xff]
        %v1542 = vld [vmem:[%s5 + $0xd0] sm:$0xff]
        %v1543 = vld [vmem:[%s5 + $0xd8] sm:$0xff]
        %v1544 = vld [vmem:[%s5 + $0xe0] sm:$0xff]
        %v1545 = vld [vmem:[%s5 + $0xe8] sm:$0xff]
        %v1546 = vld [vmem:[%s5 + $0xf0] sm:$0xff]
        %v1547 = vld [vmem:[%s5 + $0xf8] sm:$0xff]
        %v1548 = vld [vmem:[%s5 + $0x100] sm:$0xff]
        %v1549 = vld [vmem:[%s5 + $0x108] sm:$0xff]
        %v1550 = vld [vmem:[%s5 + $0x110] sm:$0xff]
        %v1551 = vld [vmem:[%s5 + $0x118] sm:$0xff]
        %v1552 = vld [vmem:[%s5 + $0x120] sm:$0xff]
        %v1553 = vld [vmem:[%s5 + $0x128] sm:$0xff]
        %v1554 = vld [vmem:[%s5 + $0x130] sm:$0xff]
        %v1555 = vld [vmem:[%s5 + $0x138] sm:$0xff]
        %v1556 = vld [vmem:[%s5 + $0x140] sm:$0xff]
        %v1557 = vld [vmem:[%s5 + $0x148] sm:$0xff]
        %v1558 = vld [vmem:[%s5 + $0x150] sm:$0xff]
        %v1559 = vld [vmem:[%s5 + $0x158] sm:$0xff]
        %v1560 = vld [vmem:[%s5 + $0x160] sm:$0xff]
        %v1561 = vld [vmem:[%s5 + $0x168] sm:$0xff]
        %v1562 = vld [vmem:[%s5 + $0x170] sm:$0xff]
        %v1563 = vld [vmem:[%s5 + $0x178] sm:$0xff]
        %v1564 = vld [vmem:[%s5 + $0x180] sm:$0xff]
        %v1565 = vld [vmem:[%s5 + $0x188] sm:$0xff]
        %v1566 = vld [vmem:[%s5 + $0x190] sm:$0xff]
        %v1567 = vld [vmem:[%s5 + $0x198] sm:$0xff]
        %v1568 = vld [vmem:[%s5 + $0x1a0] sm:$0xff]
        %v1569 = vld [vmem:[%s5 + $0x1a8] sm:$0xff]
        %v1570 = vld [vmem:[%s5 + $0x1b0] sm:$0xff]
        %v1571 = vld [vmem:[%s5 + $0x1b8] sm:$0xff]
        %v1572 = vld [vmem:[%s5 + $0x1c0] sm:$0xff]
        %v1573 = vld [vmem:[%s5 + $0x1c8] sm:$0xff]
        %v1574 = vld [vmem:[%s5 + $0x1d0] sm:$0xff]
        %v1575 = vld [vmem:[%s5 + $0x1d8] sm:$0xff]
        %v1576 = vld [vmem:[%s5 + $0x1e0] sm:$0xff]
        %v1577 = vld [vmem:[%s5 + $0x1e8] sm:$0xff]
        %v1578 = vld [vmem:[%s5 + $0x1f0] sm:$0xff]
        %v1579 = vld [vmem:[%s5 + $0x1f8] sm:$0xff]
        %v1580 = vld [vmem:[%s5 + $0x200] sm:$0xff]
        %v1581 = vld [vmem:[%s5 + $0x208] sm:$0xff]
        %v1582 = vld [vmem:[%s5 + $0x210] sm:$0xff]
        %v1583 = vld [vmem:[%s5 + $0x218] sm:$0xff]
        %v1584 = vld [vmem:[%s5 + $0x220] sm:$0xff]
        %v1585 = vld [vmem:[%s5 + $0x228] sm:$0xff]
        %v1586 = vld [vmem:[%s5 + $0x230] sm:$0xff]
        %v1587 = vld [vmem:[%s5 + $0x238] sm:$0xff]
        %v1588 = vld [vmem:[%s5 + $0x240] sm:$0xff]
        %v1589 = vld [vmem:[%s5 + $0x248] sm:$0xff]
        %v1590 = vld [vmem:[%s5 + $0x250] sm:$0x33]
        %v1591 = vld [vmem:[%s5 + $0x258] sm:$0x33]
        %v1592 = vpack.c.bf16 %v1467, %v1466
        %v1593 = vpack.c.bf16 %v1469, %v1468
        %v1594 = vpack.c.bf16 %v1471, %v1470
        %v1595 = vpack.c.bf16 %v1473, %v1472
        %v1596 = vpack.c.bf16 %v1475, %v1474
        %v1597 = vpack.c.bf16 %v1477, %v1476
        %v1598 = vpack.c.bf16 %v1479, %v1478
        %v1599 = vpack.c.bf16 %v1481, %v1480
        %v1600 = vpack.c.bf16 %v1483, %v1482
        %v1601 = vpack.c.bf16 %v1485, %v1484
        %v1602 = vpack.c.bf16 %v1487, %v1486
        %v1603 = vpack.c.bf16 %v1489, %v1488
        %v1604 = vpack.c.bf16 %v1491, %v1490
        %v1605 = vpack.c.bf16 %v1493, %v1492
        %v1606 = vpack.c.bf16 %v1495, %v1494
        %v1607 = vpack.c.bf16 %v1497, %v1496
        %v1608 = vpack.c.bf16 %v1499, %v1498
        %v1609 = vpack.c.bf16 %v1501, %v1500
        %v1610 = vpack.c.bf16 %v1503, %v1502
        %v1611 = vpack.c.bf16 %v1505, %v1504
        %v1612 = vpack.c.bf16 %v1507, %v1506
        %v1613 = vpack.c.bf16 %v1509, %v1508
        %v1614 = vpack.c.bf16 %v1511, %v1510
        %v1615 = vpack.c.bf16 %v1513, %v1512
        %v1616 = vpack.c.bf16 %v1515, %v1514
        %v1617 = vld [vmem:[%s6] sm:$0xf]
        %v1618 = vld [vmem:[%s6 + $0x4] sm:$0xf]
        %v1619 = vld [vmem:[%s6 + $0x8] sm:$0xf]
        %v1620 = vld [vmem:[%s6 + $0xc] sm:$0xf]
        %v1621 = vld [vmem:[%s6 + $0x10] sm:$0xf]
        %v1622 = vld [vmem:[%s6 + $0x14] sm:$0xf]
        %v1623 = vld [vmem:[%s6 + $0x18] sm:$0xf]
        %v1624 = vld [vmem:[%s6 + $0x1c] sm:$0xf]
        %v1625 = vld [vmem:[%s6 + $0x20] sm:$0xf]
        %v1626 = vld [vmem:[%s6 + $0x24] sm:$0xf]
        %v1627 = vld [vmem:[%s6 + $0x28] sm:$0xf]
        %v1628 = vld [vmem:[%s6 + $0x2c] sm:$0xf]
        %v1629 = vld [vmem:[%s6 + $0x30] sm:$0xf]
        %v1630 = vld [vmem:[%s6 + $0x34] sm:$0xf]
        %v1631 = vld [vmem:[%s6 + $0x38] sm:$0xf]
        %v1632 = vld [vmem:[%s6 + $0x3c] sm:$0xf]
        %v1633 = vld [vmem:[%s6 + $0x40] sm:$0xf]
        %v1634 = vld [vmem:[%s6 + $0x44] sm:$0xf]
        %v1635 = vld [vmem:[%s6 + $0x48] sm:$0xf]
        %v1636 = vld [vmem:[%s6 + $0x4c] sm:$0xf]
        %v1637 = vld [vmem:[%s6 + $0x50] sm:$0xf]
        %v1638 = vld [vmem:[%s6 + $0x54] sm:$0xf]
        %v1639 = vld [vmem:[%s6 + $0x58] sm:$0xf]
        %v1640 = vld [vmem:[%s6 + $0x5c] sm:$0xf]
        %v1641 = vld [vmem:[%s6 + $0x60] sm:$0xf]
        %v1642 = vld [vmem:[%s6 + $0x64] sm:$0xf]
        %v1643 = vld [vmem:[%s6 + $0x68] sm:$0xf]
        %v1644 = vld [vmem:[%s6 + $0x6c] sm:$0xf]
        %v1645 = vld [vmem:[%s6 + $0x70] sm:$0xf]
        %v1646 = vld [vmem:[%s6 + $0x74] sm:$0xf]
        %v1647 = vld [vmem:[%s6 + $0x78] sm:$0xf]
        %v1648 = vld [vmem:[%s6 + $0x7c] sm:$0xf]
        %v1649 = vld [vmem:[%s6 + $0x80] sm:$0xf]
        %v1650 = vld [vmem:[%s6 + $0x84] sm:$0xf]
        %v1651 = vld [vmem:[%s6 + $0x88] sm:$0xf]
        %v1652 = vld [vmem:[%s6 + $0x8c] sm:$0xf]
        %v1653 = vld [vmem:[%s6 + $0x90] sm:$0xf]
        %v1654 = vld [vmem:[%s6 + $0x94] sm:$0x3]
        %v1655 = vld [vmem:[%s401] sm:$0xf]
        %v1694 = vunpack.c.l.b16 %v1617
        %v1695 = vunpack.c.l.b16 %v1618
        %v1696 = vunpack.c.l.b16 %v1619
        %v1697 = vunpack.c.l.b16 %v1620
        %v1698 = vunpack.c.l.b16 %v1621
        %v1699 = vunpack.c.l.b16 %v1622
        %v1700 = vunpack.c.l.b16 %v1623
        %v1701 = vunpack.c.l.b16 %v1624
        %v1702 = vunpack.c.l.b16 %v1625
        %v1703 = vunpack.c.l.b16 %v1626
        %v1704 = vunpack.c.l.b16 %v1627
        %v1705 = vunpack.c.l.b16 %v1628
        %v1706 = vunpack.c.l.b16 %v1629
        %v1707 = vunpack.c.l.b16 %v1630
        %v1708 = vunpack.c.l.b16 %v1631
        %v1709 = vunpack.c.l.b16 %v1632
        %v1710 = vunpack.c.l.b16 %v1633
        %v1711 = vunpack.c.l.b16 %v1634
        %v1712 = vunpack.c.l.b16 %v1635
        %v1713 = vunpack.c.l.b16 %v1636
        %v1714 = vunpack.c.l.b16 %v1637
        %v1715 = vunpack.c.l.b16 %v1638
        %v1716 = vunpack.c.l.b16 %v1639
        %v1717 = vunpack.c.l.b16 %v1640
        %v1718 = vunpack.c.l.b16 %v1641
        %v1719 = vunpack.c.l.b16 %v1642
        %v1720 = vunpack.c.l.b16 %v1643
        %v1721 = vunpack.c.l.b16 %v1644
        %v1722 = vunpack.c.l.b16 %v1645
        %v1723 = vunpack.c.l.b16 %v1646
        %v1724 = vunpack.c.l.b16 %v1647
        %v1725 = vunpack.c.l.b16 %v1648
        %v1726 = vunpack.c.l.b16 %v1649
        %v1727 = vunpack.c.l.b16 %v1650
        %v1728 = vunpack.c.l.b16 %v1651
        %v1729 = vunpack.c.l.b16 %v1652
        %v1730 = vunpack.c.l.b16 %v1653
        %v1731 = vunpack.c.l.b16 %v1654
        %v1732 = vpack.c.b16 %v1695, %v1694
        %v1733 = vpack.c.b16 %v1697, %v1696
        %v1734 = vpack.c.b16 %v1699, %v1698
        %v1735 = vpack.c.b16 %v1701, %v1700
        %v1736 = vpack.c.b16 %v1703, %v1702
        %v1737 = vpack.c.b16 %v1705, %v1704
        %v1738 = vpack.c.b16 %v1707, %v1706
        %v1739 = vpack.c.b16 %v1709, %v1708
        %v1740 = vpack.c.b16 %v1711, %v1710
        %v1741 = vpack.c.b16 %v1713, %v1712
        %v1742 = vpack.c.b16 %v1715, %v1714
        %v1743 = vpack.c.b16 %v1717, %v1716
        %v1744 = vpack.c.b16 %v1719, %v1718
        %v1745 = vpack.c.b16 %v1721, %v1720
        %v1746 = vpack.c.b16 %v1723, %v1722
        %v1747 = vpack.c.b16 %v1725, %v1724
        %v1748 = vpack.c.b16 %v1727, %v1726
        %v1749 = vpack.c.b16 %v1729, %v1728
        %v1750 = vpack.c.b16 %v1731, %v1730
        %vm1751 = vcmask 64512
        %v1753 = vsel %vm1751, %v1732, 0
        %v1756 = vsel %vm1751, %v1733, 0
        %v1759 = vsel %vm1751, %v1734, 0
        %v1762 = vsel %vm1751, %v1735, 0
        %v1765 = vsel %vm1751, %v1736, 0
        %v1768 = vsel %vm1751, %v1737, 0
        %v1771 = vsel %vm1751, %v1738, 0
        %v1774 = vsel %vm1751, %v1739, 0
        %v1777 = vsel %vm1751, %v1740, 0
        %v1780 = vsel %vm1751, %v1741, 0
        %v1783 = vsel %vm1751, %v1742, 0
        %v1786 = vsel %vm1751, %v1743, 0
        %v1789 = vsel %vm1751, %v1744, 0
        %v1792 = vsel %vm1751, %v1745, 0
        %v1795 = vsel %vm1751, %v1746, 0
        %v1798 = vsel %vm1751, %v1747, 0
        %v1801 = vsel %vm1751, %v1748, 0
        %v1804 = vsel %vm1751, %v1749, 0
        %v1807 = vsel %vm1751, %v1750, 0
        %vm1809 = vcmask 1043456
        %v1811 = vsel %vm1809, %v1655, 0
        %1813 = vmatprep.subr.bf16.mxu0 0
        %1814 = vmatpush1.bf16.msra.mxu0 %v1811
        %1815 = vmatprep.subr.bf16.mxu0 0
        %1816 = vmatpush1.bf16.msra.mxu0 0
        %1817 = vmatprep.subr.bf16.mxu0 0
        %1818 = vmatpush1.bf16.msra.mxu0 0
        %1819 = vmatprep.subr.bf16.mxu0 0
        %1820 = vmatpush1.bf16.msra.mxu0 0
        %1821 = vmatprep.subr.bf16.mxu0 0
        %1822 = vmatpush1.bf16.msra.mxu0 0
        %1823 = vmatprep.subr.bf16.mxu0 0
        %1824 = vmatpush1.bf16.msra.mxu0 0
        %1825 = vmatprep.subr.bf16.mxu0 0
        %1826 = vmatpush1.bf16.msra.mxu0 0
        %1827 = vmatprep.subr.bf16.mxu0 0
        %1828 = vmatpush1.bf16.msra.mxu0 0
        %1829 = vmatprep.subr.bf16.mxu0 0
        %1830 = vmatpush1.bf16.msra.mxu0 0
        %1831 = vmatprep.subr.bf16.mxu0 0
        %1832 = vmatpush1.bf16.msra.mxu0 0
        %1833 = vmatprep.subr.bf16.mxu0 0
        %1834 = vmatpush1.bf16.msra.mxu0 0
        %1835 = vmatprep.subr.bf16.mxu0 0
        %1836 = vmatpush1.bf16.msra.mxu0 0
        %1837 = vmatprep.subr.bf16.mxu0 0
        %1838 = vmatpush1.bf16.msra.mxu0 0
        %1839 = vmatprep.subr.bf16.mxu0 0
        %1840 = vmatpush1.bf16.msra.mxu0 0
        %1841 = vmatprep.subr.bf16.mxu0 0
        %1842 = vmatpush1.bf16.msra.mxu0 0
        %1843 = vmatprep.subr.bf16.mxu0 0
        %1844 = vmatpush1.bf16.msra.mxu0 0
        %1845 = vmatprep.mubr.bf16.mxu0 0
        %1846 = vmatmul.mubr.bf16.gmra.mrb[0].mxu0 %v1753
        %v1847 = vpop.f32.mrb[0].mxu0
        %v1848 = vadd.f32 0.0, %v1847
        %v1849 = vpop.f32.mrb[0].mxu0
        %v1850 = vpop.f32.mrb[0].mxu0
        %v1851 = vadd.f32 0.0, %v1850
        %v1852 = vpop.f32.mrb[0].mxu0
        %1853 = vmatprep.mubr.bf16.mxu0 0
        %1854 = vmatmul.mubr.bf16.gmra.mrb[0].mxu0 %v1756
        %v1855 = vpop.f32.mrb[0].mxu0
        %v1856 = vadd.f32 0.0, %v1855
        %v1857 = vpop.f32.mrb[0].mxu0
        %v1858 = vpop.f32.mrb[0].mxu0
        %v1859 = vadd.f32 0.0, %v1858
        %v1860 = vpop.f32.mrb[0].mxu0
        %1861 = vmatprep.mubr.bf16.mxu0 0
        %1862 = vmatmul.mubr.bf16.gmra.mrb[0].mxu0 %v1759
        %v1863 = vpop.f32.mrb[0].mxu0
        %v1864 = vadd.f32 0.0, %v1863
        %v1865 = vpop.f32.mrb[0].mxu0
        %v1866 = vpop.f32.mrb[0].mxu0
        %v1867 = vadd.f32 0.0, %v1866
        %v1868 = vpop.f32.mrb[0].mxu0
        %1869 = vmatprep.mubr.bf16.mxu0 0
        %1870 = vmatmul.mubr.bf16.gmra.mrb[0].mxu0 %v1762
        %v1871 = vpop.f32.mrb[0].mxu0
        %v1872 = vadd.f32 0.0, %v1871
        %v1873 = vpop.f32.mrb[0].mxu0
        %v1874 = vpop.f32.mrb[0].mxu0
        %v1875 = vadd.f32 0.0, %v1874
        %v1876 = vpop.f32.mrb[0].mxu0
        %1877 = vmatprep.mubr.bf16.mxu0 0
        %1878 = vmatmul.mubr.bf16.gmra.mrb[0].mxu0 %v1765
        %v1879 = vpop.f32.mrb[0].mxu0
        %v1880 = vadd.f32 0.0, %v1879
        %v1881 = vpop.f32.mrb[0].mxu0
        %v1882 = vpop.f32.mrb[0].mxu0
        %v1883 = vadd.f32 0.0, %v1882
        %v1884 = vpop.f32.mrb[0].mxu0
        %1885 = vmatprep.mubr.bf16.mxu0 0
        %1886 = vmatmul.mubr.bf16.gmra.mrb[0].mxu0 %v1768
        %v1887 = vpop.f32.mrb[0].mxu0
        %v1888 = vadd.f32 0.0, %v1887
        %v1889 = vpop.f32.mrb[0].mxu0
        %v1890 = vpop.f32.mrb[0].mxu0
        %v1891 = vadd.f32 0.0, %v1890
        %v1892 = vpop.f32.mrb[0].mxu0
        %1893 = vmatprep.mubr.bf16.mxu0 0
        %1894 = vmatmul.mubr.bf16.gmra.mrb[0].mxu0 %v1771
        %v1895 = vpop.f32.mrb[0].mxu0
        %v1896 = vadd.f32 0.0, %v1895
        %v1897 = vpop.f32.mrb[0].mxu0
        %v1898 = vpop.f32.mrb[0].mxu0
        %v1899 = vadd.f32 0.0, %v1898
        %v1900 = vpop.f32.mrb[0].mxu0
        %1901 = vmatprep.mubr.bf16.mxu0 0
        %1902 = vmatmul.mubr.bf16.gmra.mrb[0].mxu0 %v1774
        %v1903 = vpop.f32.mrb[0].mxu0
        %v1904 = vadd.f32 0.0, %v1903
        %v1905 = vpop.f32.mrb[0].mxu0
        %v1906 = vpop.f32.mrb[0].mxu0
        %v1907 = vadd.f32 0.0, %v1906
        %v1908 = vpop.f32.mrb[0].mxu0
        %1909 = vmatprep.mubr.bf16.mxu0 0
        %1910 = vmatmul.mubr.bf16.gmra.mrb[0].mxu0 %v1777
        %v1911 = vpop.f32.mrb[0].mxu0
        %v1912 = vadd.f32 0.0, %v1911
        %v1913 = vpop.f32.mrb[0].mxu0
        %v1914 = vpop.f32.mrb[0].mxu0
        %v1915 = vadd.f32 0.0, %v1914
        %v1916 = vpop.f32.mrb[0].mxu0
        %1917 = vmatprep.mubr.bf16.mxu0 0
        %1918 = vmatmul.mubr.bf16.gmra.mrb[0].mxu0 %v1780
        %v1919 = vpop.f32.mrb[0].mxu0
        %v1920 = vadd.f32 0.0, %v1919
        %v1921 = vpop.f32.mrb[0].mxu0
        %v1922 = vpop.f32.mrb[0].mxu0
        %v1923 = vadd.f32 0.0, %v1922
        %v1924 = vpop.f32.mrb[0].mxu0
        %1925 = vmatprep.mubr.bf16.mxu0 0
        %1926 = vmatmul.mubr.bf16.gmra.mrb[0].mxu0 %v1783
        %v1927 = vpop.f32.mrb[0].mxu0
        %v1928 = vadd.f32 0.0, %v1927
        %v1929 = vpop.f32.mrb[0].mxu0
        %v1930 = vpop.f32.mrb[0].mxu0
        %v1931 = vadd.f32 0.0, %v1930
        %v1932 = vpop.f32.mrb[0].mxu0
        %1933 = vmatprep.mubr.bf16.mxu0 0
        %1934 = vmatmul.mubr.bf16.gmra.mrb[0].mxu0 %v1786
        %v1935 = vpop.f32.mrb[0].mxu0
        %v1936 = vadd.f32 0.0, %v1935
        %v1937 = vpop.f32.mrb[0].mxu0
        %v1938 = vpop.f32.mrb[0].mxu0
        %v1939 = vadd.f32 0.0, %v1938
        %v1940 = vpop.f32.mrb[0].mxu0
        %1941 = vmatprep.mubr.bf16.mxu0 0
        %1942 = vmatmul.mubr.bf16.gmra.mrb[0].mxu0 %v1789
        %v1943 = vpop.f32.mrb[0].mxu0
        %v1944 = vadd.f32 0.0, %v1943
        %v1945 = vpop.f32.mrb[0].mxu0
        %v1946 = vpop.f32.mrb[0].mxu0
        %v1947 = vadd.f32 0.0, %v1946
        %v1948 = vpop.f32.mrb[0].mxu0
        %1949 = vmatprep.mubr.bf16.mxu0 0
        %1950 = vmatmul.mubr.bf16.gmra.mrb[0].mxu0 %v1792
        %v1951 = vpop.f32.mrb[0].mxu0
        %v1952 = vadd.f32 0.0, %v1951
        %v1953 = vpop.f32.mrb[0].mxu0
        %v1954 = vpop.f32.mrb[0].mxu0
        %v1955 = vadd.f32 0.0, %v1954
        %v1956 = vpop.f32.mrb[0].mxu0
        %1957 = vmatprep.mubr.bf16.mxu0 0
        %1958 = vmatmul.mubr.bf16.gmra.mrb[0].mxu0 %v1795
        %v1959 = vpop.f32.mrb[0].mxu0
        %v1960 = vadd.f32 0.0, %v1959
        %v1961 = vpop.f32.mrb[0].mxu0
        %v1962 = vpop.f32.mrb[0].mxu0
        %v1963 = vadd.f32 0.0, %v1962
        %v1964 = vpop.f32.mrb[0].mxu0
        %1965 = vmatprep.mubr.bf16.mxu0 0
        %1966 = vmatmul.mubr.bf16.gmra.mrb[0].mxu0 %v1798
        %v1967 = vpop.f32.mrb[0].mxu0
        %v1968 = vadd.f32 0.0, %v1967
        %v1969 = vpop.f32.mrb[0].mxu0
        %v1970 = vpop.f32.mrb[0].mxu0
        %v1971 = vadd.f32 0.0, %v1970
        %v1972 = vpop.f32.mrb[0].mxu0
        %1973 = vmatprep.mubr.bf16.mxu0 0
        %1974 = vmatmul.mubr.bf16.gmra.mrb[0].mxu0 %v1801
        %v1975 = vpop.f32.mrb[0].mxu0
        %v1976 = vadd.f32 0.0, %v1975
        %v1977 = vpop.f32.mrb[0].mxu0
        %v1978 = vpop.f32.mrb[0].mxu0
        %v1979 = vadd.f32 0.0, %v1978
        %v1980 = vpop.f32.mrb[0].mxu0
        %1981 = vmatprep.mubr.bf16.mxu0 0
        %1982 = vmatmul.mubr.bf16.gmra.mrb[0].mxu0 %v1804
        %v1983 = vpop.f32.mrb[0].mxu0
        %v1984 = vadd.f32 0.0, %v1983
        %v1985 = vpop.f32.mrb[0].mxu0
        %v1986 = vpop.f32.mrb[0].mxu0
        %v1987 = vadd.f32 0.0, %v1986
        %v1988 = vpop.f32.mrb[0].mxu0
        %1989 = vmatprep.mubr.bf16.mxu0 0
        %1990 = vmatmul.mubr.bf16.gmra.mrb[0].mxu0 %v1807
        %v1991 = vpop.f32.mrb[0].mxu0
        %v1992 = vadd.f32 0.0, %v1991
        %v1993 = vpop.f32.mrb[0].mxu0
        %v1994 = vpop.f32.mrb[0].mxu0
        %v1995 = vadd.f32 0.0, %v1994
        %v1996 = vpop.f32.mrb[0].mxu0
        %1997 = vdwg.mxu0
        %v2074 = vunpack.c.l.b16 %v1516
        %v2075 = vunpack.c.h.b16 %v1516
        %v2076 = vunpack.c.l.b16 %v1517
        %v2077 = vunpack.c.h.b16 %v1517
        %v2078 = vunpack.c.l.b16 %v1518
        %v2079 = vunpack.c.h.b16 %v1518
        %v2080 = vunpack.c.l.b16 %v1519
        %v2081 = vunpack.c.h.b16 %v1519
        %v2082 = vunpack.c.l.b16 %v1520
        %v2083 = vunpack.c.h.b16 %v1520
        %v2084 = vunpack.c.l.b16 %v1521
        %v2085 = vunpack.c.h.b16 %v1521
        %v2086 = vunpack.c.l.b16 %v1522
        %v2087 = vunpack.c.h.b16 %v1522
        %v2088 = vunpack.c.l.b16 %v1523
        %v2089 = vunpack.c.h.b16 %v1523
        %v2090 = vunpack.c.l.b16 %v1524
        %v2091 = vunpack.c.h.b16 %v1524
        %v2092 = vunpack.c.l.b16 %v1525
        %v2093 = vunpack.c.h.b16 %v1525
        %v2094 = vunpack.c.l.b16 %v1526
        %v2095 = vunpack.c.h.b16 %v1526
        %v2096 = vunpack.c.l.b16 %v1527
        %v2097 = vunpack.c.h.b16 %v1527
        %v2098 = vunpack.c.l.b16 %v1528
        %v2099 = vunpack.c.h.b16 %v1528
        %v2100 = vunpack.c.l.b16 %v1529
        %v2101 = vunpack.c.h.b16 %v1529
        %v2102 = vunpack.c.l.b16 %v1530
        %v2103 = vunpack.c.h.b16 %v1530
        %v2104 = vunpack.c.l.b16 %v1531
        %v2105 = vunpack.c.h.b16 %v1531
        %v2106 = vunpack.c.l.b16 %v1532
        %v2107 = vunpack.c.h.b16 %v1532
        %v2108 = vunpack.c.l.b16 %v1533
        %v2109 = vunpack.c.h.b16 %v1533
        %v2110 = vunpack.c.l.b16 %v1534
        %v2111 = vunpack.c.h.b16 %v1534
        %v2112 = vunpack.c.l.b16 %v1535
        %v2113 = vunpack.c.h.b16 %v1535
        %v2114 = vunpack.c.l.b16 %v1536
        %v2115 = vunpack.c.h.b16 %v1536
        %v2116 = vunpack.c.l.b16 %v1537
        %v2117 = vunpack.c.h.b16 %v1537
        %v2118 = vunpack.c.l.b16 %v1538
        %v2119 = vunpack.c.h.b16 %v1538
        %v2120 = vunpack.c.l.b16 %v1539
        %v2121 = vunpack.c.h.b16 %v1539
        %v2122 = vunpack.c.l.b16 %v1540
        %v2123 = vunpack.c.h.b16 %v1540
        %v2124 = vunpack.c.l.b16 %v1541
        %v2125 = vunpack.c.h.b16 %v1541
        %v2126 = vunpack.c.l.b16 %v1542
        %v2127 = vunpack.c.h.b16 %v1542
        %v2128 = vunpack.c.l.b16 %v1543
        %v2129 = vunpack.c.h.b16 %v1543
        %v2130 = vunpack.c.l.b16 %v1544
        %v2131 = vunpack.c.h.b16 %v1544
        %v2132 = vunpack.c.l.b16 %v1545
        %v2133 = vunpack.c.h.b16 %v1545
        %v2134 = vunpack.c.l.b16 %v1546
        %v2135 = vunpack.c.h.b16 %v1546
        %v2136 = vunpack.c.l.b16 %v1547
        %v2137 = vunpack.c.h.b16 %v1547
        %v2138 = vunpack.c.l.b16 %v1548
        %v2139 = vunpack.c.h.b16 %v1548
        %v2140 = vunpack.c.l.b16 %v1549
        %v2141 = vunpack.c.h.b16 %v1549
        %v2142 = vunpack.c.l.b16 %v1550
        %v2143 = vunpack.c.h.b16 %v1550
        %v2144 = vunpack.c.l.b16 %v1551
        %v2145 = vunpack.c.h.b16 %v1551
        %v2146 = vunpack.c.l.b16 %v1552
        %v2147 = vunpack.c.h.b16 %v1552
        %v2148 = vunpack.c.l.b16 %v1553
        %v2149 = vunpack.c.h.b16 %v1553
        %v2150 = vunpack.c.l.b16 %v1554
        %v2151 = vunpack.c.h.b16 %v1554
        %v2152 = vunpack.c.l.b16 %v1555
        %v2153 = vunpack.c.h.b16 %v1555
        %v2154 = vunpack.c.l.b16 %v1556
        %v2155 = vunpack.c.h.b16 %v1556
        %v2156 = vunpack.c.l.b16 %v1557
        %v2157 = vunpack.c.h.b16 %v1557
        %v2158 = vunpack.c.l.b16 %v1558
        %v2159 = vunpack.c.h.b16 %v1558
        %v2160 = vunpack.c.l.b16 %v1559
        %v2161 = vunpack.c.h.b16 %v1559
        %v2162 = vunpack.c.l.b16 %v1560
        %v2163 = vunpack.c.h.b16 %v1560
        %v2164 = vunpack.c.l.b16 %v1561
        %v2165 = vunpack.c.h.b16 %v1561
        %v2166 = vunpack.c.l.b16 %v1562
        %v2167 = vunpack.c.h.b16 %v1562
        %v2168 = vunpack.c.l.b16 %v1563
        %v2169 = vunpack.c.h.b16 %v1563
        %v2170 = vunpack.c.l.b16 %v1564
        %v2171 = vunpack.c.h.b16 %v1564
        %v2172 = vunpack.c.l.b16 %v1565
        %v2173 = vunpack.c.h.b16 %v1565
        %v2174 = vunpack.c.l.b16 %v1566
        %v2175 = vunpack.c.h.b16 %v1566
        %v2176 = vunpack.c.l.b16 %v1567
        %v2177 = vunpack.c.h.b16 %v1567
        %v2178 = vunpack.c.l.b16 %v1568
        %v2179 = vunpack.c.h.b16 %v1568
        %v2180 = vunpack.c.l.b16 %v1569
        %v2181 = vunpack.c.h.b16 %v1569
        %v2182 = vunpack.c.l.b16 %v1570
        %v2183 = vunpack.c.h.b16 %v1570
        %v2184 = vunpack.c.l.b16 %v1571
        %v2185 = vunpack.c.h.b16 %v1571
        %v2186 = vunpack.c.l.b16 %v1572
        %v2187 = vunpack.c.h.b16 %v1572
        %v2188 = vunpack.c.l.b16 %v1573
        %v2189 = vunpack.c.h.b16 %v1573
        %v2190 = vunpack.c.l.b16 %v1574
        %v2191 = vunpack.c.h.b16 %v1574
        %v2192 = vunpack.c.l.b16 %v1575
        %v2193 = vunpack.c.h.b16 %v1575
        %v2194 = vunpack.c.l.b16 %v1576
        %v2195 = vunpack.c.h.b16 %v1576
        %v2196 = vunpack.c.l.b16 %v1577
        %v2197 = vunpack.c.h.b16 %v1577
        %v2198 = vunpack.c.l.b16 %v1578
        %v2199 = vunpack.c.h.b16 %v1578
        %v2200 = vunpack.c.l.b16 %v1579
        %v2201 = vunpack.c.h.b16 %v1579
        %v2202 = vunpack.c.l.b16 %v1580
        %v2203 = vunpack.c.h.b16 %v1580
        %v2204 = vunpack.c.l.b16 %v1581
        %v2205 = vunpack.c.h.b16 %v1581
        %v2206 = vunpack.c.l.b16 %v1582
        %v2207 = vunpack.c.h.b16 %v1582
        %v2208 = vunpack.c.l.b16 %v1583
        %v2209 = vunpack.c.h.b16 %v1583
        %v2210 = vunpack.c.l.b16 %v1584
        %v2211 = vunpack.c.h.b16 %v1584
        %v2212 = vunpack.c.l.b16 %v1585
        %v2213 = vunpack.c.h.b16 %v1585
        %v2214 = vunpack.c.l.b16 %v1586
        %v2215 = vunpack.c.h.b16 %v1586
        %v2216 = vunpack.c.l.b16 %v1587
        %v2217 = vunpack.c.h.b16 %v1587
        %v2218 = vunpack.c.l.b16 %v1588
        %v2219 = vunpack.c.h.b16 %v1588
        %v2220 = vunpack.c.l.b16 %v1589
        %v2221 = vunpack.c.h.b16 %v1589
        %v2222 = vunpack.c.l.b16 %v1590
        %v2223 = vunpack.c.h.b16 %v1590
        %v2224 = vunpack.c.l.b16 %v1591
        %v2225 = vunpack.c.h.b16 %v1591
        %v2226 = vpack.c.b16 %v2078, %v2074
        %v2227 = vpack.c.b16 %v2079, %v2075
        %v2228 = vpack.c.b16 %v2080, %v2076
        %v2229 = vpack.c.b16 %v2081, %v2077
        %v2230 = vpack.c.b16 %v2086, %v2082
        %v2231 = vpack.c.b16 %v2087, %v2083
        %v2232 = vpack.c.b16 %v2088, %v2084
        %v2233 = vpack.c.b16 %v2089, %v2085
        %v2234 = vpack.c.b16 %v2094, %v2090
        %v2235 = vpack.c.b16 %v2095, %v2091
        %v2236 = vpack.c.b16 %v2096, %v2092
        %v2237 = vpack.c.b16 %v2097, %v2093
        %v2238 = vpack.c.b16 %v2102, %v2098
        %v2239 = vpack.c.b16 %v2103, %v2099
        %v2240 = vpack.c.b16 %v2104, %v2100
        %v2241 = vpack.c.b16 %v2105, %v2101
        %v2242 = vpack.c.b16 %v2110, %v2106
        %v2243 = vpack.c.b16 %v2111, %v2107
        %v2244 = vpack.c.b16 %v2112, %v2108
        %v2245 = vpack.c.b16 %v2113, %v2109
        %v2246 = vpack.c.b16 %v2118, %v2114
        %v2247 = vpack.c.b16 %v2119, %v2115
        %v2248 = vpack.c.b16 %v2120, %v2116
        %v2249 = vpack.c.b16 %v2121, %v2117
        %v2250 = vpack.c.b16 %v2126, %v2122
        %v2251 = vpack.c.b16 %v2127, %v2123
        %v2252 = vpack.c.b16 %v2128, %v2124
        %v2253 = vpack.c.b16 %v2129, %v2125
        %v2254 = vpack.c.b16 %v2134, %v2130
        %v2255 = vpack.c.b16 %v2135, %v2131
        %v2256 = vpack.c.b16 %v2136, %v2132
        %v2257 = vpack.c.b16 %v2137, %v2133
        %v2258 = vpack.c.b16 %v2142, %v2138
        %v2259 = vpack.c.b16 %v2143, %v2139
        %v2260 = vpack.c.b16 %v2144, %v2140
        %v2261 = vpack.c.b16 %v2145, %v2141
        %v2262 = vpack.c.b16 %v2150, %v2146
        %v2263 = vpack.c.b16 %v2151, %v2147
        %v2264 = vpack.c.b16 %v2152, %v2148
        %v2265 = vpack.c.b16 %v2153, %v2149
        %v2266 = vpack.c.b16 %v2158, %v2154
        %v2267 = vpack.c.b16 %v2159, %v2155
        %v2268 = vpack.c.b16 %v2160, %v2156
        %v2269 = vpack.c.b16 %v2161, %v2157
        %v2270 = vpack.c.b16 %v2166, %v2162
        %v2271 = vpack.c.b16 %v2167, %v2163
        %v2272 = vpack.c.b16 %v2168, %v2164
        %v2273 = vpack.c.b16 %v2169, %v2165
        %v2274 = vpack.c.b16 %v2174, %v2170
        %v2275 = vpack.c.b16 %v2175, %v2171
        %v2276 = vpack.c.b16 %v2176, %v2172
        %v2277 = vpack.c.b16 %v2177, %v2173
        %v2278 = vpack.c.b16 %v2182, %v2178
        %v2279 = vpack.c.b16 %v2183, %v2179
        %v2280 = vpack.c.b16 %v2184, %v2180
        %v2281 = vpack.c.b16 %v2185, %v2181
        %v2282 = vpack.c.b16 %v2190, %v2186
        %v2283 = vpack.c.b16 %v2191, %v2187
        %v2284 = vpack.c.b16 %v2192, %v2188
        %v2285 = vpack.c.b16 %v2193, %v2189
        %v2286 = vpack.c.b16 %v2198, %v2194
        %v2287 = vpack.c.b16 %v2199, %v2195
        %v2288 = vpack.c.b16 %v2200, %v2196
        %v2289 = vpack.c.b16 %v2201, %v2197
        %v2290 = vpack.c.b16 %v2206, %v2202
        %v2291 = vpack.c.b16 %v2207, %v2203
        %v2292 = vpack.c.b16 %v2208, %v2204
        %v2293 = vpack.c.b16 %v2209, %v2205
        %v2294 = vpack.c.b16 %v2214, %v2210
        %v2295 = vpack.c.b16 %v2215, %v2211
        %v2296 = vpack.c.b16 %v2216, %v2212
        %v2297 = vpack.c.b16 %v2217, %v2213
        %v2298 = vpack.c.b16 %v2222, %v2218
        %v2299 = vpack.c.b16 %v2223, %v2219
        %v2300 = vpack.c.b16 %v2224, %v2220
        %v2301 = vpack.c.b16 %v2225, %v2221
        %v2360 = vsel %vm889, %v2229, 0
        %v2363 = vsel %vm889, %v2233, 0
        %v2366 = vsel %vm889, %v2237, 0
        %v2369 = vsel %vm889, %v2241, 0
        %v2372 = vsel %vm889, %v2245, 0
        %v2375 = vsel %vm889, %v2249, 0
        %v2378 = vsel %vm889, %v2253, 0
        %v2381 = vsel %vm889, %v2257, 0
        %v2384 = vsel %vm889, %v2261, 0
        %v2387 = vsel %vm889, %v2265, 0
        %v2390 = vsel %vm889, %v2269, 0
        %v2393 = vsel %vm889, %v2273, 0
        %v2396 = vsel %vm889, %v2277, 0
        %v2399 = vsel %vm889, %v2281, 0
        %v2402 = vsel %vm889, %v2285, 0
        %v2405 = vsel %vm889, %v2289, 0
        %v2408 = vsel %vm889, %v2293, 0
        %v2411 = vsel %vm889, %v2297, 0
        %v2414 = vsel %vm889, %v2301, 0
        %2416 = vmatprep.subr.bf16.mxu0 0
        %2417 = vmatpush1.bf16.msra.mxu0 %v1592
        %2418 = vmatprep.subr.bf16.mxu0 0
        %2419 = vmatpush1.bf16.msra.mxu0 %v1593
        %2420 = vmatprep.subr.bf16.mxu0 0
        %2421 = vmatpush1.bf16.msra.mxu0 %v1594
        %2422 = vmatprep.subr.bf16.mxu0 0
        %2423 = vmatpush1.bf16.msra.mxu0 %v1595
        %2424 = vmatprep.subr.bf16.mxu0 0
        %2425 = vmatpush1.bf16.msra.mxu0 %v1596
        %2426 = vmatprep.subr.bf16.mxu0 0
        %2427 = vmatpush1.bf16.msra.mxu0 %v1597
        %2428 = vmatprep.subr.bf16.mxu0 0
        %2429 = vmatpush1.bf16.msra.mxu0 %v1598
        %2430 = vmatprep.subr.bf16.mxu0 0
        %2431 = vmatpush1.bf16.msra.mxu0 %v1599
        %2432 = vmatprep.subr.bf16.mxu0 0
        %2433 = vmatpush1.bf16.msra.mxu0 %v1600
        %2434 = vmatprep.subr.bf16.mxu0 0
        %2435 = vmatpush1.bf16.msra.mxu0 %v1601
        %2436 = vmatprep.subr.bf16.mxu0 0
        %2437 = vmatpush1.bf16.msra.mxu0 %v1602
        %2438 = vmatprep.subr.bf16.mxu0 0
        %2439 = vmatpush1.bf16.msra.mxu0 %v1603
        %2440 = vmatprep.subr.bf16.mxu0 0
        %2441 = vmatpush1.bf16.msra.mxu0 %v1604
        %2442 = vmatprep.subr.bf16.mxu0 0
        %2443 = vmatpush1.bf16.msra.mxu0 %v1605
        %2444 = vmatprep.subr.bf16.mxu0 0
        %2445 = vmatpush1.bf16.msra.mxu0 %v1606
        %2446 = vmatprep.subr.bf16.mxu0 0
        %2447 = vmatpush1.bf16.msra.mxu0 %v1607
        %2448 = vmatprep.mubr.bf16.mxu0 %v2227
        %2449 = vmatmul.mubr.bf16.gmra.mrb[0].mxu0 %v2226
        %v2450 = vpop.f32.mrb[0].mxu0
        %v2451 = vadd.f32 %v1848, %v2450
        %v2452 = vpop.f32.mrb[0].mxu0
        %v2453 = vpop.f32.mrb[0].mxu0
        %v2454 = vadd.f32 %v1851, %v2453
        %v2455 = vpop.f32.mrb[0].mxu0
        %2456 = vmatprep.mubr.bf16.mxu0 %v2231
        %2457 = vmatmul.mubr.bf16.gmra.mrb[0].mxu0 %v2230
        %v2458 = vpop.f32.mrb[0].mxu0
        %v2459 = vadd.f32 %v1856, %v2458
        %v2460 = vpop.f32.mrb[0].mxu0
        %v2461 = vpop.f32.mrb[0].mxu0
        %v2462 = vadd.f32 %v1859, %v2461
        %v2463 = vpop.f32.mrb[0].mxu0
        %2464 = vmatprep.mubr.bf16.mxu0 %v2235
        %2465 = vmatmul.mubr.bf16.gmra.mrb[0].mxu0 %v2234
        %v2466 = vpop.f32.mrb[0].mxu0
        %v2467 = vadd.f32 %v1864, %v2466
        %v2468 = vpop.f32.mrb[0].mxu0
        %v2469 = vpop.f32.mrb[0].mxu0
        %v2470 = vadd.f32 %v1867, %v2469
        %v2471 = vpop.f32.mrb[0].mxu0
        %2472 = vmatprep.mubr.bf16.mxu0 %v2239
        %2473 = vmatmul.mubr.bf16.gmra.mrb[0].mxu0 %v2238
        %v2474 = vpop.f32.mrb[0].mxu0
        %v2475 = vadd.f32 %v1872, %v2474
        %v2476 = vpop.f32.mrb[0].mxu0
        %v2477 = vpop.f32.mrb[0].mxu0
        %v2478 = vadd.f32 %v1875, %v2477
        %v2479 = vpop.f32.mrb[0].mxu0
        %2480 = vmatprep.mubr.bf16.mxu0 %v2243
        %2481 = vmatmul.mubr.bf16.gmra.mrb[0].mxu0 %v2242
        %v2482 = vpop.f32.mrb[0].mxu0
        %v2483 = vadd.f32 %v1880, %v2482
        %v2484 = vpop.f32.mrb[0].mxu0
        %v2485 = vpop.f32.mrb[0].mxu0
        %v2486 = vadd.f32 %v1883, %v2485
        %v2487 = vpop.f32.mrb[0].mxu0
        %2488 = vmatprep.mubr.bf16.mxu0 %v2247
        %2489 = vmatmul.mubr.bf16.gmra.mrb[0].mxu0 %v2246
        %v2490 = vpop.f32.mrb[0].mxu0
        %v2491 = vadd.f32 %v1888, %v2490
        %v2492 = vpop.f32.mrb[0].mxu0
        %v2493 = vpop.f32.mrb[0].mxu0
        %v2494 = vadd.f32 %v1891, %v2493
        %v2495 = vpop.f32.mrb[0].mxu0
        %2496 = vmatprep.mubr.bf16.mxu0 %v2251
        %2497 = vmatmul.mubr.bf16.gmra.mrb[0].mxu0 %v2250
        %v2498 = vpop.f32.mrb[0].mxu0
        %v2499 = vadd.f32 %v1896, %v2498
        %v2500 = vpop.f32.mrb[0].mxu0
        %v2501 = vpop.f32.mrb[0].mxu0
        %v2502 = vadd.f32 %v1899, %v2501
        %v2503 = vpop.f32.mrb[0].mxu0
        %2504 = vmatprep.mubr.bf16.mxu0 %v2255
        %2505 = vmatmul.mubr.bf16.gmra.mrb[0].mxu0 %v2254
        %v2506 = vpop.f32.mrb[0].mxu0
        %v2507 = vadd.f32 %v1904, %v2506
        %v2508 = vpop.f32.mrb[0].mxu0
        %v2509 = vpop.f32.mrb[0].mxu0
        %v2510 = vadd.f32 %v1907, %v2509
        %v2511 = vpop.f32.mrb[0].mxu0
        %2512 = vmatprep.mubr.bf16.mxu0 %v2259
        %2513 = vmatmul.mubr.bf16.gmra.mrb[0].mxu0 %v2258
        %v2514 = vpop.f32.mrb[0].mxu0
        %v2515 = vadd.f32 %v1912, %v2514
        %v2516 = vpop.f32.mrb[0].mxu0
        %v2517 = vpop.f32.mrb[0].mxu0
        %v2518 = vadd.f32 %v1915, %v2517
        %v2519 = vpop.f32.mrb[0].mxu0
        %2520 = vmatprep.mubr.bf16.mxu0 %v2263
        %2521 = vmatmul.mubr.bf16.gmra.mrb[0].mxu0 %v2262
        %v2522 = vpop.f32.mrb[0].mxu0
        %v2523 = vadd.f32 %v1920, %v2522
        %v2524 = vpop.f32.mrb[0].mxu0
        %v2525 = vpop.f32.mrb[0].mxu0
        %v2526 = vadd.f32 %v1923, %v2525
        %v2527 = vpop.f32.mrb[0].mxu0
        %2528 = vmatprep.mubr.bf16.mxu0 %v2267
        %2529 = vmatmul.mubr.bf16.gmra.mrb[0].mxu0 %v2266
        %v2530 = vpop.f32.mrb[0].mxu0
        %v2531 = vadd.f32 %v1928, %v2530
        %v2532 = vpop.f32.mrb[0].mxu0
        %v2533 = vpop.f32.mrb[0].mxu0
        %v2534 = vadd.f32 %v1931, %v2533
        %v2535 = vpop.f32.mrb[0].mxu0
        %2536 = vmatprep.mubr.bf16.mxu0 %v2271
        %2537 = vmatmul.mubr.bf16.gmra.mrb[0].mxu0 %v2270
        %v2538 = vpop.f32.mrb[0].mxu0
        %v2539 = vadd.f32 %v1936, %v2538
        %v2540 = vpop.f32.mrb[0].mxu0
        %v2541 = vpop.f32.mrb[0].mxu0
        %v2542 = vadd.f32 %v1939, %v2541
        %v2543 = vpop.f32.mrb[0].mxu0
        %2544 = vmatprep.mubr.bf16.mxu0 %v2275
        %2545 = vmatmul.mubr.bf16.gmra.mrb[0].mxu0 %v2274
        %v2546 = vpop.f32.mrb[0].mxu0
        %v2547 = vadd.f32 %v1944, %v2546
        %v2548 = vpop.f32.mrb[0].mxu0
        %v2549 = vpop.f32.mrb[0].mxu0
        %v2550 = vadd.f32 %v1947, %v2549
        %v2551 = vpop.f32.mrb[0].mxu0
        %2552 = vmatprep.mubr.bf16.mxu0 %v2279
        %2553 = vmatmul.mubr.bf16.gmra.mrb[0].mxu0 %v2278
        %v2554 = vpop.f32.mrb[0].mxu0
        %v2555 = vadd.f32 %v1952, %v2554
        %v2556 = vpop.f32.mrb[0].mxu0
        %v2557 = vpop.f32.mrb[0].mxu0
        %v2558 = vadd.f32 %v1955, %v2557
        %v2559 = vpop.f32.mrb[0].mxu0
        %2560 = vmatprep.mubr.bf16.mxu0 %v2283
        %2561 = vmatmul.mubr.bf16.gmra.mrb[0].mxu0 %v2282
        %v2562 = vpop.f32.mrb[0].mxu0
        %v2563 = vadd.f32 %v1960, %v2562
        %v2564 = vpop.f32.mrb[0].mxu0
        %v2565 = vpop.f32.mrb[0].mxu0
        %v2566 = vadd.f32 %v1963, %v2565
        %v2567 = vpop.f32.mrb[0].mxu0
        %2568 = vmatprep.mubr.bf16.mxu0 %v2287
        %2569 = vmatmul.mubr.bf16.gmra.mrb[0].mxu0 %v2286
        %v2570 = vpop.f32.mrb[0].mxu0
        %v2571 = vadd.f32 %v1968, %v2570
        %v2572 = vpop.f32.mrb[0].mxu0
        %v2573 = vpop.f32.mrb[0].mxu0
        %v2574 = vadd.f32 %v1971, %v2573
        %v2575 = vpop.f32.mrb[0].mxu0
        %2576 = vmatprep.mubr.bf16.mxu0 %v2291
        %2577 = vmatmul.mubr.bf16.gmra.mrb[0].mxu0 %v2290
        %v2578 = vpop.f32.mrb[0].mxu0
        %v2579 = vadd.f32 %v1976, %v2578
        %v2580 = vpop.f32.mrb[0].mxu0
        %v2581 = vpop.f32.mrb[0].mxu0
        %v2582 = vadd.f32 %v1979, %v2581
        %v2583 = vpop.f32.mrb[0].mxu0
        %2584 = vmatprep.mubr.bf16.mxu0 %v2295
        %2585 = vmatmul.mubr.bf16.gmra.mrb[0].mxu0 %v2294
        %v2586 = vpop.f32.mrb[0].mxu0
        %v2587 = vadd.f32 %v1984, %v2586
        %v2588 = vpop.f32.mrb[0].mxu0
        %v2589 = vpop.f32.mrb[0].mxu0
        %v2590 = vadd.f32 %v1987, %v2589
        %v2591 = vpop.f32.mrb[0].mxu0
        %2592 = vmatprep.mubr.bf16.mxu0 %v2299
        %2593 = vmatmul.mubr.bf16.gmra.mrb[0].mxu0 %v2298
        %v2594 = vpop.f32.mrb[0].mxu0
        %v2595 = vadd.f32 %v1992, %v2594
        %v2596 = vpop.f32.mrb[0].mxu0
        %v2597 = vpop.f32.mrb[0].mxu0
        %v2598 = vadd.f32 %v1995, %v2597
        %v2599 = vpop.f32.mrb[0].mxu0
        %2600 = vdwg.mxu0
        %2601 = vmatprep.subr.bf16.mxu0 0
        %2602 = vmatpush1.bf16.msra.mxu0 %v1608
        %2603 = vmatprep.subr.bf16.mxu0 0
        %2604 = vmatpush1.bf16.msra.mxu0 %v1609
        %2605 = vmatprep.subr.bf16.mxu0 0
        %2606 = vmatpush1.bf16.msra.mxu0 %v1610
        %2607 = vmatprep.subr.bf16.mxu0 0
        %2608 = vmatpush1.bf16.msra.mxu0 %v1611
        %2609 = vmatprep.subr.bf16.mxu0 0
        %2610 = vmatpush1.bf16.msra.mxu0 %v1612
        %2611 = vmatprep.subr.bf16.mxu0 0
        %2612 = vmatpush1.bf16.msra.mxu0 %v1613
        %2613 = vmatprep.subr.bf16.mxu0 0
        %2614 = vmatpush1.bf16.msra.mxu0 %v1614
        %2615 = vmatprep.subr.bf16.mxu0 0
        %2616 = vmatpush1.bf16.msra.mxu0 %v1615
        %2617 = vmatprep.subr.bf16.mxu0 0
        %2618 = vmatpush1.bf16.msra.mxu0 %v1616
        %2619 = vmatprep.subr.bf16.mxu0 0
        %2620 = vmatpush1.bf16.msra.mxu0 0
        %2621 = vmatprep.subr.bf16.mxu0 0
        %2622 = vmatpush1.bf16.msra.mxu0 0
        %2623 = vmatprep.subr.bf16.mxu0 0
        %2624 = vmatpush1.bf16.msra.mxu0 0
        %2625 = vmatprep.subr.bf16.mxu0 0
        %2626 = vmatpush1.bf16.msra.mxu0 0
        %2627 = vmatprep.subr.bf16.mxu0 0
        %2628 = vmatpush1.bf16.msra.mxu0 0
        %2629 = vmatprep.subr.bf16.mxu0 0
        %2630 = vmatpush1.bf16.msra.mxu0 0
        %2631 = vmatprep.subr.bf16.mxu0 0
        %2632 = vmatpush1.bf16.msra.mxu0 0
        %2633 = vmatprep.mubr.bf16.mxu0 %v2360
        %2634 = vmatmul.mubr.bf16.gmra.mrb[0].mxu0 %v2228
        %v2635 = vpop.f32.mrb[0].mxu0
        %v2636 = vadd.f32 %v2451, %v2635
        %v2637 = vpop.f32.mrb[0].mxu0
        %v2638 = vpop.f32.mrb[0].mxu0
        %v2639 = vadd.f32 %v2454, %v2638
        %v2640 = vpop.f32.mrb[0].mxu0
        %2641 = vmatprep.mubr.bf16.mxu0 %v2363
        %2642 = vmatmul.mubr.bf16.gmra.mrb[0].mxu0 %v2232
        %v2643 = vpop.f32.mrb[0].mxu0
        %v2644 = vadd.f32 %v2459, %v2643
        %v2645 = vpop.f32.mrb[0].mxu0
        %v2646 = vpop.f32.mrb[0].mxu0
        %v2647 = vadd.f32 %v2462, %v2646
        %v2648 = vpop.f32.mrb[0].mxu0
        %2649 = vmatprep.mubr.bf16.mxu0 %v2366
        %2650 = vmatmul.mubr.bf16.gmra.mrb[0].mxu0 %v2236
        %v2651 = vpop.f32.mrb[0].mxu0
        %v2652 = vadd.f32 %v2467, %v2651
        %v2653 = vpop.f32.mrb[0].mxu0
        %v2654 = vpop.f32.mrb[0].mxu0
        %v2655 = vadd.f32 %v2470, %v2654
        %v2656 = vpop.f32.mrb[0].mxu0
        %2657 = vmatprep.mubr.bf16.mxu0 %v2369
        %2658 = vmatmul.mubr.bf16.gmra.mrb[0].mxu0 %v2240
        %v2659 = vpop.f32.mrb[0].mxu0
        %v2660 = vadd.f32 %v2475, %v2659
        %v2661 = vpop.f32.mrb[0].mxu0
        %v2662 = vpop.f32.mrb[0].mxu0
        %v2663 = vadd.f32 %v2478, %v2662
        %v2664 = vpop.f32.mrb[0].mxu0
        %2665 = vmatprep.mubr.bf16.mxu0 %v2372
        %2666 = vmatmul.mubr.bf16.gmra.mrb[0].mxu0 %v2244
        %v2667 = vpop.f32.mrb[0].mxu0
        %v2668 = vadd.f32 %v2483, %v2667
        %v2669 = vpop.f32.mrb[0].mxu0
        %v2670 = vpop.f32.mrb[0].mxu0
        %v2671 = vadd.f32 %v2486, %v2670
        %v2672 = vpop.f32.mrb[0].mxu0
        %2673 = vmatprep.mubr.bf16.mxu0 %v2375
        %2674 = vmatmul.mubr.bf16.gmra.mrb[0].mxu0 %v2248
        %v2675 = vpop.f32.mrb[0].mxu0
        %v2676 = vadd.f32 %v2491, %v2675
        %v2677 = vpop.f32.mrb[0].mxu0
        %v2678 = vpop.f32.mrb[0].mxu0
        %v2679 = vadd.f32 %v2494, %v2678
        %v2680 = vpop.f32.mrb[0].mxu0
        %2681 = vmatprep.mubr.bf16.mxu0 %v2378
        %2682 = vmatmul.mubr.bf16.gmra.mrb[0].mxu0 %v2252
        %v2683 = vpop.f32.mrb[0].mxu0
        %v2684 = vadd.f32 %v2499, %v2683
        %v2685 = vpop.f32.mrb[0].mxu0
        %v2686 = vpop.f32.mrb[0].mxu0
        %v2687 = vadd.f32 %v2502, %v2686
        %v2688 = vpop.f32.mrb[0].mxu0
        %2689 = vmatprep.mubr.bf16.mxu0 %v2381
        %2690 = vmatmul.mubr.bf16.gmra.mrb[0].mxu0 %v2256
        %v2691 = vpop.f32.mrb[0].mxu0
        %v2692 = vadd.f32 %v2507, %v2691
        %v2693 = vpop.f32.mrb[0].mxu0
        %v2694 = vpop.f32.mrb[0].mxu0
        %v2695 = vadd.f32 %v2510, %v2694
        %v2696 = vpop.f32.mrb[0].mxu0
        %2697 = vmatprep.mubr.bf16.mxu0 %v2384
        %2698 = vmatmul.mubr.bf16.gmra.mrb[0].mxu0 %v2260
        %v2699 = vpop.f32.mrb[0].mxu0
        %v2700 = vadd.f32 %v2515, %v2699
        %v2701 = vpop.f32.mrb[0].mxu0
        %v2702 = vpop.f32.mrb[0].mxu0
        %v2703 = vadd.f32 %v2518, %v2702
        %v2704 = vpop.f32.mrb[0].mxu0
        %2705 = vmatprep.mubr.bf16.mxu0 %v2387
        %2706 = vmatmul.mubr.bf16.gmra.mrb[0].mxu0 %v2264
        %v2707 = vpop.f32.mrb[0].mxu0
        %v2708 = vadd.f32 %v2523, %v2707
        %v2709 = vpop.f32.mrb[0].mxu0
        %v2710 = vpop.f32.mrb[0].mxu0
        %v2711 = vadd.f32 %v2526, %v2710
        %v2712 = vpop.f32.mrb[0].mxu0
        %2713 = vmatprep.mubr.bf16.mxu0 %v2390
        %2714 = vmatmul.mubr.bf16.gmra.mrb[0].mxu0 %v2268
        %v2715 = vpop.f32.mrb[0].mxu0
        %v2716 = vadd.f32 %v2531, %v2715
        %v2717 = vpop.f32.mrb[0].mxu0
        %v2718 = vpop.f32.mrb[0].mxu0
        %v2719 = vadd.f32 %v2534, %v2718
        %v2720 = vpop.f32.mrb[0].mxu0
        %2721 = vmatprep.mubr.bf16.mxu0 %v2393
        %2722 = vmatmul.mubr.bf16.gmra.mrb[0].mxu0 %v2272
        %v2723 = vpop.f32.mrb[0].mxu0
        %v2724 = vadd.f32 %v2539, %v2723
        %v2725 = vpop.f32.mrb[0].mxu0
        %v2726 = vpop.f32.mrb[0].mxu0
        %v2727 = vadd.f32 %v2542, %v2726
        %v2728 = vpop.f32.mrb[0].mxu0
        %2729 = vmatprep.mubr.bf16.mxu0 %v2396
        %2730 = vmatmul.mubr.bf16.gmra.mrb[0].mxu0 %v2276
        %v2731 = vpop.f32.mrb[0].mxu0
        %v2732 = vadd.f32 %v2547, %v2731
        %v2733 = vpop.f32.mrb[0].mxu0
        %v2734 = vpop.f32.mrb[0].mxu0
        %v2735 = vadd.f32 %v2550, %v2734
        %v2736 = vpop.f32.mrb[0].mxu0
        %2737 = vmatprep.mubr.bf16.mxu0 %v2399
        %2738 = vmatmul.mubr.bf16.gmra.mrb[0].mxu0 %v2280
        %v2739 = vpop.f32.mrb[0].mxu0
        %v2740 = vadd.f32 %v2555, %v2739
        %v2741 = vpop.f32.mrb[0].mxu0
        %v2742 = vpop.f32.mrb[0].mxu0
        %v2743 = vadd.f32 %v2558, %v2742
        %v2744 = vpop.f32.mrb[0].mxu0
        %2745 = vmatprep.mubr.bf16.mxu0 %v2402
        %2746 = vmatmul.mubr.bf16.gmra.mrb[0].mxu0 %v2284
        %v2747 = vpop.f32.mrb[0].mxu0
        %v2748 = vadd.f32 %v2563, %v2747
        %v2749 = vpop.f32.mrb[0].mxu0
        %v2750 = vpop.f32.mrb[0].mxu0
        %v2751 = vadd.f32 %v2566, %v2750
        %v2752 = vpop.f32.mrb[0].mxu0
        %2753 = vmatprep.mubr.bf16.mxu0 %v2405
        %2754 = vmatmul.mubr.bf16.gmra.mrb[0].mxu0 %v2288
        %v2755 = vpop.f32.mrb[0].mxu0
        %v2756 = vadd.f32 %v2571, %v2755
        %v2757 = vpop.f32.mrb[0].mxu0
        %v2758 = vpop.f32.mrb[0].mxu0
        %v2759 = vadd.f32 %v2574, %v2758
        %v2760 = vpop.f32.mrb[0].mxu0
        %2761 = vmatprep.mubr.bf16.mxu0 %v2408
        %2762 = vmatmul.mubr.bf16.gmra.mrb[0].mxu0 %v2292
        %v2763 = vpop.f32.mrb[0].mxu0
        %v2764 = vadd.f32 %v2579, %v2763
        %v2765 = vpop.f32.mrb[0].mxu0
        %v2766 = vpop.f32.mrb[0].mxu0
        %v2767 = vadd.f32 %v2582, %v2766
        %v2768 = vpop.f32.mrb[0].mxu0
        %2769 = vmatprep.mubr.bf16.mxu0 %v2411
        %2770 = vmatmul.mubr.bf16.gmra.mrb[0].mxu0 %v2296
        %v2771 = vpop.f32.mrb[0].mxu0
        %v2772 = vadd.f32 %v2587, %v2771
        %v2773 = vpop.f32.mrb[0].mxu0
        %v2774 = vpop.f32.mrb[0].mxu0
        %v2775 = vadd.f32 %v2590, %v2774
        %v2776 = vpop.f32.mrb[0].mxu0
        %2777 = vmatprep.mubr.bf16.mxu0 %v2414
        %2778 = vmatmul.mubr.bf16.gmra.mrb[0].mxu0 %v2300
        %v2779 = vpop.f32.mrb[0].mxu0
        %v2780 = vadd.f32 %v2595, %v2779
        %v2781 = vpop.f32.mrb[0].mxu0
        %v2782 = vpop.f32.mrb[0].mxu0
        %v2783 = vadd.f32 %v2598, %v2782
        %v2784 = vpop.f32.mrb[0].mxu0
        %2785 = vdwg.mxu0
        %v2786 = vld [vmem:[%s7] sm:$0xff]
        %v2787 = vld [vmem:[%s7 + $0x8] sm:$0xff]
        %v2788 = vld [vmem:[%s7 + $0x10] sm:$0xff]
        %v2789 = vld [vmem:[%s7 + $0x18] sm:$0xff]
        %v2790 = vld [vmem:[%s7 + $0x20] sm:$0xff]
        %v2791 = vld [vmem:[%s7 + $0x28] sm:$0xff]
        %v2792 = vld [vmem:[%s7 + $0x30] sm:$0xff]
        %v2793 = vld [vmem:[%s7 + $0x38] sm:$0xff]
        %v2794 = vld [vmem:[%s7 + $0x40] sm:$0xff]
        %v2795 = vld [vmem:[%s7 + $0x48] sm:$0xff]
        %v2796 = vld [vmem:[%s7 + $0x50] sm:$0xff]
        %v2797 = vld [vmem:[%s7 + $0x58] sm:$0xff]
        %v2798 = vld [vmem:[%s7 + $0x60] sm:$0xff]
        %v2799 = vld [vmem:[%s7 + $0x68] sm:$0xff]
        %v2800 = vld [vmem:[%s7 + $0x70] sm:$0xff]
        %v2801 = vld [vmem:[%s7 + $0x78] sm:$0xff]
        %v2802 = vld [vmem:[%s7 + $0x80] sm:$0xff]
        %v2803 = vld [vmem:[%s7 + $0x88] sm:$0xff]
        %v2804 = vld [vmem:[%s7 + $0x90] sm:$0xff]
        %v2805 = vld [vmem:[%s7 + $0x98] sm:$0xff]
        %v2806 = vld [vmem:[%s7 + $0xa0] sm:$0xff]
        %v2807 = vld [vmem:[%s7 + $0xa8] sm:$0xff]
        %v2808 = vld [vmem:[%s7 + $0xb0] sm:$0xff]
        %v2809 = vld [vmem:[%s7 + $0xb8] sm:$0xff]
        %v2810 = vld [vmem:[%s7 + $0xc0] sm:$0xff]
        %v2811 = vld [vmem:[%s7 + $0xc8] sm:$0xff]
        %v2812 = vld [vmem:[%s7 + $0xd0] sm:$0xff]
        %v2813 = vld [vmem:[%s7 + $0xd8] sm:$0xff]
        %v2814 = vld [vmem:[%s7 + $0xe0] sm:$0xff]
        %v2815 = vld [vmem:[%s7 + $0xe8] sm:$0xff]
        %v2816 = vld [vmem:[%s7 + $0xf0] sm:$0xff]
        %v2817 = vld [vmem:[%s7 + $0xf8] sm:$0xff]
        %v2818 = vld [vmem:[%s7 + $0x100] sm:$0xff]
        %v2819 = vld [vmem:[%s7 + $0x108] sm:$0xff]
        %v2820 = vld [vmem:[%s7 + $0x110] sm:$0xff]
        %v2821 = vld [vmem:[%s7 + $0x118] sm:$0xff]
        %v2822 = vld [vmem:[%s7 + $0x120] sm:$0xff]
        %v2823 = vld [vmem:[%s7 + $0x128] sm:$0xf]
        %2825 = vset.pattern.permute.xlu0 0
        %2826 = vperm.xlu0 %2825, %v2786
        %v2827 = vpop.permute.xlu0 %2826
        %2830 = vset.pattern.permute.xlu0 0
        %2831 = vperm.xlu0 %2830, %v2787
        %v2832 = vpop.permute.xlu0 %2831
        %2835 = vset.pattern.permute.xlu0 0
        %2836 = vperm.xlu0 %2835, %v2788
        %v2837 = vpop.permute.xlu0 %2836
        %2840 = vset.pattern.permute.xlu0 0
        %2841 = vperm.xlu0 %2840, %v2789
        %v2842 = vpop.permute.xlu0 %2841
        %2845 = vset.pattern.permute.xlu0 0
        %2846 = vperm.xlu0 %2845, %v2790
        %v2847 = vpop.permute.xlu0 %2846
        %2850 = vset.pattern.permute.xlu0 0
        %2851 = vperm.xlu0 %2850, %v2791
        %v2852 = vpop.permute.xlu0 %2851
        %2855 = vset.pattern.permute.xlu0 0
        %2856 = vperm.xlu0 %2855, %v2792
        %v2857 = vpop.permute.xlu0 %2856
        %2860 = vset.pattern.permute.xlu0 0
        %2861 = vperm.xlu0 %2860, %v2793
        %v2862 = vpop.permute.xlu0 %2861
        %2865 = vset.pattern.permute.xlu0 0
        %2866 = vperm.xlu0 %2865, %v2794
        %v2867 = vpop.permute.xlu0 %2866
        %2870 = vset.pattern.permute.xlu0 0
        %2871 = vperm.xlu0 %2870, %v2795
        %v2872 = vpop.permute.xlu0 %2871
        %2875 = vset.pattern.permute.xlu0 0
        %2876 = vperm.xlu0 %2875, %v2796
        %v2877 = vpop.permute.xlu0 %2876
        %2880 = vset.pattern.permute.xlu0 0
        %2881 = vperm.xlu0 %2880, %v2797
        %v2882 = vpop.permute.xlu0 %2881
        %2885 = vset.pattern.permute.xlu0 0
        %2886 = vperm.xlu0 %2885, %v2798
        %v2887 = vpop.permute.xlu0 %2886
        %2890 = vset.pattern.permute.xlu0 0
        %2891 = vperm.xlu0 %2890, %v2799
        %v2892 = vpop.permute.xlu0 %2891
        %2895 = vset.pattern.permute.xlu0 0
        %2896 = vperm.xlu0 %2895, %v2800
        %v2897 = vpop.permute.xlu0 %2896
        %2900 = vset.pattern.permute.xlu0 0
        %2901 = vperm.xlu0 %2900, %v2801
        %v2902 = vpop.permute.xlu0 %2901
        %2905 = vset.pattern.permute.xlu0 0
        %2906 = vperm.xlu0 %2905, %v2802
        %v2907 = vpop.permute.xlu0 %2906
        %2910 = vset.pattern.permute.xlu0 0
        %2911 = vperm.xlu0 %2910, %v2803
        %v2912 = vpop.permute.xlu0 %2911
        %2915 = vset.pattern.permute.xlu0 0
        %2916 = vperm.xlu0 %2915, %v2804
        %v2917 = vpop.permute.xlu0 %2916
        %2920 = vset.pattern.permute.xlu0 0
        %2921 = vperm.xlu0 %2920, %v2805
        %v2922 = vpop.permute.xlu0 %2921
        %2925 = vset.pattern.permute.xlu0 0
        %2926 = vperm.xlu0 %2925, %v2806
        %v2927 = vpop.permute.xlu0 %2926
        %2930 = vset.pattern.permute.xlu0 0
        %2931 = vperm.xlu0 %2930, %v2807
        %v2932 = vpop.permute.xlu0 %2931
        %2935 = vset.pattern.permute.xlu0 0
        %2936 = vperm.xlu0 %2935, %v2808
        %v2937 = vpop.permute.xlu0 %2936
        %2940 = vset.pattern.permute.xlu0 0
        %2941 = vperm.xlu0 %2940, %v2809
        %v2942 = vpop.permute.xlu0 %2941
        %2945 = vset.pattern.permute.xlu0 0
        %2946 = vperm.xlu0 %2945, %v2810
        %v2947 = vpop.permute.xlu0 %2946
        %2950 = vset.pattern.permute.xlu0 0
        %2951 = vperm.xlu0 %2950, %v2811
        %v2952 = vpop.permute.xlu0 %2951
        %2955 = vset.pattern.permute.xlu0 0
        %2956 = vperm.xlu0 %2955, %v2812
        %v2957 = vpop.permute.xlu0 %2956
        %2960 = vset.pattern.permute.xlu0 0
        %2961 = vperm.xlu0 %2960, %v2813
        %v2962 = vpop.permute.xlu0 %2961
        %2965 = vset.pattern.permute.xlu0 0
        %2966 = vperm.xlu0 %2965, %v2814
        %v2967 = vpop.permute.xlu0 %2966
        %2970 = vset.pattern.permute.xlu0 0
        %2971 = vperm.xlu0 %2970, %v2815
        %v2972 = vpop.permute.xlu0 %2971
        %2975 = vset.pattern.permute.xlu0 0
        %2976 = vperm.xlu0 %2975, %v2816
        %v2977 = vpop.permute.xlu0 %2976
        %2980 = vset.pattern.permute.xlu0 0
        %2981 = vperm.xlu0 %2980, %v2817
        %v2982 = vpop.permute.xlu0 %2981
        %2985 = vset.pattern.permute.xlu0 0
        %2986 = vperm.xlu0 %2985, %v2818
        %v2987 = vpop.permute.xlu0 %2986
        %2990 = vset.pattern.permute.xlu0 0
        %2991 = vperm.xlu0 %2990, %v2819
        %v2992 = vpop.permute.xlu0 %2991
        %2995 = vset.pattern.permute.xlu0 0
        %2996 = vperm.xlu0 %2995, %v2820
        %v2997 = vpop.permute.xlu0 %2996
        %3000 = vset.pattern.permute.xlu0 0
        %3001 = vperm.xlu0 %3000, %v2821
        %v3002 = vpop.permute.xlu0 %3001
        %3005 = vset.pattern.permute.xlu0 0
        %3006 = vperm.xlu0 %3005, %v2822
        %v3007 = vpop.permute.xlu0 %3006
        %3010 = vset.pattern.permute.xlu0 0
        %3011 = vperm.xlu0 %3010, %v2823
        %v3012 = vpop.permute.xlu0 %3011
        %v3014 = vadd.f32 %v2636, %v2827
        %v3015 = vadd.f32 %v2639, %v2832
        %v3016 = vadd.f32 %v2644, %v2837
        %v3017 = vadd.f32 %v2647, %v2842
        %v3018 = vadd.f32 %v2652, %v2847
        %v3019 = vadd.f32 %v2655, %v2852
        %v3020 = vadd.f32 %v2660, %v2857
        %v3021 = vadd.f32 %v2663, %v2862
        %v3022 = vadd.f32 %v2668, %v2867
        %v3023 = vadd.f32 %v2671, %v2872
        %v3024 = vadd.f32 %v2676, %v2877
        %v3025 = vadd.f32 %v2679, %v2882
        %v3026 = vadd.f32 %v2684, %v2887
        %v3027 = vadd.f32 %v2687, %v2892
        %v3028 = vadd.f32 %v2692, %v2897
        %v3029 = vadd.f32 %v2695, %v2902
        %v3030 = vadd.f32 %v2700, %v2907
        %v3031 = vadd.f32 %v2703, %v2912
        %v3032 = vadd.f32 %v2708, %v2917
        %v3033 = vadd.f32 %v2711, %v2922
        %v3034 = vadd.f32 %v2716, %v2927
        %v3035 = vadd.f32 %v2719, %v2932
        %v3036 = vadd.f32 %v2724, %v2937
        %v3037 = vadd.f32 %v2727, %v2942
        %v3038 = vadd.f32 %v2732, %v2947
        %v3039 = vadd.f32 %v2735, %v2952
        %v3040 = vadd.f32 %v2740, %v2957
        %v3041 = vadd.f32 %v2743, %v2962
        %v3042 = vadd.f32 %v2748, %v2967
        %v3043 = vadd.f32 %v2751, %v2972
        %v3044 = vadd.f32 %v2756, %v2977
        %v3045 = vadd.f32 %v2759, %v2982
        %v3046 = vadd.f32 %v2764, %v2987
        %v3047 = vadd.f32 %v2767, %v2992
        %v3048 = vadd.f32 %v2772, %v2997
        %v3049 = vadd.f32 %v2775, %v3002
        %v3050 = vadd.f32 %v2780, %v3007
        %v3051 = vadd.f32 %v2783, %v3012
        %v3052 = vmax.f32 %v3014, 0.0
        %v3053 = vmax.f32 %v3015, 0.0
        %v3054 = vmax.f32 %v3016, 0.0
        %v3055 = vmax.f32 %v3017, 0.0
        %v3056 = vmax.f32 %v3018, 0.0
        %v3057 = vmax.f32 %v3019, 0.0
        %v3058 = vmax.f32 %v3020, 0.0
        %v3059 = vmax.f32 %v3021, 0.0
        %v3060 = vmax.f32 %v3022, 0.0
        %v3061 = vmax.f32 %v3023, 0.0
        %v3062 = vmax.f32 %v3024, 0.0
        %v3063 = vmax.f32 %v3025, 0.0
        %v3064 = vmax.f32 %v3026, 0.0
        %v3065 = vmax.f32 %v3027, 0.0
        %v3066 = vmax.f32 %v3028, 0.0
        %v3067 = vmax.f32 %v3029, 0.0
        %v3068 = vmax.f32 %v3030, 0.0
        %v3069 = vmax.f32 %v3031, 0.0
        %v3070 = vmax.f32 %v3032, 0.0
        %v3071 = vmax.f32 %v3033, 0.0
        %v3072 = vmax.f32 %v3034, 0.0
        %v3073 = vmax.f32 %v3035, 0.0
        %v3074 = vmax.f32 %v3036, 0.0
        %v3075 = vmax.f32 %v3037, 0.0
        %v3076 = vmax.f32 %v3038, 0.0
        %v3077 = vmax.f32 %v3039, 0.0
        %v3078 = vmax.f32 %v3040, 0.0
        %v3079 = vmax.f32 %v3041, 0.0
        %v3080 = vmax.f32 %v3042, 0.0
        %v3081 = vmax.f32 %v3043, 0.0
        %v3082 = vmax.f32 %v3044, 0.0
        %v3083 = vmax.f32 %v3045, 0.0
        %v3084 = vmax.f32 %v3046, 0.0
        %v3085 = vmax.f32 %v3047, 0.0
        %v3086 = vmax.f32 %v3048, 0.0
        %v3087 = vmax.f32 %v3049, 0.0
        %v3088 = vmax.f32 %v3050, 0.0
        %v3089 = vmax.f32 %v3051, 0.0
        %v3090 = vadd.f32 %v3052, %v3053
        %v3091 = vadd.f32 %v3090, %v3054
        %v3092 = vadd.f32 %v3091, %v3055
        %v3093 = vadd.f32 %v3092, %v3056
        %v3094 = vadd.f32 %v3093, %v3057
        %v3095 = vadd.f32 %v3094, %v3058
        %v3096 = vadd.f32 %v3095, %v3059
        %v3097 = vadd.f32 %v3096, %v3060
        %v3098 = vadd.f32 %v3097, %v3061
        %v3099 = vadd.f32 %v3098, %v3062
        %v3100 = vadd.f32 %v3099, %v3063
        %v3101 = vadd.f32 %v3100, %v3064
        %v3102 = vadd.f32 %v3101, %v3065
        %v3103 = vadd.f32 %v3102, %v3066
        %v3104 = vadd.f32 %v3103, %v3067
        %v3105 = vadd.f32 %v3104, %v3068
        %v3106 = vadd.f32 %v3105, %v3069
        %v3107 = vadd.f32 %v3106, %v3070
        %v3108 = vadd.f32 %v3107, %v3071
        %v3109 = vadd.f32 %v3108, %v3072
        %v3110 = vadd.f32 %v3109, %v3073
        %v3111 = vadd.f32 %v3110, %v3074
        %v3112 = vadd.f32 %v3111, %v3075
        %v3113 = vadd.f32 %v3112, %v3076
        %v3114 = vadd.f32 %v3113, %v3077
        %v3115 = vadd.f32 %v3114, %v3078
        %v3116 = vadd.f32 %v3115, %v3079
        %v3117 = vadd.f32 %v3116, %v3080
        %v3118 = vadd.f32 %v3117, %v3081
        %v3119 = vadd.f32 %v3118, %v3082
        %v3120 = vadd.f32 %v3119, %v3083
        %v3121 = vadd.f32 %v3120, %v3084
        %v3122 = vadd.f32 %v3121, %v3085
        %v3123 = vadd.f32 %v3122, %v3086
        %v3124 = vadd.f32 %v3123, %v3087
        %v3125 = vadd.f32 %v3124, %v3088
        %v3126 = vsel %vm1809, %v3089, 0.0
        %v3127 = vadd.f32 %v3125, %v3126
        %v3128 = vrot.slane %v3127, 4
        %v3129 = vadd.f32 %v3127, %v3128
        %v3130 = vrot.slane %v3129, 2
        %v3131 = vadd.f32 %v3129, %v3130
        %v3132 = vrot.slane %v3131, 1
        %v3133 = vadd.f32 %v3131, %v3132
        %v3134 = vmul.f32 %v3052, %v3052
        %v3135 = vmul.f32 %v3053, %v3053
        %v3136 = vmul.f32 %v3054, %v3054
        %v3137 = vmul.f32 %v3055, %v3055
        %v3138 = vmul.f32 %v3056, %v3056
        %v3139 = vmul.f32 %v3057, %v3057
        %v3140 = vmul.f32 %v3058, %v3058
        %v3141 = vmul.f32 %v3059, %v3059
        %v3142 = vmul.f32 %v3060, %v3060
        %v3143 = vmul.f32 %v3061, %v3061
        %v3144 = vmul.f32 %v3062, %v3062
        %v3145 = vmul.f32 %v3063, %v3063
        %v3146 = vmul.f32 %v3064, %v3064
        %v3147 = vmul.f32 %v3065, %v3065
        %v3148 = vmul.f32 %v3066, %v3066
        %v3149 = vmul.f32 %v3067, %v3067
        %v3150 = vmul.f32 %v3068, %v3068
        %v3151 = vmul.f32 %v3069, %v3069
        %v3152 = vmul.f32 %v3070, %v3070
        %v3153 = vmul.f32 %v3071, %v3071
        %v3154 = vmul.f32 %v3072, %v3072
        %v3155 = vmul.f32 %v3073, %v3073
        %v3156 = vmul.f32 %v3074, %v3074
        %v3157 = vmul.f32 %v3075, %v3075
        %v3158 = vmul.f32 %v3076, %v3076
        %v3159 = vmul.f32 %v3077, %v3077
        %v3160 = vmul.f32 %v3078, %v3078
        %v3161 = vmul.f32 %v3079, %v3079
        %v3162 = vmul.f32 %v3080, %v3080
        %v3163 = vmul.f32 %v3081, %v3081
        %v3164 = vmul.f32 %v3082, %v3082
        %v3165 = vmul.f32 %v3083, %v3083
        %v3166 = vmul.f32 %v3084, %v3084
        %v3167 = vmul.f32 %v3085, %v3085
        %v3168 = vmul.f32 %v3086, %v3086
        %v3169 = vmul.f32 %v3087, %v3087
        %v3170 = vmul.f32 %v3088, %v3088
        %v3171 = vmul.f32 %v3089, %v3089
        %v3172 = vadd.f32 %v3134, %v3135
        %v3173 = vadd.f32 %v3172, %v3136
        %v3174 = vadd.f32 %v3173, %v3137
        %v3175 = vadd.f32 %v3174, %v3138
        %v3176 = vadd.f32 %v3175, %v3139
        %v3177 = vadd.f32 %v3176, %v3140
        %v3178 = vadd.f32 %v3177, %v3141
        %v3179 = vadd.f32 %v3178, %v3142
        %v3180 = vadd.f32 %v3179, %v3143
        %v3181 = vadd.f32 %v3180, %v3144
        %v3182 = vadd.f32 %v3181, %v3145
        %v3183 = vadd.f32 %v3182, %v3146
        %v3184 = vadd.f32 %v3183, %v3147
        %v3185 = vadd.f32 %v3184, %v3148
        %v3186 = vadd.f32 %v3185, %v3149
        %v3187 = vadd.f32 %v3186, %v3150
        %v3188 = vadd.f32 %v3187, %v3151
        %v3189 = vadd.f32 %v3188, %v3152
        %v3190 = vadd.f32 %v3189, %v3153
        %v3191 = vadd.f32 %v3190, %v3154
        %v3192 = vadd.f32 %v3191, %v3155
        %v3193 = vadd.f32 %v3192, %v3156
        %v3194 = vadd.f32 %v3193, %v3157
        %v3195 = vadd.f32 %v3194, %v3158
        %v3196 = vadd.f32 %v3195, %v3159
        %v3197 = vadd.f32 %v3196, %v3160
        %v3198 = vadd.f32 %v3197, %v3161
        %v3199 = vadd.f32 %v3198, %v3162
        %v3200 = vadd.f32 %v3199, %v3163
        %v3201 = vadd.f32 %v3200, %v3164
        %v3202 = vadd.f32 %v3201, %v3165
        %v3203 = vadd.f32 %v3202, %v3166
        %v3204 = vadd.f32 %v3203, %v3167
        %v3205 = vadd.f32 %v3204, %v3168
        %v3206 = vadd.f32 %v3205, %v3169
        %v3207 = vadd.f32 %v3206, %v3170
        %v3208 = vsel %vm1809, %v3171, 0.0
        %v3209 = vadd.f32 %v3207, %v3208
        %v3210 = vrot.slane %v3209, 4
        %v3211 = vadd.f32 %v3209, %v3210
        %v3212 = vrot.slane %v3211, 2
        %v3213 = vadd.f32 %v3211, %v3212
        %v3214 = vrot.slane %v3213, 1
        %v3215 = vadd.f32 %v3213, %v3214
        %v3216 = vrcp.pop 300.0
        %v3217 = vmul.f32 %v3133, %v3216
        %v3218 = vmul.f32 %v3215, %v3216
        %v3219 = vmul.f32 %v3217, %v3217
        %v3220 = vsub.f32 %v3218, %v3219
        %v3221 = vmax.f32 %v3220, 0.0
        %v3222 = vld [vmem:[%s8] sm:$0xff]
        %v3223 = vld [vmem:[%s8 + $0x8] sm:$0xff]
        %v3224 = vld [vmem:[%s8 + $0x10] sm:$0xff]
        %v3225 = vld [vmem:[%s8 + $0x18] sm:$0xff]
        %v3226 = vld [vmem:[%s8 + $0x20] sm:$0xff]
        %v3227 = vld [vmem:[%s8 + $0x28] sm:$0xff]
        %v3228 = vld [vmem:[%s8 + $0x30] sm:$0xff]
        %v3229 = vld [vmem:[%s8 + $0x38] sm:$0xff]
        %v3230 = vld [vmem:[%s8 + $0x40] sm:$0xff]
        %v3231 = vld [vmem:[%s8 + $0x48] sm:$0xff]
        %v3232 = vld [vmem:[%s8 + $0x50] sm:$0xff]
        %v3233 = vld [vmem:[%s8 + $0x58] sm:$0xff]
        %v3234 = vld [vmem:[%s8 + $0x60] sm:$0xff]
        %v3235 = vld [vmem:[%s8 + $0x68] sm:$0xff]
        %v3236 = vld [vmem:[%s8 + $0x70] sm:$0xff]
        %v3237 = vld [vmem:[%s8 + $0x78] sm:$0xff]
        %v3238 = vld [vmem:[%s8 + $0x80] sm:$0xff]
        %v3239 = vld [vmem:[%s8 + $0x88] sm:$0xff]
        %v3240 = vld [vmem:[%s8 + $0x90] sm:$0xff]
        %v3241 = vld [vmem:[%s8 + $0x98] sm:$0xff]
        %v3242 = vld [vmem:[%s8 + $0xa0] sm:$0xff]
        %v3243 = vld [vmem:[%s8 + $0xa8] sm:$0xff]
        %v3244 = vld [vmem:[%s8 + $0xb0] sm:$0xff]
        %v3245 = vld [vmem:[%s8 + $0xb8] sm:$0xff]
        %v3246 = vld [vmem:[%s8 + $0xc0] sm:$0xff]
        %v3247 = vld [vmem:[%s8 + $0xc8] sm:$0xff]
        %v3248 = vld [vmem:[%s8 + $0xd0] sm:$0xff]
        %v3249 = vld [vmem:[%s8 + $0xd8] sm:$0xff]
        %v3250 = vld [vmem:[%s8 + $0xe0] sm:$0xff]
        %v3251 = vld [vmem:[%s8 + $0xe8] sm:$0xff]
        %v3252 = vld [vmem:[%s8 + $0xf0] sm:$0xff]
        %v3253 = vld [vmem:[%s8 + $0xf8] sm:$0xff]
        %v3254 = vld [vmem:[%s8 + $0x100] sm:$0xff]
        %v3255 = vld [vmem:[%s8 + $0x108] sm:$0xff]
        %v3256 = vld [vmem:[%s8 + $0x110] sm:$0xff]
        %v3257 = vld [vmem:[%s8 + $0x118] sm:$0xff]
        %v3258 = vld [vmem:[%s8 + $0x120] sm:$0xff]
        %v3259 = vld [vmem:[%s8 + $0x128] sm:$0xf]
        %3261 = vset.pattern.permute.xlu0 0
        %3262 = vperm.xlu0 %3261, %v3222
        %v3263 = vpop.permute.xlu0 %3262
        %3266 = vset.pattern.permute.xlu0 0
        %3267 = vperm.xlu0 %3266, %v3223
        %v3268 = vpop.permute.xlu0 %3267
        %3271 = vset.pattern.permute.xlu0 0
        %3272 = vperm.xlu0 %3271, %v3224
        %v3273 = vpop.permute.xlu0 %3272
        %3276 = vset.pattern.permute.xlu0 0
        %3277 = vperm.xlu0 %3276, %v3225
        %v3278 = vpop.permute.xlu0 %3277
        %3281 = vset.pattern.permute.xlu0 0
        %3282 = vperm.xlu0 %3281, %v3226
        %v3283 = vpop.permute.xlu0 %3282
        %3286 = vset.pattern.permute.xlu0 0
        %3287 = vperm.xlu0 %3286, %v3227
        %v3288 = vpop.permute.xlu0 %3287
        %3291 = vset.pattern.permute.xlu0 0
        %3292 = vperm.xlu0 %3291, %v3228
        %v3293 = vpop.permute.xlu0 %3292
        %3296 = vset.pattern.permute.xlu0 0
        %3297 = vperm.xlu0 %3296, %v3229
        %v3298 = vpop.permute.xlu0 %3297
        %3301 = vset.pattern.permute.xlu0 0
        %3302 = vperm.xlu0 %3301, %v3230
        %v3303 = vpop.permute.xlu0 %3302
        %3306 = vset.pattern.permute.xlu0 0
        %3307 = vperm.xlu0 %3306, %v3231
        %v3308 = vpop.permute.xlu0 %3307
        %3311 = vset.pattern.permute.xlu0 0
        %3312 = vperm.xlu0 %3311, %v3232
        %v3313 = vpop.permute.xlu0 %3312
        %3316 = vset.pattern.permute.xlu0 0
        %3317 = vperm.xlu0 %3316, %v3233
        %v3318 = vpop.permute.xlu0 %3317
        %3321 = vset.pattern.permute.xlu0 0
        %3322 = vperm.xlu0 %3321, %v3234
        %v3323 = vpop.permute.xlu0 %3322
        %3326 = vset.pattern.permute.xlu0 0
        %3327 = vperm.xlu0 %3326, %v3235
        %v3328 = vpop.permute.xlu0 %3327
        %3331 = vset.pattern.permute.xlu0 0
        %3332 = vperm.xlu0 %3331, %v3236
        %v3333 = vpop.permute.xlu0 %3332
        %3336 = vset.pattern.permute.xlu0 0
        %3337 = vperm.xlu0 %3336, %v3237
        %v3338 = vpop.permute.xlu0 %3337
        %3341 = vset.pattern.permute.xlu0 0
        %3342 = vperm.xlu0 %3341, %v3238
        %v3343 = vpop.permute.xlu0 %3342
        %3346 = vset.pattern.permute.xlu0 0
        %3347 = vperm.xlu0 %3346, %v3239
        %v3348 = vpop.permute.xlu0 %3347
        %3351 = vset.pattern.permute.xlu0 0
        %3352 = vperm.xlu0 %3351, %v3240
        %v3353 = vpop.permute.xlu0 %3352
        %3356 = vset.pattern.permute.xlu0 0
        %3357 = vperm.xlu0 %3356, %v3241
        %v3358 = vpop.permute.xlu0 %3357
        %3361 = vset.pattern.permute.xlu0 0
        %3362 = vperm.xlu0 %3361, %v3242
        %v3363 = vpop.permute.xlu0 %3362
        %3366 = vset.pattern.permute.xlu0 0
        %3367 = vperm.xlu0 %3366, %v3243
        %v3368 = vpop.permute.xlu0 %3367
        %3371 = vset.pattern.permute.xlu0 0
        %3372 = vperm.xlu0 %3371, %v3244
        %v3373 = vpop.permute.xlu0 %3372
        %3376 = vset.pattern.permute.xlu0 0
        %3377 = vperm.xlu0 %3376, %v3245
        %v3378 = vpop.permute.xlu0 %3377
        %3381 = vset.pattern.permute.xlu0 0
        %3382 = vperm.xlu0 %3381, %v3246
        %v3383 = vpop.permute.xlu0 %3382
        %3386 = vset.pattern.permute.xlu0 0
        %3387 = vperm.xlu0 %3386, %v3247
        %v3388 = vpop.permute.xlu0 %3387
        %3391 = vset.pattern.permute.xlu0 0
        %3392 = vperm.xlu0 %3391, %v3248
        %v3393 = vpop.permute.xlu0 %3392
        %3396 = vset.pattern.permute.xlu0 0
        %3397 = vperm.xlu0 %3396, %v3249
        %v3398 = vpop.permute.xlu0 %3397
        %3401 = vset.pattern.permute.xlu0 0
        %3402 = vperm.xlu0 %3401, %v3250
        %v3403 = vpop.permute.xlu0 %3402
        %3406 = vset.pattern.permute.xlu0 0
        %3407 = vperm.xlu0 %3406, %v3251
        %v3408 = vpop.permute.xlu0 %3407
        %3411 = vset.pattern.permute.xlu0 0
        %3412 = vperm.xlu0 %3411, %v3252
        %v3413 = vpop.permute.xlu0 %3412
        %3416 = vset.pattern.permute.xlu0 0
        %3417 = vperm.xlu0 %3416, %v3253
        %v3418 = vpop.permute.xlu0 %3417
        %3421 = vset.pattern.permute.xlu0 0
        %3422 = vperm.xlu0 %3421, %v3254
        %v3423 = vpop.permute.xlu0 %3422
        %3426 = vset.pattern.permute.xlu0 0
        %3427 = vperm.xlu0 %3426, %v3255
        %v3428 = vpop.permute.xlu0 %3427
        %3431 = vset.pattern.permute.xlu0 0
        %3432 = vperm.xlu0 %3431, %v3256
        %v3433 = vpop.permute.xlu0 %3432
        %3436 = vset.pattern.permute.xlu0 0
        %3437 = vperm.xlu0 %3436, %v3257
        %v3438 = vpop.permute.xlu0 %3437
        %3441 = vset.pattern.permute.xlu0 0
        %3442 = vperm.xlu0 %3441, %v3258
        %v3443 = vpop.permute.xlu0 %3442
        %3446 = vset.pattern.permute.xlu0 0
        %3447 = vperm.xlu0 %3446, %v3259
        %v3448 = vpop.permute.xlu0 %3447
        %v3450 = vmul.f32 %v3052, %v3263
        %v3451 = vmul.f32 %v3053, %v3268
        %v3452 = vmul.f32 %v3054, %v3273
        %v3453 = vmul.f32 %v3055, %v3278
        %v3454 = vmul.f32 %v3056, %v3283
        %v3455 = vmul.f32 %v3057, %v3288
        %v3456 = vmul.f32 %v3058, %v3293
        %v3457 = vmul.f32 %v3059, %v3298
        %v3458 = vmul.f32 %v3060, %v3303
        %v3459 = vmul.f32 %v3061, %v3308
        %v3460 = vmul.f32 %v3062, %v3313
        %v3461 = vmul.f32 %v3063, %v3318
        %v3462 = vmul.f32 %v3064, %v3323
        %v3463 = vmul.f32 %v3065, %v3328
        %v3464 = vmul.f32 %v3066, %v3333
        %v3465 = vmul.f32 %v3067, %v3338
        %v3466 = vmul.f32 %v3068, %v3343
        %v3467 = vmul.f32 %v3069, %v3348
        %v3468 = vmul.f32 %v3070, %v3353
        %v3469 = vmul.f32 %v3071, %v3358
        %v3470 = vmul.f32 %v3072, %v3363
        %v3471 = vmul.f32 %v3073, %v3368
        %v3472 = vmul.f32 %v3074, %v3373
        %v3473 = vmul.f32 %v3075, %v3378
        %v3474 = vmul.f32 %v3076, %v3383
        %v3475 = vmul.f32 %v3077, %v3388
        %v3476 = vmul.f32 %v3078, %v3393
        %v3477 = vmul.f32 %v3079, %v3398
        %v3478 = vmul.f32 %v3080, %v3403
        %v3479 = vmul.f32 %v3081, %v3408
        %v3480 = vmul.f32 %v3082, %v3413
        %v3481 = vmul.f32 %v3083, %v3418
        %v3482 = vmul.f32 %v3084, %v3423
        %v3483 = vmul.f32 %v3085, %v3428
        %v3484 = vmul.f32 %v3086, %v3433
        %v3485 = vmul.f32 %v3087, %v3438
        %v3486 = vmul.f32 %v3088, %v3443
        %v3487 = vmul.f32 %v3089, %v3448
        %v3488 = vadd.f32 %v3450, %v3451
        %v3489 = vadd.f32 %v3488, %v3452
        %v3490 = vadd.f32 %v3489, %v3453
        %v3491 = vadd.f32 %v3490, %v3454
        %v3492 = vadd.f32 %v3491, %v3455
        %v3493 = vadd.f32 %v3492, %v3456
        %v3494 = vadd.f32 %v3493, %v3457
        %v3495 = vadd.f32 %v3494, %v3458
        %v3496 = vadd.f32 %v3495, %v3459
        %v3497 = vadd.f32 %v3496, %v3460
        %v3498 = vadd.f32 %v3497, %v3461
        %v3499 = vadd.f32 %v3498, %v3462
        %v3500 = vadd.f32 %v3499, %v3463
        %v3501 = vadd.f32 %v3500, %v3464
        %v3502 = vadd.f32 %v3501, %v3465
        %v3503 = vadd.f32 %v3502, %v3466
        %v3504 = vadd.f32 %v3503, %v3467
        %v3505 = vadd.f32 %v3504, %v3468
        %v3506 = vadd.f32 %v3505, %v3469
        %v3507 = vadd.f32 %v3506, %v3470
        %v3508 = vadd.f32 %v3507, %v3471
        %v3509 = vadd.f32 %v3508, %v3472
        %v3510 = vadd.f32 %v3509, %v3473
        %v3511 = vadd.f32 %v3510, %v3474
        %v3512 = vadd.f32 %v3511, %v3475
        %v3513 = vadd.f32 %v3512, %v3476
        %v3514 = vadd.f32 %v3513, %v3477
        %v3515 = vadd.f32 %v3514, %v3478
        %v3516 = vadd.f32 %v3515, %v3479
        %v3517 = vadd.f32 %v3516, %v3480
        %v3518 = vadd.f32 %v3517, %v3481
        %v3519 = vadd.f32 %v3518, %v3482
        %v3520 = vadd.f32 %v3519, %v3483
        %v3521 = vadd.f32 %v3520, %v3484
        %v3522 = vadd.f32 %v3521, %v3485
        %v3523 = vadd.f32 %v3522, %v3486
        %v3524 = vsel %vm1809, %v3487, 0.0
        %v3525 = vadd.f32 %v3523, %v3524
        %v3526 = vrot.slane %v3525, 4
        %v3527 = vadd.f32 %v3525, %v3526
        %v3528 = vrot.slane %v3527, 2
        %v3529 = vadd.f32 %v3527, %v3528
        %v3530 = vrot.slane %v3529, 1
        %v3531 = vadd.f32 %v3529, %v3530
        %s3532 = sld [smem:[#allocation2]]
        %s3533 = sld [smem:[#allocation2 + $0x1]]
        %v3534 = vstv %s3532
        %v3535 = vmul.f32 %v3217, %v3534
        %v3536 = vsub.f32 %v3531, %v3535
        %v3537 = vadd.f32 %v3221, 1e-05
        %v3538 = vrsqrt.pop %v3537
        %v3539 = vmul.f32 %v3536, %v3538
        %v3540 = vstv %s3533
        %v3541 = vadd.f32 %v3539, %v3540
        %3542 = vst [vmem:[%s404] sm:$0x1] %v3541
        %p3543 = scmp.lt.s32.totalorder %s21, 1
        %s3544 = scalar_select %p3543, %s21, 1
        %s3545 = scalar_lea.vmem %s9, %s3544
        // Predicated region
        $region102: #{qnetwork_forward.1} parent=92 // pred_check
          %p3546 = pneg %p238
        $region103: #{qnetwork_forward.1} parent=92 // pred_check_branch
          %3548 = sbr.rel (%p3546) target = $region105
        $region104: #{qnetwork_forward.1} parent=92 // pred_region
          _
        $region105: #{qnetwork_forward.1} parent=92 // pred_fallthru
          _
      $region93: #{qnetwork_forward.1} parent=5 // pred_fallthru
        _
      %p3549 = scmp.le.s32.totalorder 2, %s16
      // Predicated region
      $region106: #{qnetwork_forward.1} parent=5 // pred_check
        %p3550 = pneg %p3549
      $region107: #{qnetwork_forward.1} parent=5 // pred_check_branch
        %3552 = sbr.rel (%p3550) target = $region109
      $region108: #{qnetwork_forward.1} parent=5 // pred_region
        %s3553 = ssub.s32 %s16, 2
        // Predicated region
        $region110: #{qnetwork_forward.1} parent=108 // pred_check
          %p3554 = pneg %p244
        $region111: #{qnetwork_forward.1} parent=108 // pred_check_branch
          %3556 = sbr.rel (%p3554) target = $region113
        $region112: #{qnetwork_forward.1} parent=108 // pred_region
          %p3557 = scmp.lt.s32.totalorder %s22, 1
          %s3558 = scalar_select %p3557, %s22, 1
          %s3559 = scalar_lea.vmem %s9, %s3558
        $region113: #{qnetwork_forward.1} parent=108 // pred_fallthru
          _
      $region109: #{qnetwork_forward.1} parent=5 // pred_fallthru
        _
    $region6: #{qnetwork_forward.1} parent=1 // loop_footer
      %s20 = sadd.s32 1, %s16
    $region7: #{qnetwork_forward.1} parent=1 // loop_footer_branch
      %15 = sbr.rel target = $region3
    $region8: #{qnetwork_forward.1} parent=1 // loop_exit
      _
    %3560 = vsyncpa [#allocation3], 1
    %s3561 = scalar_lea.sflag [#allocation3], 1
    %3562 = vsyncpa %s3561, 1

</llo_original>
